<compile_context>
chip_gen: v5e
topology: v5e:2x2
jax: 0.10.0
libtpu: 0.0.40
codegen_flags: <defaults>
</compile_context>

<pallas_src>
import functools

import jax
import jax.numpy as jnp
from jax.experimental import pallas as pl
from jax.experimental.pallas import tpu as pltpu

LN_EPS = 1e-5  # PyTorch nn.LayerNorm default


# ---------------------------------------------------------------------------
# In-kernel helpers (traced inside the Pallas kernel)
# ---------------------------------------------------------------------------
def _ln(x, g, b):
    """LayerNorm over the last axis; statistics in f32. g/b are (1, C)."""
    x = x.astype(jnp.float32)
    mean = jnp.mean(x, axis=-1, keepdims=True)
    xc = x - mean
    var = jnp.mean(xc * xc, axis=-1, keepdims=True)
    return xc * jax.lax.rsqrt(var + LN_EPS) * g + b


def _bf16_dot(a, b):
    """MXU matmul with bf16 operands and f32 accumulation."""
    return jnp.dot(a.astype(jnp.bfloat16), b.astype(jnp.bfloat16),
                   preferred_element_type=jnp.float32)


# Exact GELU: erf via Abramowitz & Stegun 7.1.26 (max abs err 1.5e-7). exp -> EUP slot.
_ERF_P = 0.3275911
_ERF_A1 = 0.254829592
_ERF_A2 = -0.284496736
_ERF_A3 = 1.421413741
_ERF_A4 = -1.453152027
_ERF_A5 = 1.061405429


def _erf(x):
    sgn = jnp.where(x >= 0.0, 1.0, -1.0)
    a = jnp.abs(x)
    t = 1.0 / (1.0 + _ERF_P * a)
    poly = t * (_ERF_A1 + t * (_ERF_A2 + t * (_ERF_A3 + t * (_ERF_A4 + t * _ERF_A5))))
    return sgn * (1.0 - poly * jnp.exp(-a * a))


def _gelu(x):
    return 0.5 * x * (1.0 + _erf(x * 0.7071067811865476))


def _sdpa(q, k, v, num_heads, head_dim, scale):
    """Per-head softmax((q*scale) k^T) v on full (L, C) f32 activations.

    Heads are taken by static lane slices; returns lane-concatenated heads (Lq, C) f32.
    """
    q = (q * scale).astype(jnp.bfloat16)   # fold scale in f32, then cast once
    k = k.astype(jnp.bfloat16)
    v = v.astype(jnp.bfloat16)
    outs = []
    for h in range(num_heads):
        sl = slice(h * head_dim, (h + 1) * head_dim)
        s = jax.lax.dot_general(q[:, sl], k[:, sl],
                                (((1,), (1,)), ((), ())),
                                preferred_element_type=jnp.float32)        # (Lq, Lk)
        m = jnp.max(s, axis=-1, keepdims=True)
        p = jnp.exp(s - m)
        p = p * pl.reciprocal(jnp.sum(p, axis=-1, keepdims=True), approx=True)
        outs.append(_bf16_dot(p, v[:, sl]))                                # (Lq, Dh)
    return jnp.concatenate(outs, axis=-1)                                  # (Lq, C)


def _mlp_residual(x, ln_g, ln_b, w1_ref, b1_ref, w2_ref, b2_ref):
    """x + fc2(GELU(fc1(LN(x)))) entirely in VMEM; x is (L, C) f32."""
    h = _ln(x, ln_g, ln_b)
    h1 = _bf16_dot(h, w1_ref[...]) + b1_ref[...]
    h1 = _gelu(h1)
    return x + _bf16_dot(h1, w2_ref[...]) + b2_ref[...]


# ---------------------------------------------------------------------------
# Single fused kernel (one grid step per batch element)
# ---------------------------------------------------------------------------
def _mm_grouping_kernel(
        ans_ref, vis_ref, text_ref,
        # top-level LayerNorms
        lnt_g, lnt_b, lnx_g, lnx_b,
        # pre_assign_attn: cross-attention weights
        cqw, cqb, ckw, ckb, cvw, cvb, cpw, cpb,
        # pre_assign_attn: norm2 + MLP + norm_post
        cn2_g, cn2_b, cw1, cb1, cw2, cb2, cnp_g, cnp_b,
        # post_attn: norm1 + fused QKV self-attention
        pn1_g, pn1_b, qkvw, qkvb, spw, spb,
        # post_attn: norm2 + MLP
        pn2_g, pn2_b, pw1, pb1, pw2, pb2,
        # final LayerNorm
        lnn_g, lnn_b,
        o_ref, *, num_heads, head_dim, scale):
    c = num_heads * head_dim

    # ---- Stage 1: norm_tokens / norm_x + cross-attention + residual -------------------
    t = _ln(text_ref[0], lnt_g[...], lnt_b[...])          # (Lq, C)
    x = _ln(vis_ref[0], lnx_g[...], lnx_b[...])           # (Lk, C)

    q = _bf16_dot(t, cqw[...]) + cqb[...]                  # full projections (big MXU matmuls)
    k = _bf16_dot(x, ckw[...]) + ckb[...]
    v = _bf16_dot(x, cvw[...]) + cvb[...]
    attn = _sdpa(q, k, v, num_heads, head_dim, scale)
    x1 = t + _bf16_dot(attn, cpw[...]) + cpb[...]          # residual with LN'ed query

    # ---- Stage 2: MLP + post-LN  -> projected_text_tokens ------------------------------
    x2 = _mlp_residual(x1, cn2_g[...], cn2_b[...], cw1, cb1, cw2, cb2)
    projected = _ln(x2, cnp_g[...], cnp_b[...])            # norm_post

    # ---- Stage 3: ans = ans_tokens + projected; pre-norm self-attention ----------------
    ans = ans_ref[0].astype(jnp.float32) + projected
    h_in = _ln(ans, pn1_g[...], pn1_b[...])
    qkv = _bf16_dot(h_in, qkvw[...]) + qkvb[...]           # (Lq, 3C) single matmul
    attn2 = _sdpa(qkv[:, :c], qkv[:, c:2 * c], qkv[:, 2 * c:],
                  num_heads, head_dim, scale)
    y1 = ans + _bf16_dot(attn2, spw[...]) + spb[...]

    # ---- Stage 4: MLP + residual + projected, final LN ---------------------------------
    y2 = _mlp_residual(y1, pn2_g[...], pn2_b[...], pw1, pb1, pw2, pb2)
    o_ref[0] = _ln(y2 + projected, lnn_g[...], lnn_b[...]).astype(o_ref.dtype)   # norm_new_x


# ---------------------------------------------------------------------------
# pallas_call wrapper
# ---------------------------------------------------------------------------
def _as_row(v):
    return v.reshape(1, -1)


def _token_spec(L, C):
    return pl.BlockSpec((1, L, C), lambda b: (b, 0, 0))


def _param_spec(arr):
    nd = arr.ndim
    return pl.BlockSpec(arr.shape, lambda b, _nd=nd: (0,) * _nd)


def multimodal_grouping_block(ans_tokens, visual_tokens, text_tokens, params, *, num_heads):
    # TODO(synk): question_masks / entity_masks attention-mask path not implemented
    # (this exercises the masks=None path, matching the default call).
    B, Lq, C = text_tokens.shape
    Lk = visual_tokens.shape[1]
    Dh = C // num_heads
    pre = params["pre_assign_attn"]
    post = params["post_attn"]

    if ans_tokens is None:
        ans_tokens = jnp.zeros_like(text_tokens)   # ans_temp == projected

    pa = pre["attn"]
    sa = post["attn"]
    param_inputs = [
        _as_row(params["norm_tokens_g"]), _as_row(params["norm_tokens_b"]),
        _as_row(params["norm_x_g"]), _as_row(params["norm_x_b"]),
        pa["q_w"], _as_row(pa["q_b"]), pa["k_w"], _as_row(pa["k_b"]),
        pa["v_w"], _as_row(pa["v_b"]), pa["proj_w"], _as_row(pa["proj_b"]),
        _as_row(pre["norm2_g"]), _as_row(pre["norm2_b"]),
        pre["mlp"]["fc1_w"], _as_row(pre["mlp"]["fc1_b"]),
        pre["mlp"]["fc2_w"], _as_row(pre["mlp"]["fc2_b"]),
        _as_row(pre["norm_post_g"]), _as_row(pre["norm_post_b"]),
        _as_row(post["norm1_g"]), _as_row(post["norm1_b"]),
        sa["qkv_w"], _as_row(sa["qkv_b"]), sa["proj_w"], _as_row(sa["proj_b"]),
        _as_row(post["norm2_g"]), _as_row(post["norm2_b"]),
        post["mlp"]["fc1_w"], _as_row(post["mlp"]["fc1_b"]),
        post["mlp"]["fc2_w"], _as_row(post["mlp"]["fc2_b"]),
        _as_row(params["norm_new_x_g"]), _as_row(params["norm_new_x_b"]),
    ]

    kern = functools.partial(_mm_grouping_kernel, num_heads=num_heads,
                             head_dim=Dh, scale=Dh ** -0.5)

    in_specs = ([_token_spec(Lq, C), _token_spec(Lk, C), _token_spec(Lq, C)]
                + [_param_spec(a) for a in param_inputs])

    return pl.pallas_call(
        kern,
        out_shape=jax.ShapeDtypeStruct((B, Lq, C), text_tokens.dtype),
        grid=(B,),
        in_specs=in_specs,
        out_specs=_token_spec(Lq, C),
        compiler_params=pltpu.CompilerParams(dimension_semantics=("parallel",)),
    )(ans_tokens, visual_tokens, text_tokens, *param_inputs)


# ---------------------------------------------------------------------------
# Deterministic synthetic parameter init
# ---------------------------------------------------------------------------
def init_params(key, dim, mlp_ratio=4):
    hidden = int(dim * mlp_ratio)
    keys = iter(jax.random.split(key, 64))

    def w(cin, cout):
        return 0.02 * jax.random.normal(next(keys), (cin, cout), jnp.float32)

    def lin(cin, cout):
        return w(cin, cout), jnp.zeros((cout,), jnp.float32)

    def ln():
        return jnp.ones((dim,), jnp.float32), jnp.zeros((dim,), jnp.float32)

    def mlp_p():
        w1, b1 = lin(dim, hidden)
        w2, b2 = lin(hidden, dim)
        return {"fc1_w": w1, "fc1_b": b1, "fc2_w": w2, "fc2_b": b2}

    qw, qb = lin(dim, dim)
    kw, kb = lin(dim, dim)
    vw, vb = lin(dim, dim)
    pw, pb = lin(dim, dim)
    cross_attn_p = {"q_w": qw, "q_b": qb, "k_w": kw, "k_b": kb,
                    "v_w": vw, "v_b": vb, "proj_w": pw, "proj_b": pb}

    qkvw, qkvb = lin(dim, 3 * dim)
    spw, spb = lin(dim, dim)
    self_attn_p = {"qkv_w": qkvw, "qkv_b": qkvb, "proj_w": spw, "proj_b": spb}

    nt_g, nt_b = ln()
    nx_g, nx_b = ln()
    c_n2_g, c_n2_b = ln()
    c_np_g, c_np_b = ln()
    p_n1_g, p_n1_b = ln()
    p_n2_g, p_n2_b = ln()
    nn_g, nn_b = ln()

    return {
        "norm_tokens_g": nt_g, "norm_tokens_b": nt_b,
        "norm_x_g": nx_g, "norm_x_b": nx_b,
        "pre_assign_attn": {
            "attn": cross_attn_p,
            "norm2_g": c_n2_g, "norm2_b": c_n2_b,
            "mlp": mlp_p(),
            "norm_post_g": c_np_g, "norm_post_b": c_np_b,
        },
        "post_attn": {
            "norm1_g": p_n1_g, "norm1_b": p_n1_b,
            "attn": self_attn_p,
            "norm2_g": p_n2_g, "norm2_b": p_n2_b,
            "mlp": mlp_p(),
        },
        "norm_new_x_g": nn_g, "norm_new_x_b": nn_b,
    }


# ---------------------------------------------------------------------------
if __name__ == "__main__":
    B, L_TXT, L_VIS, C, H = 2, 8, 16, 32, 4

    root = jax.random.PRNGKey(0)
    k_ans, k_vis, k_txt, k_par = jax.random.split(root, 4)

    ans_tokens = jax.random.normal(k_ans, (B, L_TXT, C), jnp.float32)
    visual_tokens = jax.random.normal(k_vis, (B, L_VIS, C), jnp.float32)
    text_tokens = jax.random.normal(k_txt, (B, L_TXT, C), jnp.float32)
    params = init_params(k_par, C)

    fwd = jax.jit(functools.partial(multimodal_grouping_block, num_heads=H))
    out = fwd(ans_tokens, visual_tokens, text_tokens, params)
    jax.block_until_ready(out)

    assert out.shape == (B, L_TXT, C) and out.dtype == jnp.float32
    assert bool(jnp.all(jnp.isfinite(out)))
    print("KERNEL_OK")
</pallas_src>

<mosaic_0001>
module attributes {stable_mosaic.version = 11 : i64} {
  func.func @_mm_grouping_kernel(%arg0: i32, %arg1: memref<1x8x32xf32, #tpu.memory_space<vmem>>, %arg2: memref<1x16x32xf32, #tpu.memory_space<vmem>>, %arg3: memref<1x8x32xf32, #tpu.memory_space<vmem>>, %arg4: memref<1x32xf32, #tpu.memory_space<vmem>>, %arg5: memref<1x32xf32, #tpu.memory_space<vmem>>, %arg6: memref<1x32xf32, #tpu.memory_space<vmem>>, %arg7: memref<1x32xf32, #tpu.memory_space<vmem>>, %arg8: memref<32x32xf32, #tpu.memory_space<vmem>>, %arg9: memref<1x32xf32, #tpu.memory_space<vmem>>, %arg10: memref<32x32xf32, #tpu.memory_space<vmem>>, %arg11: memref<1x32xf32, #tpu.memory_space<vmem>>, %arg12: memref<32x32xf32, #tpu.memory_space<vmem>>, %arg13: memref<1x32xf32, #tpu.memory_space<vmem>>, %arg14: memref<32x32xf32, #tpu.memory_space<vmem>>, %arg15: memref<1x32xf32, #tpu.memory_space<vmem>>, %arg16: memref<1x32xf32, #tpu.memory_space<vmem>>, %arg17: memref<1x32xf32, #tpu.memory_space<vmem>>, %arg18: memref<32x128xf32, #tpu.memory_space<vmem>>, %arg19: memref<1x128xf32, #tpu.memory_space<vmem>>, %arg20: memref<128x32xf32, #tpu.memory_space<vmem>>, %arg21: memref<1x32xf32, #tpu.memory_space<vmem>>, %arg22: memref<1x32xf32, #tpu.memory_space<vmem>>, %arg23: memref<1x32xf32, #tpu.memory_space<vmem>>, %arg24: memref<1x32xf32, #tpu.memory_space<vmem>>, %arg25: memref<1x32xf32, #tpu.memory_space<vmem>>, %arg26: memref<32x96xf32, #tpu.memory_space<vmem>>, %arg27: memref<1x96xf32, #tpu.memory_space<vmem>>, %arg28: memref<32x32xf32, #tpu.memory_space<vmem>>, %arg29: memref<1x32xf32, #tpu.memory_space<vmem>>, %arg30: memref<1x32xf32, #tpu.memory_space<vmem>>, %arg31: memref<1x32xf32, #tpu.memory_space<vmem>>, %arg32: memref<32x128xf32, #tpu.memory_space<vmem>>, %arg33: memref<1x128xf32, #tpu.memory_space<vmem>>, %arg34: memref<128x32xf32, #tpu.memory_space<vmem>>, %arg35: memref<1x32xf32, #tpu.memory_space<vmem>>, %arg36: memref<1x32xf32, #tpu.memory_space<vmem>>, %arg37: memref<1x32xf32, #tpu.memory_space<vmem>>, %arg38: memref<1x8x32xf32, #tpu.memory_space<vmem>>) attributes {dimension_semantics = [#tpu.dimension_semantics<parallel>], iteration_bounds = array<i64: 2>, scalar_prefetch = 0 : i64, scratch_operands = 0 : i64, tpu.core_type = #tpu.core_type<tc>, window_params = [{transform_indices = @transform_0, window_bounds = array<i64: 1, 8, 32>}, {transform_indices = @transform_1, window_bounds = array<i64: 1, 16, 32>}, {transform_indices = @transform_2, window_bounds = array<i64: 1, 8, 32>}, {pipeline_mode = #tpu.pipeline_mode<synchronous>, transform_indices = @transform_3, window_bounds = array<i64: 1, 32>}, {pipeline_mode = #tpu.pipeline_mode<synchronous>, transform_indices = @transform_4, window_bounds = array<i64: 1, 32>}, {pipeline_mode = #tpu.pipeline_mode<synchronous>, transform_indices = @transform_5, window_bounds = array<i64: 1, 32>}, {pipeline_mode = #tpu.pipeline_mode<synchronous>, transform_indices = @transform_6, window_bounds = array<i64: 1, 32>}, {pipeline_mode = #tpu.pipeline_mode<synchronous>, transform_indices = @transform_7, window_bounds = array<i64: 32, 32>}, {pipeline_mode = #tpu.pipeline_mode<synchronous>, transform_indices = @transform_8, window_bounds = array<i64: 1, 32>}, {pipeline_mode = #tpu.pipeline_mode<synchronous>, transform_indices = @transform_9, window_bounds = array<i64: 32, 32>}, {pipeline_mode = #tpu.pipeline_mode<synchronous>, transform_indices = @transform_10, window_bounds = array<i64: 1, 32>}, {pipeline_mode = #tpu.pipeline_mode<synchronous>, transform_indices = @transform_11, window_bounds = array<i64: 32, 32>}, {pipeline_mode = #tpu.pipeline_mode<synchronous>, transform_indices = @transform_12, window_bounds = array<i64: 1, 32>}, {pipeline_mode = #tpu.pipeline_mode<synchronous>, transform_indices = @transform_13, window_bounds = array<i64: 32, 32>}, {pipeline_mode = #tpu.pipeline_mode<synchronous>, transform_indices = @transform_14, window_bounds = array<i64: 1, 32>}, {pipeline_mode = #tpu.pipeline_mode<synchronous>, transform_indices = @transform_15, window_bounds = array<i64: 1, 32>}, {pipeline_mode = #tpu.pipeline_mode<synchronous>, transform_indices = @transform_16, window_bounds = array<i64: 1, 32>}, {pipeline_mode = #tpu.pipeline_mode<synchronous>, transform_indices = @transform_17, window_bounds = array<i64: 32, 128>}, {pipeline_mode = #tpu.pipeline_mode<synchronous>, transform_indices = @transform_18, window_bounds = array<i64: 1, 128>}, {pipeline_mode = #tpu.pipeline_mode<synchronous>, transform_indices = @transform_19, window_bounds = array<i64: 128, 32>}, {pipeline_mode = #tpu.pipeline_mode<synchronous>, transform_indices = @transform_20, window_bounds = array<i64: 1, 32>}, {pipeline_mode = #tpu.pipeline_mode<synchronous>, transform_indices = @transform_21, window_bounds = array<i64: 1, 32>}, {pipeline_mode = #tpu.pipeline_mode<synchronous>, transform_indices = @transform_22, window_bounds = array<i64: 1, 32>}, {pipeline_mode = #tpu.pipeline_mode<synchronous>, transform_indices = @transform_23, window_bounds = array<i64: 1, 32>}, {pipeline_mode = #tpu.pipeline_mode<synchronous>, transform_indices = @transform_24, window_bounds = array<i64: 1, 32>}, {pipeline_mode = #tpu.pipeline_mode<synchronous>, transform_indices = @transform_25, window_bounds = array<i64: 32, 96>}, {pipeline_mode = #tpu.pipeline_mode<synchronous>, transform_indices = @transform_26, window_bounds = array<i64: 1, 96>}, {pipeline_mode = #tpu.pipeline_mode<synchronous>, transform_indices = @transform_27, window_bounds = array<i64: 32, 32>}, {pipeline_mode = #tpu.pipeline_mode<synchronous>, transform_indices = @transform_28, window_bounds = array<i64: 1, 32>}, {pipeline_mode = #tpu.pipeline_mode<synchronous>, transform_indices = @transform_29, window_bounds = array<i64: 1, 32>}, {pipeline_mode = #tpu.pipeline_mode<synchronous>, transform_indices = @transform_30, window_bounds = array<i64: 1, 32>}, {pipeline_mode = #tpu.pipeline_mode<synchronous>, transform_indices = @transform_31, window_bounds = array<i64: 32, 128>}, {pipeline_mode = #tpu.pipeline_mode<synchronous>, transform_indices = @transform_32, window_bounds = array<i64: 1, 128>}, {pipeline_mode = #tpu.pipeline_mode<synchronous>, transform_indices = @transform_33, window_bounds = array<i64: 128, 32>}, {pipeline_mode = #tpu.pipeline_mode<synchronous>, transform_indices = @transform_34, window_bounds = array<i64: 1, 32>}, {pipeline_mode = #tpu.pipeline_mode<synchronous>, transform_indices = @transform_35, window_bounds = array<i64: 1, 32>}, {pipeline_mode = #tpu.pipeline_mode<synchronous>, transform_indices = @transform_36, window_bounds = array<i64: 1, 32>}, {transform_indices = @transform_37, window_bounds = array<i64: 1, 8, 32>}]} {
    %c0 = arith.constant 0 : index
    %c0_0 = arith.constant 0 : index
    %c0_1 = arith.constant 0 : index
    %0 = vector.load %arg3[%c0, %c0_0, %c0_1] : memref<1x8x32xf32, #tpu.memory_space<vmem>>, vector<1x8x32xf32>
    %1 = vector.shape_cast %0 : vector<1x8x32xf32> to vector<8x32xf32>
    %c0_2 = arith.constant 0 : index
    %c0_3 = arith.constant 0 : index
    %2 = vector.load %arg4[%c0_2, %c0_3] : memref<1x32xf32, #tpu.memory_space<vmem>>, vector<1x32xf32>
    %c0_4 = arith.constant 0 : index
    %c0_5 = arith.constant 0 : index
    %3 = vector.load %arg5[%c0_4, %c0_5] : memref<1x32xf32, #tpu.memory_space<vmem>>, vector<1x32xf32>
    %cst = arith.constant dense<0.000000e+00> : vector<8xf32>
    %4 = vector.multi_reduction <add>, %1, %cst [1] : vector<8x32xf32> to vector<8xf32>
    %5 = vector.shape_cast %4 : vector<8xf32> to vector<8x1xf32>
    %cst_6 = arith.constant 3.200000e+01 : f32
    %6 = vector.broadcast %cst_6 : f32 to vector<8x1xf32>
    %7 = arith.divf %5, %6 : vector<8x1xf32>
    %8 = vector.broadcast %7 : vector<8x1xf32> to vector<8x32xf32>
    %9 = arith.subf %1, %8 : vector<8x32xf32>
    %10 = arith.mulf %9, %9 : vector<8x32xf32>
    %cst_7 = arith.constant dense<0.000000e+00> : vector<8xf32>
    %11 = vector.multi_reduction <add>, %10, %cst_7 [1] : vector<8x32xf32> to vector<8xf32>
    %12 = vector.shape_cast %11 : vector<8xf32> to vector<8x1xf32>
    %cst_8 = arith.constant 3.200000e+01 : f32
    %13 = vector.broadcast %cst_8 : f32 to vector<8x1xf32>
    %14 = arith.divf %12, %13 : vector<8x1xf32>
    %cst_9 = arith.constant 9.99999974E-6 : f32
    %15 = vector.broadcast %cst_9 : f32 to vector<8x1xf32>
    %16 = arith.addf %14, %15 : vector<8x1xf32>
    %17 = math.rsqrt %16 : vector<8x1xf32>
    %18 = vector.broadcast %17 : vector<8x1xf32> to vector<8x32xf32>
    %19 = arith.mulf %9, %18 : vector<8x32xf32>
    %20 = vector.broadcast %2 : vector<1x32xf32> to vector<8x32xf32>
    %21 = arith.mulf %19, %20 : vector<8x32xf32>
    %22 = vector.broadcast %3 : vector<1x32xf32> to vector<8x32xf32>
    %23 = arith.addf %21, %22 : vector<8x32xf32>
    %c0_10 = arith.constant 0 : index
    %c0_11 = arith.constant 0 : index
    %c0_12 = arith.constant 0 : index
    %24 = vector.load %arg2[%c0_10, %c0_11, %c0_12] : memref<1x16x32xf32, #tpu.memory_space<vmem>>, vector<1x16x32xf32>
    %25 = vector.shape_cast %24 : vector<1x16x32xf32> to vector<16x32xf32>
    %c0_13 = arith.constant 0 : index
    %c0_14 = arith.constant 0 : index
    %26 = vector.load %arg6[%c0_13, %c0_14] : memref<1x32xf32, #tpu.memory_space<vmem>>, vector<1x32xf32>
    %c0_15 = arith.constant 0 : index
    %c0_16 = arith.constant 0 : index
    %27 = vector.load %arg7[%c0_15, %c0_16] : memref<1x32xf32, #tpu.memory_space<vmem>>, vector<1x32xf32>
    %cst_17 = arith.constant dense<0.000000e+00> : vector<16xf32>
    %28 = vector.multi_reduction <add>, %25, %cst_17 [1] : vector<16x32xf32> to vector<16xf32>
    %29 = vector.shape_cast %28 : vector<16xf32> to vector<16x1xf32>
    %cst_18 = arith.constant 3.200000e+01 : f32
    %30 = vector.broadcast %cst_18 : f32 to vector<16x1xf32>
    %31 = arith.divf %29, %30 : vector<16x1xf32>
    %32 = vector.broadcast %31 : vector<16x1xf32> to vector<16x32xf32>
    %33 = arith.subf %25, %32 : vector<16x32xf32>
    %34 = arith.mulf %33, %33 : vector<16x32xf32>
    %cst_19 = arith.constant dense<0.000000e+00> : vector<16xf32>
    %35 = vector.multi_reduction <add>, %34, %cst_19 [1] : vector<16x32xf32> to vector<16xf32>
    %36 = vector.shape_cast %35 : vector<16xf32> to vector<16x1xf32>
    %cst_20 = arith.constant 3.200000e+01 : f32
    %37 = vector.broadcast %cst_20 : f32 to vector<16x1xf32>
    %38 = arith.divf %36, %37 : vector<16x1xf32>
    %cst_21 = arith.constant 9.99999974E-6 : f32
    %39 = vector.broadcast %cst_21 : f32 to vector<16x1xf32>
    %40 = arith.addf %38, %39 : vector<16x1xf32>
    %41 = math.rsqrt %40 : vector<16x1xf32>
    %42 = vector.broadcast %41 : vector<16x1xf32> to vector<16x32xf32>
    %43 = arith.mulf %33, %42 : vector<16x32xf32>
    %44 = vector.broadcast %26 : vector<1x32xf32> to vector<16x32xf32>
    %45 = arith.mulf %43, %44 : vector<16x32xf32>
    %46 = vector.broadcast %27 : vector<1x32xf32> to vector<16x32xf32>
    %47 = arith.addf %45, %46 : vector<16x32xf32>
    %c0_22 = arith.constant 0 : index
    %c0_23 = arith.constant 0 : index
    %48 = vector.load %arg8[%c0_22, %c0_23] : memref<32x32xf32, #tpu.memory_space<vmem>>, vector<32x32xf32>
    %49 = arith.truncf %23 : vector<8x32xf32> to vector<8x32xbf16>
    %50 = arith.truncf %48 : vector<32x32xf32> to vector<32x32xbf16>
    %cst_24 = arith.constant dense<0.000000e+00> : vector<8x32xf32>
    %51 = tpu.matmul %49, %50, %cst_24 {dimension_numbers = #tpu.dot_dimension_numbers<[1], [0], [0], [1], [0, 0, 1, 1], [], []>} : vector<8x32xbf16>, vector<32x32xbf16>, vector<8x32xf32> -> vector<8x32xf32>
    %c0_25 = arith.constant 0 : index
    %c0_26 = arith.constant 0 : index
    %52 = vector.load %arg9[%c0_25, %c0_26] : memref<1x32xf32, #tpu.memory_space<vmem>>, vector<1x32xf32>
    %53 = vector.broadcast %52 : vector<1x32xf32> to vector<8x32xf32>
    %54 = arith.addf %51, %53 : vector<8x32xf32>
    %c0_27 = arith.constant 0 : index
    %c0_28 = arith.constant 0 : index
    %55 = vector.load %arg10[%c0_27, %c0_28] : memref<32x32xf32, #tpu.memory_space<vmem>>, vector<32x32xf32>
    %56 = arith.truncf %47 : vector<16x32xf32> to vector<16x32xbf16>
    %57 = arith.truncf %55 : vector<32x32xf32> to vector<32x32xbf16>
    %cst_29 = arith.constant dense<0.000000e+00> : vector<16x32xf32>
    %58 = tpu.matmul %56, %57, %cst_29 {dimension_numbers = #tpu.dot_dimension_numbers<[1], [0], [0], [1], [0, 0, 1, 1], [], []>} : vector<16x32xbf16>, vector<32x32xbf16>, vector<16x32xf32> -> vector<16x32xf32>
    %c0_30 = arith.constant 0 : index
    %c0_31 = arith.constant 0 : index
    %59 = vector.load %arg11[%c0_30, %c0_31] : memref<1x32xf32, #tpu.memory_space<vmem>>, vector<1x32xf32>
    %60 = vector.broadcast %59 : vector<1x32xf32> to vector<16x32xf32>
    %61 = arith.addf %58, %60 : vector<16x32xf32>
    %c0_32 = arith.constant 0 : index
    %c0_33 = arith.constant 0 : index
    %62 = vector.load %arg12[%c0_32, %c0_33] : memref<32x32xf32, #tpu.memory_space<vmem>>, vector<32x32xf32>
    %63 = arith.truncf %47 : vector<16x32xf32> to vector<16x32xbf16>
    %64 = arith.truncf %62 : vector<32x32xf32> to vector<32x32xbf16>
    %cst_34 = arith.constant dense<0.000000e+00> : vector<16x32xf32>
    %65 = tpu.matmul %63, %64, %cst_34 {dimension_numbers = #tpu.dot_dimension_numbers<[1], [0], [0], [1], [0, 0, 1, 1], [], []>} : vector<16x32xbf16>, vector<32x32xbf16>, vector<16x32xf32> -> vector<16x32xf32>
    %c0_35 = arith.constant 0 : index
    %c0_36 = arith.constant 0 : index
    %66 = vector.load %arg13[%c0_35, %c0_36] : memref<1x32xf32, #tpu.memory_space<vmem>>, vector<1x32xf32>
    %67 = vector.broadcast %66 : vector<1x32xf32> to vector<16x32xf32>
    %68 = arith.addf %65, %67 : vector<16x32xf32>
    %cst_37 = arith.constant 0.353553385 : f32
    %69 = vector.broadcast %cst_37 : f32 to vector<8x32xf32>
    %70 = arith.mulf %54, %69 : vector<8x32xf32>
    %71 = arith.truncf %70 : vector<8x32xf32> to vector<8x32xbf16>
    %72 = arith.truncf %61 : vector<16x32xf32> to vector<16x32xbf16>
    %73 = arith.truncf %68 : vector<16x32xf32> to vector<16x32xbf16>
    %74 = vector.extract_strided_slice %71 {offsets = [0, 0], sizes = [8, 8], strides = [1, 1]} : vector<8x32xbf16> to vector<8x8xbf16>
    %75 = vector.extract_strided_slice %72 {offsets = [0, 0], sizes = [16, 8], strides = [1, 1]} : vector<16x32xbf16> to vector<16x8xbf16>
    %cst_38 = arith.constant dense<0.000000e+00> : vector<8x16xf32>
    %76 = tpu.matmul %74, %75, %cst_38 {dimension_numbers = #tpu.dot_dimension_numbers<[1], [1], [0], [0], [0, 0, 1, 0], [], []>} : vector<8x8xbf16>, vector<16x8xbf16>, vector<8x16xf32> -> vector<8x16xf32>
    %cst_39 = arith.constant dense<0xFF800000> : vector<8xf32>
    %77 = vector.multi_reduction <maximumf>, %76, %cst_39 [1] : vector<8x16xf32> to vector<8xf32>
    %78 = vector.shape_cast %77 : vector<8xf32> to vector<8x1xf32>
    %79 = vector.broadcast %78 : vector<8x1xf32> to vector<8x16xf32>
    %80 = arith.subf %76, %79 : vector<8x16xf32>
    %81 = math.exp %80 : vector<8x16xf32>
    %cst_40 = arith.constant dense<0.000000e+00> : vector<8xf32>
    %82 = vector.multi_reduction <add>, %81, %cst_40 [1] : vector<8x16xf32> to vector<8xf32>
    %83 = vector.shape_cast %82 : vector<8xf32> to vector<8x1xf32>
    %84 = tpu.reciprocal %83 {approx = true} : vector<8x1xf32> -> vector<8x1xf32>
    %85 = vector.broadcast %84 : vector<8x1xf32> to vector<8x16xf32>
    %86 = arith.mulf %81, %85 : vector<8x16xf32>
    %87 = vector.extract_strided_slice %73 {offsets = [0, 0], sizes = [16, 8], strides = [1, 1]} : vector<16x32xbf16> to vector<16x8xbf16>
    %88 = arith.truncf %86 : vector<8x16xf32> to vector<8x16xbf16>
    %cst_41 = arith.constant dense<0.000000e+00> : vector<8x8xf32>
    %89 = tpu.matmul %88, %87, %cst_41 {dimension_numbers = #tpu.dot_dimension_numbers<[1], [0], [0], [1], [0, 0, 1, 1], [], []>} : vector<8x16xbf16>, vector<16x8xbf16>, vector<8x8xf32> -> vector<8x8xf32>
    %90 = vector.extract_strided_slice %71 {offsets = [0, 8], sizes = [8, 8], strides = [1, 1]} : vector<8x32xbf16> to vector<8x8xbf16>
    %91 = vector.extract_strided_slice %72 {offsets = [0, 8], sizes = [16, 8], strides = [1, 1]} : vector<16x32xbf16> to vector<16x8xbf16>
    %cst_42 = arith.constant dense<0.000000e+00> : vector<8x16xf32>
    %92 = tpu.matmul %90, %91, %cst_42 {dimension_numbers = #tpu.dot_dimension_numbers<[1], [1], [0], [0], [0, 0, 1, 0], [], []>} : vector<8x8xbf16>, vector<16x8xbf16>, vector<8x16xf32> -> vector<8x16xf32>
    %cst_43 = arith.constant dense<0xFF800000> : vector<8xf32>
    %93 = vector.multi_reduction <maximumf>, %92, %cst_43 [1] : vector<8x16xf32> to vector<8xf32>
    %94 = vector.shape_cast %93 : vector<8xf32> to vector<8x1xf32>
    %95 = vector.broadcast %94 : vector<8x1xf32> to vector<8x16xf32>
    %96 = arith.subf %92, %95 : vector<8x16xf32>
    %97 = math.exp %96 : vector<8x16xf32>
    %cst_44 = arith.constant dense<0.000000e+00> : vector<8xf32>
    %98 = vector.multi_reduction <add>, %97, %cst_44 [1] : vector<8x16xf32> to vector<8xf32>
    %99 = vector.shape_cast %98 : vector<8xf32> to vector<8x1xf32>
    %100 = tpu.reciprocal %99 {approx = true} : vector<8x1xf32> -> vector<8x1xf32>
    %101 = vector.broadcast %100 : vector<8x1xf32> to vector<8x16xf32>
    %102 = arith.mulf %97, %101 : vector<8x16xf32>
    %103 = vector.extract_strided_slice %73 {offsets = [0, 8], sizes = [16, 8], strides = [1, 1]} : vector<16x32xbf16> to vector<16x8xbf16>
    %104 = arith.truncf %102 : vector<8x16xf32> to vector<8x16xbf16>
    %cst_45 = arith.constant dense<0.000000e+00> : vector<8x8xf32>
    %105 = tpu.matmul %104, %103, %cst_45 {dimension_numbers = #tpu.dot_dimension_numbers<[1], [0], [0], [1], [0, 0, 1, 1], [], []>} : vector<8x16xbf16>, vector<16x8xbf16>, vector<8x8xf32> -> vector<8x8xf32>
    %106 = vector.extract_strided_slice %71 {offsets = [0, 16], sizes = [8, 8], strides = [1, 1]} : vector<8x32xbf16> to vector<8x8xbf16>
    %107 = vector.extract_strided_slice %72 {offsets = [0, 16], sizes = [16, 8], strides = [1, 1]} : vector<16x32xbf16> to vector<16x8xbf16>
    %cst_46 = arith.constant dense<0.000000e+00> : vector<8x16xf32>
    %108 = tpu.matmul %106, %107, %cst_46 {dimension_numbers = #tpu.dot_dimension_numbers<[1], [1], [0], [0], [0, 0, 1, 0], [], []>} : vector<8x8xbf16>, vector<16x8xbf16>, vector<8x16xf32> -> vector<8x16xf32>
    %cst_47 = arith.constant dense<0xFF800000> : vector<8xf32>
    %109 = vector.multi_reduction <maximumf>, %108, %cst_47 [1] : vector<8x16xf32> to vector<8xf32>
    %110 = vector.shape_cast %109 : vector<8xf32> to vector<8x1xf32>
    %111 = vector.broadcast %110 : vector<8x1xf32> to vector<8x16xf32>
    %112 = arith.subf %108, %111 : vector<8x16xf32>
    %113 = math.exp %112 : vector<8x16xf32>
    %cst_48 = arith.constant dense<0.000000e+00> : vector<8xf32>
    %114 = vector.multi_reduction <add>, %113, %cst_48 [1] : vector<8x16xf32> to vector<8xf32>
    %115 = vector.shape_cast %114 : vector<8xf32> to vector<8x1xf32>
    %116 = tpu.reciprocal %115 {approx = true} : vector<8x1xf32> -> vector<8x1xf32>
    %117 = vector.broadcast %116 : vector<8x1xf32> to vector<8x16xf32>
    %118 = arith.mulf %113, %117 : vector<8x16xf32>
    %119 = vector.extract_strided_slice %73 {offsets = [0, 16], sizes = [16, 8], strides = [1, 1]} : vector<16x32xbf16> to vector<16x8xbf16>
    %120 = arith.truncf %118 : vector<8x16xf32> to vector<8x16xbf16>
    %cst_49 = arith.constant dense<0.000000e+00> : vector<8x8xf32>
    %121 = tpu.matmul %120, %119, %cst_49 {dimension_numbers = #tpu.dot_dimension_numbers<[1], [0], [0], [1], [0, 0, 1, 1], [], []>} : vector<8x16xbf16>, vector<16x8xbf16>, vector<8x8xf32> -> vector<8x8xf32>
    %122 = vector.extract_strided_slice %71 {offsets = [0, 24], sizes = [8, 8], strides = [1, 1]} : vector<8x32xbf16> to vector<8x8xbf16>
    %123 = vector.extract_strided_slice %72 {offsets = [0, 24], sizes = [16, 8], strides = [1, 1]} : vector<16x32xbf16> to vector<16x8xbf16>
    %cst_50 = arith.constant dense<0.000000e+00> : vector<8x16xf32>
    %124 = tpu.matmul %122, %123, %cst_50 {dimension_numbers = #tpu.dot_dimension_numbers<[1], [1], [0], [0], [0, 0, 1, 0], [], []>} : vector<8x8xbf16>, vector<16x8xbf16>, vector<8x16xf32> -> vector<8x16xf32>
    %cst_51 = arith.constant dense<0xFF800000> : vector<8xf32>
    %125 = vector.multi_reduction <maximumf>, %124, %cst_51 [1] : vector<8x16xf32> to vector<8xf32>
    %126 = vector.shape_cast %125 : vector<8xf32> to vector<8x1xf32>
    %127 = vector.broadcast %126 : vector<8x1xf32> to vector<8x16xf32>
    %128 = arith.subf %124, %127 : vector<8x16xf32>
    %129 = math.exp %128 : vector<8x16xf32>
    %cst_52 = arith.constant dense<0.000000e+00> : vector<8xf32>
    %130 = vector.multi_reduction <add>, %129, %cst_52 [1] : vector<8x16xf32> to vector<8xf32>
    %131 = vector.shape_cast %130 : vector<8xf32> to vector<8x1xf32>
    %132 = tpu.reciprocal %131 {approx = true} : vector<8x1xf32> -> vector<8x1xf32>
    %133 = vector.broadcast %132 : vector<8x1xf32> to vector<8x16xf32>
    %134 = arith.mulf %129, %133 : vector<8x16xf32>
    %135 = vector.extract_strided_slice %73 {offsets = [0, 24], sizes = [16, 8], strides = [1, 1]} : vector<16x32xbf16> to vector<16x8xbf16>
    %136 = arith.truncf %134 : vector<8x16xf32> to vector<8x16xbf16>
    %cst_53 = arith.constant dense<0.000000e+00> : vector<8x8xf32>
    %137 = tpu.matmul %136, %135, %cst_53 {dimension_numbers = #tpu.dot_dimension_numbers<[1], [0], [0], [1], [0, 0, 1, 1], [], []>} : vector<8x16xbf16>, vector<16x8xbf16>, vector<8x8xf32> -> vector<8x8xf32>
    %138 = tpu.concatenate %89, %105, %121, %137 in 1 : vector<8x8xf32>, vector<8x8xf32>, vector<8x8xf32>, vector<8x8xf32> -> vector<8x32xf32>
    %c0_54 = arith.constant 0 : index
    %c0_55 = arith.constant 0 : index
    %139 = vector.load %arg14[%c0_54, %c0_55] : memref<32x32xf32, #tpu.memory_space<vmem>>, vector<32x32xf32>
    %140 = arith.truncf %138 : vector<8x32xf32> to vector<8x32xbf16>
    %141 = arith.truncf %139 : vector<32x32xf32> to vector<32x32xbf16>
    %cst_56 = arith.constant dense<0.000000e+00> : vector<8x32xf32>
    %142 = tpu.matmul %140, %141, %cst_56 {dimension_numbers = #tpu.dot_dimension_numbers<[1], [0], [0], [1], [0, 0, 1, 1], [], []>} : vector<8x32xbf16>, vector<32x32xbf16>, vector<8x32xf32> -> vector<8x32xf32>
    %143 = arith.addf %23, %142 : vector<8x32xf32>
    %c0_57 = arith.constant 0 : index
    %c0_58 = arith.constant 0 : index
    %144 = vector.load %arg15[%c0_57, %c0_58] : memref<1x32xf32, #tpu.memory_space<vmem>>, vector<1x32xf32>
    %145 = vector.broadcast %144 : vector<1x32xf32> to vector<8x32xf32>
    %146 = arith.addf %143, %145 : vector<8x32xf32>
    %c0_59 = arith.constant 0 : index
    %c0_60 = arith.constant 0 : index
    %147 = vector.load %arg16[%c0_59, %c0_60] : memref<1x32xf32, #tpu.memory_space<vmem>>, vector<1x32xf32>
    %c0_61 = arith.constant 0 : index
    %c0_62 = arith.constant 0 : index
    %148 = vector.load %arg17[%c0_61, %c0_62] : memref<1x32xf32, #tpu.memory_space<vmem>>, vector<1x32xf32>
    %cst_63 = arith.constant dense<0.000000e+00> : vector<8xf32>
    %149 = vector.multi_reduction <add>, %146, %cst_63 [1] : vector<8x32xf32> to vector<8xf32>
    %150 = vector.shape_cast %149 : vector<8xf32> to vector<8x1xf32>
    %cst_64 = arith.constant 3.200000e+01 : f32
    %151 = vector.broadcast %cst_64 : f32 to vector<8x1xf32>
    %152 = arith.divf %150, %151 : vector<8x1xf32>
    %153 = vector.broadcast %152 : vector<8x1xf32> to vector<8x32xf32>
    %154 = arith.subf %146, %153 : vector<8x32xf32>
    %155 = arith.mulf %154, %154 : vector<8x32xf32>
    %cst_65 = arith.constant dense<0.000000e+00> : vector<8xf32>
    %156 = vector.multi_reduction <add>, %155, %cst_65 [1] : vector<8x32xf32> to vector<8xf32>
    %157 = vector.shape_cast %156 : vector<8xf32> to vector<8x1xf32>
    %cst_66 = arith.constant 3.200000e+01 : f32
    %158 = vector.broadcast %cst_66 : f32 to vector<8x1xf32>
    %159 = arith.divf %157, %158 : vector<8x1xf32>
    %cst_67 = arith.constant 9.99999974E-6 : f32
    %160 = vector.broadcast %cst_67 : f32 to vector<8x1xf32>
    %161 = arith.addf %159, %160 : vector<8x1xf32>
    %162 = math.rsqrt %161 : vector<8x1xf32>
    %163 = vector.broadcast %162 : vector<8x1xf32> to vector<8x32xf32>
    %164 = arith.mulf %154, %163 : vector<8x32xf32>
    %165 = vector.broadcast %147 : vector<1x32xf32> to vector<8x32xf32>
    %166 = arith.mulf %164, %165 : vector<8x32xf32>
    %167 = vector.broadcast %148 : vector<1x32xf32> to vector<8x32xf32>
    %168 = arith.addf %166, %167 : vector<8x32xf32>
    %c0_68 = arith.constant 0 : index
    %c0_69 = arith.constant 0 : index
    %169 = vector.load %arg18[%c0_68, %c0_69] : memref<32x128xf32, #tpu.memory_space<vmem>>, vector<32x128xf32>
    %170 = arith.truncf %168 : vector<8x32xf32> to vector<8x32xbf16>
    %171 = arith.truncf %169 : vector<32x128xf32> to vector<32x128xbf16>
    %cst_70 = arith.constant dense<0.000000e+00> : vector<8x128xf32>
    %172 = tpu.matmul %170, %171, %cst_70 {dimension_numbers = #tpu.dot_dimension_numbers<[1], [0], [0], [1], [0, 0, 1, 1], [], []>} : vector<8x32xbf16>, vector<32x128xbf16>, vector<8x128xf32> -> vector<8x128xf32>
    %c0_71 = arith.constant 0 : index
    %c0_72 = arith.constant 0 : index
    %173 = vector.load %arg19[%c0_71, %c0_72] : memref<1x128xf32, #tpu.memory_space<vmem>>, vector<1x128xf32>
    %174 = vector.broadcast %173 : vector<1x128xf32> to vector<8x128xf32>
    %175 = arith.addf %172, %174 : vector<8x128xf32>
    %cst_73 = arith.constant 5.000000e-01 : f32
    %176 = vector.broadcast %cst_73 : f32 to vector<8x128xf32>
    %177 = arith.mulf %176, %175 : vector<8x128xf32>
    %cst_74 = arith.constant 0.707106769 : f32
    %178 = vector.broadcast %cst_74 : f32 to vector<8x128xf32>
    %179 = arith.mulf %175, %178 : vector<8x128xf32>
    %cst_75 = arith.constant 0.000000e+00 : f32
    %180 = vector.broadcast %cst_75 : f32 to vector<8x128xf32>
    %181 = arith.cmpf oge, %179, %180 : vector<8x128xf32>
    %cst_76 = arith.constant 1.000000e+00 : f32
    %cst_77 = arith.constant -1.000000e+00 : f32
    %182 = vector.broadcast %cst_76 : f32 to vector<8x128xf32>
    %183 = vector.broadcast %cst_77 : f32 to vector<8x128xf32>
    %184 = arith.select %181, %182, %183 : vector<8x128xi1>, vector<8x128xf32>
    %185 = math.absf %179 : vector<8x128xf32>
    %cst_78 = arith.constant 0.327591091 : f32
    %186 = vector.broadcast %cst_78 : f32 to vector<8x128xf32>
    %187 = arith.mulf %186, %185 : vector<8x128xf32>
    %cst_79 = arith.constant 1.000000e+00 : f32
    %188 = vector.broadcast %cst_79 : f32 to vector<8x128xf32>
    %189 = arith.addf %188, %187 : vector<8x128xf32>
    %cst_80 = arith.constant 1.000000e+00 : f32
    %190 = vector.broadcast %cst_80 : f32 to vector<8x128xf32>
    %191 = arith.divf %190, %189 : vector<8x128xf32>
    %cst_81 = arith.constant 1.06140542 : f32
    %192 = vector.broadcast %cst_81 : f32 to vector<8x128xf32>
    %193 = arith.mulf %191, %192 : vector<8x128xf32>
    %cst_82 = arith.constant -1.45315206 : f32
    %194 = vector.broadcast %cst_82 : f32 to vector<8x128xf32>
    %195 = arith.addf %194, %193 : vector<8x128xf32>
    %196 = arith.mulf %191, %195 : vector<8x128xf32>
    %cst_83 = arith.constant 1.42141378 : f32
    %197 = vector.broadcast %cst_83 : f32 to vector<8x128xf32>
    %198 = arith.addf %197, %196 : vector<8x128xf32>
    %199 = arith.mulf %191, %198 : vector<8x128xf32>
    %cst_84 = arith.constant -0.284496725 : f32
    %200 = vector.broadcast %cst_84 : f32 to vector<8x128xf32>
    %201 = arith.addf %200, %199 : vector<8x128xf32>
    %202 = arith.mulf %191, %201 : vector<8x128xf32>
    %cst_85 = arith.constant 0.254829586 : f32
    %203 = vector.broadcast %cst_85 : f32 to vector<8x128xf32>
    %204 = arith.addf %203, %202 : vector<8x128xf32>
    %205 = arith.mulf %191, %204 : vector<8x128xf32>
    %cst_86 = arith.constant 0.000000e+00 : f32
    %206 = vector.broadcast %cst_86 : f32 to vector<8x128xf32>
    %207 = arith.subf %206, %185 : vector<8x128xf32>
    %208 = arith.mulf %207, %185 : vector<8x128xf32>
    %209 = math.exp %208 : vector<8x128xf32>
    %210 = arith.mulf %205, %209 : vector<8x128xf32>
    %cst_87 = arith.constant 1.000000e+00 : f32
    %211 = vector.broadcast %cst_87 : f32 to vector<8x128xf32>
    %212 = arith.subf %211, %210 : vector<8x128xf32>
    %213 = arith.mulf %184, %212 : vector<8x128xf32>
    %cst_88 = arith.constant 1.000000e+00 : f32
    %214 = vector.broadcast %cst_88 : f32 to vector<8x128xf32>
    %215 = arith.addf %214, %213 : vector<8x128xf32>
    %216 = arith.mulf %177, %215 : vector<8x128xf32>
    %c0_89 = arith.constant 0 : index
    %c0_90 = arith.constant 0 : index
    %217 = vector.load %arg20[%c0_89, %c0_90] : memref<128x32xf32, #tpu.memory_space<vmem>>, vector<128x32xf32>
    %218 = arith.truncf %216 : vector<8x128xf32> to vector<8x128xbf16>
    %219 = arith.truncf %217 : vector<128x32xf32> to vector<128x32xbf16>
    %cst_91 = arith.constant dense<0.000000e+00> : vector<8x32xf32>
    %220 = tpu.matmul %218, %219, %cst_91 {dimension_numbers = #tpu.dot_dimension_numbers<[1], [0], [0], [1], [0, 0, 1, 1], [], []>} : vector<8x128xbf16>, vector<128x32xbf16>, vector<8x32xf32> -> vector<8x32xf32>
    %221 = arith.addf %146, %220 : vector<8x32xf32>
    %c0_92 = arith.constant 0 : index
    %c0_93 = arith.constant 0 : index
    %222 = vector.load %arg21[%c0_92, %c0_93] : memref<1x32xf32, #tpu.memory_space<vmem>>, vector<1x32xf32>
    %223 = vector.broadcast %222 : vector<1x32xf32> to vector<8x32xf32>
    %224 = arith.addf %221, %223 : vector<8x32xf32>
    %c0_94 = arith.constant 0 : index
    %c0_95 = arith.constant 0 : index
    %225 = vector.load %arg22[%c0_94, %c0_95] : memref<1x32xf32, #tpu.memory_space<vmem>>, vector<1x32xf32>
    %c0_96 = arith.constant 0 : index
    %c0_97 = arith.constant 0 : index
    %226 = vector.load %arg23[%c0_96, %c0_97] : memref<1x32xf32, #tpu.memory_space<vmem>>, vector<1x32xf32>
    %cst_98 = arith.constant dense<0.000000e+00> : vector<8xf32>
    %227 = vector.multi_reduction <add>, %224, %cst_98 [1] : vector<8x32xf32> to vector<8xf32>
    %228 = vector.shape_cast %227 : vector<8xf32> to vector<8x1xf32>
    %cst_99 = arith.constant 3.200000e+01 : f32
    %229 = vector.broadcast %cst_99 : f32 to vector<8x1xf32>
    %230 = arith.divf %228, %229 : vector<8x1xf32>
    %231 = vector.broadcast %230 : vector<8x1xf32> to vector<8x32xf32>
    %232 = arith.subf %224, %231 : vector<8x32xf32>
    %233 = arith.mulf %232, %232 : vector<8x32xf32>
    %cst_100 = arith.constant dense<0.000000e+00> : vector<8xf32>
    %234 = vector.multi_reduction <add>, %233, %cst_100 [1] : vector<8x32xf32> to vector<8xf32>
    %235 = vector.shape_cast %234 : vector<8xf32> to vector<8x1xf32>
    %cst_101 = arith.constant 3.200000e+01 : f32
    %236 = vector.broadcast %cst_101 : f32 to vector<8x1xf32>
    %237 = arith.divf %235, %236 : vector<8x1xf32>
    %cst_102 = arith.constant 9.99999974E-6 : f32
    %238 = vector.broadcast %cst_102 : f32 to vector<8x1xf32>
    %239 = arith.addf %237, %238 : vector<8x1xf32>
    %240 = math.rsqrt %239 : vector<8x1xf32>
    %241 = vector.broadcast %240 : vector<8x1xf32> to vector<8x32xf32>
    %242 = arith.mulf %232, %241 : vector<8x32xf32>
    %243 = vector.broadcast %225 : vector<1x32xf32> to vector<8x32xf32>
    %244 = arith.mulf %242, %243 : vector<8x32xf32>
    %245 = vector.broadcast %226 : vector<1x32xf32> to vector<8x32xf32>
    %246 = arith.addf %244, %245 : vector<8x32xf32>
    %c0_103 = arith.constant 0 : index
    %c0_104 = arith.constant 0 : index
    %c0_105 = arith.constant 0 : index
    %247 = vector.load %arg1[%c0_103, %c0_104, %c0_105] : memref<1x8x32xf32, #tpu.memory_space<vmem>>, vector<1x8x32xf32>
    %248 = vector.shape_cast %247 : vector<1x8x32xf32> to vector<8x32xf32>
    %249 = arith.addf %248, %246 : vector<8x32xf32>
    %c0_106 = arith.constant 0 : index
    %c0_107 = arith.constant 0 : index
    %250 = vector.load %arg24[%c0_106, %c0_107] : memref<1x32xf32, #tpu.memory_space<vmem>>, vector<1x32xf32>
    %c0_108 = arith.constant 0 : index
    %c0_109 = arith.constant 0 : index
    %251 = vector.load %arg25[%c0_108, %c0_109] : memref<1x32xf32, #tpu.memory_space<vmem>>, vector<1x32xf32>
    %cst_110 = arith.constant dense<0.000000e+00> : vector<8xf32>
    %252 = vector.multi_reduction <add>, %249, %cst_110 [1] : vector<8x32xf32> to vector<8xf32>
    %253 = vector.shape_cast %252 : vector<8xf32> to vector<8x1xf32>
    %cst_111 = arith.constant 3.200000e+01 : f32
    %254 = vector.broadcast %cst_111 : f32 to vector<8x1xf32>
    %255 = arith.divf %253, %254 : vector<8x1xf32>
    %256 = vector.broadcast %255 : vector<8x1xf32> to vector<8x32xf32>
    %257 = arith.subf %249, %256 : vector<8x32xf32>
    %258 = arith.mulf %257, %257 : vector<8x32xf32>
    %cst_112 = arith.constant dense<0.000000e+00> : vector<8xf32>
    %259 = vector.multi_reduction <add>, %258, %cst_112 [1] : vector<8x32xf32> to vector<8xf32>
    %260 = vector.shape_cast %259 : vector<8xf32> to vector<8x1xf32>
    %cst_113 = arith.constant 3.200000e+01 : f32
    %261 = vector.broadcast %cst_113 : f32 to vector<8x1xf32>
    %262 = arith.divf %260, %261 : vector<8x1xf32>
    %cst_114 = arith.constant 9.99999974E-6 : f32
    %263 = vector.broadcast %cst_114 : f32 to vector<8x1xf32>
    %264 = arith.addf %262, %263 : vector<8x1xf32>
    %265 = math.rsqrt %264 : vector<8x1xf32>
    %266 = vector.broadcast %265 : vector<8x1xf32> to vector<8x32xf32>
    %267 = arith.mulf %257, %266 : vector<8x32xf32>
    %268 = vector.broadcast %250 : vector<1x32xf32> to vector<8x32xf32>
    %269 = arith.mulf %267, %268 : vector<8x32xf32>
    %270 = vector.broadcast %251 : vector<1x32xf32> to vector<8x32xf32>
    %271 = arith.addf %269, %270 : vector<8x32xf32>
    %c0_115 = arith.constant 0 : index
    %c0_116 = arith.constant 0 : index
    %272 = vector.load %arg26[%c0_115, %c0_116] : memref<32x96xf32, #tpu.memory_space<vmem>>, vector<32x96xf32>
    %273 = arith.truncf %271 : vector<8x32xf32> to vector<8x32xbf16>
    %274 = arith.truncf %272 : vector<32x96xf32> to vector<32x96xbf16>
    %cst_117 = arith.constant dense<0.000000e+00> : vector<8x96xf32>
    %275 = tpu.matmul %273, %274, %cst_117 {dimension_numbers = #tpu.dot_dimension_numbers<[1], [0], [0], [1], [0, 0, 1, 1], [], []>} : vector<8x32xbf16>, vector<32x96xbf16>, vector<8x96xf32> -> vector<8x96xf32>
    %c0_118 = arith.constant 0 : index
    %c0_119 = arith.constant 0 : index
    %276 = vector.load %arg27[%c0_118, %c0_119] : memref<1x96xf32, #tpu.memory_space<vmem>>, vector<1x96xf32>
    %277 = vector.broadcast %276 : vector<1x96xf32> to vector<8x96xf32>
    %278 = arith.addf %275, %277 : vector<8x96xf32>
    %279 = vector.extract_strided_slice %278 {offsets = [0, 0], sizes = [8, 32], strides = [1, 1]} : vector<8x96xf32> to vector<8x32xf32>
    %280 = vector.extract_strided_slice %278 {offsets = [0, 32], sizes = [8, 32], strides = [1, 1]} : vector<8x96xf32> to vector<8x32xf32>
    %281 = vector.extract_strided_slice %278 {offsets = [0, 64], sizes = [8, 32], strides = [1, 1]} : vector<8x96xf32> to vector<8x32xf32>
    %cst_120 = arith.constant 0.353553385 : f32
    %282 = vector.broadcast %cst_120 : f32 to vector<8x32xf32>
    %283 = arith.mulf %279, %282 : vector<8x32xf32>
    %284 = arith.truncf %283 : vector<8x32xf32> to vector<8x32xbf16>
    %285 = arith.truncf %280 : vector<8x32xf32> to vector<8x32xbf16>
    %286 = arith.truncf %281 : vector<8x32xf32> to vector<8x32xbf16>
    %287 = vector.extract_strided_slice %284 {offsets = [0, 0], sizes = [8, 8], strides = [1, 1]} : vector<8x32xbf16> to vector<8x8xbf16>
    %288 = vector.extract_strided_slice %285 {offsets = [0, 0], sizes = [8, 8], strides = [1, 1]} : vector<8x32xbf16> to vector<8x8xbf16>
    %cst_121 = arith.constant dense<0.000000e+00> : vector<8x8xf32>
    %289 = tpu.matmul %287, %288, %cst_121 {dimension_numbers = #tpu.dot_dimension_numbers<[1], [1], [0], [0], [0, 0, 1, 0], [], []>} : vector<8x8xbf16>, vector<8x8xbf16>, vector<8x8xf32> -> vector<8x8xf32>
    %cst_122 = arith.constant dense<0xFF800000> : vector<8xf32>
    %290 = vector.multi_reduction <maximumf>, %289, %cst_122 [1] : vector<8x8xf32> to vector<8xf32>
    %291 = vector.shape_cast %290 : vector<8xf32> to vector<8x1xf32>
    %292 = vector.broadcast %291 : vector<8x1xf32> to vector<8x8xf32>
    %293 = arith.subf %289, %292 : vector<8x8xf32>
    %294 = math.exp %293 : vector<8x8xf32>
    %cst_123 = arith.constant dense<0.000000e+00> : vector<8xf32>
    %295 = vector.multi_reduction <add>, %294, %cst_123 [1] : vector<8x8xf32> to vector<8xf32>
    %296 = vector.shape_cast %295 : vector<8xf32> to vector<8x1xf32>
    %297 = tpu.reciprocal %296 {approx = true} : vector<8x1xf32> -> vector<8x1xf32>
    %298 = vector.broadcast %297 : vector<8x1xf32> to vector<8x8xf32>
    %299 = arith.mulf %294, %298 : vector<8x8xf32>
    %300 = vector.extract_strided_slice %286 {offsets = [0, 0], sizes = [8, 8], strides = [1, 1]} : vector<8x32xbf16> to vector<8x8xbf16>
    %301 = arith.truncf %299 : vector<8x8xf32> to vector<8x8xbf16>
    %cst_124 = arith.constant dense<0.000000e+00> : vector<8x8xf32>
    %302 = tpu.matmul %301, %300, %cst_124 {dimension_numbers = #tpu.dot_dimension_numbers<[1], [0], [0], [1], [0, 0, 1, 1], [], []>} : vector<8x8xbf16>, vector<8x8xbf16>, vector<8x8xf32> -> vector<8x8xf32>
    %303 = vector.extract_strided_slice %284 {offsets = [0, 8], sizes = [8, 8], strides = [1, 1]} : vector<8x32xbf16> to vector<8x8xbf16>
    %304 = vector.extract_strided_slice %285 {offsets = [0, 8], sizes = [8, 8], strides = [1, 1]} : vector<8x32xbf16> to vector<8x8xbf16>
    %cst_125 = arith.constant dense<0.000000e+00> : vector<8x8xf32>
    %305 = tpu.matmul %303, %304, %cst_125 {dimension_numbers = #tpu.dot_dimension_numbers<[1], [1], [0], [0], [0, 0, 1, 0], [], []>} : vector<8x8xbf16>, vector<8x8xbf16>, vector<8x8xf32> -> vector<8x8xf32>
    %cst_126 = arith.constant dense<0xFF800000> : vector<8xf32>
    %306 = vector.multi_reduction <maximumf>, %305, %cst_126 [1] : vector<8x8xf32> to vector<8xf32>
    %307 = vector.shape_cast %306 : vector<8xf32> to vector<8x1xf32>
    %308 = vector.broadcast %307 : vector<8x1xf32> to vector<8x8xf32>
    %309 = arith.subf %305, %308 : vector<8x8xf32>
    %310 = math.exp %309 : vector<8x8xf32>
    %cst_127 = arith.constant dense<0.000000e+00> : vector<8xf32>
    %311 = vector.multi_reduction <add>, %310, %cst_127 [1] : vector<8x8xf32> to vector<8xf32>
    %312 = vector.shape_cast %311 : vector<8xf32> to vector<8x1xf32>
    %313 = tpu.reciprocal %312 {approx = true} : vector<8x1xf32> -> vector<8x1xf32>
    %314 = vector.broadcast %313 : vector<8x1xf32> to vector<8x8xf32>
    %315 = arith.mulf %310, %314 : vector<8x8xf32>
    %316 = vector.extract_strided_slice %286 {offsets = [0, 8], sizes = [8, 8], strides = [1, 1]} : vector<8x32xbf16> to vector<8x8xbf16>
    %317 = arith.truncf %315 : vector<8x8xf32> to vector<8x8xbf16>
    %cst_128 = arith.constant dense<0.000000e+00> : vector<8x8xf32>
    %318 = tpu.matmul %317, %316, %cst_128 {dimension_numbers = #tpu.dot_dimension_numbers<[1], [0], [0], [1], [0, 0, 1, 1], [], []>} : vector<8x8xbf16>, vector<8x8xbf16>, vector<8x8xf32> -> vector<8x8xf32>
    %319 = vector.extract_strided_slice %284 {offsets = [0, 16], sizes = [8, 8], strides = [1, 1]} : vector<8x32xbf16> to vector<8x8xbf16>
    %320 = vector.extract_strided_slice %285 {offsets = [0, 16], sizes = [8, 8], strides = [1, 1]} : vector<8x32xbf16> to vector<8x8xbf16>
    %cst_129 = arith.constant dense<0.000000e+00> : vector<8x8xf32>
    %321 = tpu.matmul %319, %320, %cst_129 {dimension_numbers = #tpu.dot_dimension_numbers<[1], [1], [0], [0], [0, 0, 1, 0], [], []>} : vector<8x8xbf16>, vector<8x8xbf16>, vector<8x8xf32> -> vector<8x8xf32>
    %cst_130 = arith.constant dense<0xFF800000> : vector<8xf32>
    %322 = vector.multi_reduction <maximumf>, %321, %cst_130 [1] : vector<8x8xf32> to vector<8xf32>
    %323 = vector.shape_cast %322 : vector<8xf32> to vector<8x1xf32>
    %324 = vector.broadcast %323 : vector<8x1xf32> to vector<8x8xf32>
    %325 = arith.subf %321, %324 : vector<8x8xf32>
    %326 = math.exp %325 : vector<8x8xf32>
    %cst_131 = arith.constant dense<0.000000e+00> : vector<8xf32>
    %327 = vector.multi_reduction <add>, %326, %cst_131 [1] : vector<8x8xf32> to vector<8xf32>
    %328 = vector.shape_cast %327 : vector<8xf32> to vector<8x1xf32>
    %329 = tpu.reciprocal %328 {approx = true} : vector<8x1xf32> -> vector<8x1xf32>
    %330 = vector.broadcast %329 : vector<8x1xf32> to vector<8x8xf32>
    %331 = arith.mulf %326, %330 : vector<8x8xf32>
    %332 = vector.extract_strided_slice %286 {offsets = [0, 16], sizes = [8, 8], strides = [1, 1]} : vector<8x32xbf16> to vector<8x8xbf16>
    %333 = arith.truncf %331 : vector<8x8xf32> to vector<8x8xbf16>
    %cst_132 = arith.constant dense<0.000000e+00> : vector<8x8xf32>
    %334 = tpu.matmul %333, %332, %cst_132 {dimension_numbers = #tpu.dot_dimension_numbers<[1], [0], [0], [1], [0, 0, 1, 1], [], []>} : vector<8x8xbf16>, vector<8x8xbf16>, vector<8x8xf32> -> vector<8x8xf32>
    %335 = vector.extract_strided_slice %284 {offsets = [0, 24], sizes = [8, 8], strides = [1, 1]} : vector<8x32xbf16> to vector<8x8xbf16>
    %336 = vector.extract_strided_slice %285 {offsets = [0, 24], sizes = [8, 8], strides = [1, 1]} : vector<8x32xbf16> to vector<8x8xbf16>
    %cst_133 = arith.constant dense<0.000000e+00> : vector<8x8xf32>
    %337 = tpu.matmul %335, %336, %cst_133 {dimension_numbers = #tpu.dot_dimension_numbers<[1], [1], [0], [0], [0, 0, 1, 0], [], []>} : vector<8x8xbf16>, vector<8x8xbf16>, vector<8x8xf32> -> vector<8x8xf32>
    %cst_134 = arith.constant dense<0xFF800000> : vector<8xf32>
    %338 = vector.multi_reduction <maximumf>, %337, %cst_134 [1] : vector<8x8xf32> to vector<8xf32>
    %339 = vector.shape_cast %338 : vector<8xf32> to vector<8x1xf32>
    %340 = vector.broadcast %339 : vector<8x1xf32> to vector<8x8xf32>
    %341 = arith.subf %337, %340 : vector<8x8xf32>
    %342 = math.exp %341 : vector<8x8xf32>
    %cst_135 = arith.constant dense<0.000000e+00> : vector<8xf32>
    %343 = vector.multi_reduction <add>, %342, %cst_135 [1] : vector<8x8xf32> to vector<8xf32>
    %344 = vector.shape_cast %343 : vector<8xf32> to vector<8x1xf32>
    %345 = tpu.reciprocal %344 {approx = true} : vector<8x1xf32> -> vector<8x1xf32>
    %346 = vector.broadcast %345 : vector<8x1xf32> to vector<8x8xf32>
    %347 = arith.mulf %342, %346 : vector<8x8xf32>
    %348 = vector.extract_strided_slice %286 {offsets = [0, 24], sizes = [8, 8], strides = [1, 1]} : vector<8x32xbf16> to vector<8x8xbf16>
    %349 = arith.truncf %347 : vector<8x8xf32> to vector<8x8xbf16>
    %cst_136 = arith.constant dense<0.000000e+00> : vector<8x8xf32>
    %350 = tpu.matmul %349, %348, %cst_136 {dimension_numbers = #tpu.dot_dimension_numbers<[1], [0], [0], [1], [0, 0, 1, 1], [], []>} : vector<8x8xbf16>, vector<8x8xbf16>, vector<8x8xf32> -> vector<8x8xf32>
    %351 = tpu.concatenate %302, %318, %334, %350 in 1 : vector<8x8xf32>, vector<8x8xf32>, vector<8x8xf32>, vector<8x8xf32> -> vector<8x32xf32>
    %c0_137 = arith.constant 0 : index
    %c0_138 = arith.constant 0 : index
    %352 = vector.load %arg28[%c0_137, %c0_138] : memref<32x32xf32, #tpu.memory_space<vmem>>, vector<32x32xf32>
    %353 = arith.truncf %351 : vector<8x32xf32> to vector<8x32xbf16>
    %354 = arith.truncf %352 : vector<32x32xf32> to vector<32x32xbf16>
    %cst_139 = arith.constant dense<0.000000e+00> : vector<8x32xf32>
    %355 = tpu.matmul %353, %354, %cst_139 {dimension_numbers = #tpu.dot_dimension_numbers<[1], [0], [0], [1], [0, 0, 1, 1], [], []>} : vector<8x32xbf16>, vector<32x32xbf16>, vector<8x32xf32> -> vector<8x32xf32>
    %356 = arith.addf %249, %355 : vector<8x32xf32>
    %c0_140 = arith.constant 0 : index
    %c0_141 = arith.constant 0 : index
    %357 = vector.load %arg29[%c0_140, %c0_141] : memref<1x32xf32, #tpu.memory_space<vmem>>, vector<1x32xf32>
    %358 = vector.broadcast %357 : vector<1x32xf32> to vector<8x32xf32>
    %359 = arith.addf %356, %358 : vector<8x32xf32>
    %c0_142 = arith.constant 0 : index
    %c0_143 = arith.constant 0 : index
    %360 = vector.load %arg30[%c0_142, %c0_143] : memref<1x32xf32, #tpu.memory_space<vmem>>, vector<1x32xf32>
    %c0_144 = arith.constant 0 : index
    %c0_145 = arith.constant 0 : index
    %361 = vector.load %arg31[%c0_144, %c0_145] : memref<1x32xf32, #tpu.memory_space<vmem>>, vector<1x32xf32>
    %cst_146 = arith.constant dense<0.000000e+00> : vector<8xf32>
    %362 = vector.multi_reduction <add>, %359, %cst_146 [1] : vector<8x32xf32> to vector<8xf32>
    %363 = vector.shape_cast %362 : vector<8xf32> to vector<8x1xf32>
    %cst_147 = arith.constant 3.200000e+01 : f32
    %364 = vector.broadcast %cst_147 : f32 to vector<8x1xf32>
    %365 = arith.divf %363, %364 : vector<8x1xf32>
    %366 = vector.broadcast %365 : vector<8x1xf32> to vector<8x32xf32>
    %367 = arith.subf %359, %366 : vector<8x32xf32>
    %368 = arith.mulf %367, %367 : vector<8x32xf32>
    %cst_148 = arith.constant dense<0.000000e+00> : vector<8xf32>
    %369 = vector.multi_reduction <add>, %368, %cst_148 [1] : vector<8x32xf32> to vector<8xf32>
    %370 = vector.shape_cast %369 : vector<8xf32> to vector<8x1xf32>
    %cst_149 = arith.constant 3.200000e+01 : f32
    %371 = vector.broadcast %cst_149 : f32 to vector<8x1xf32>
    %372 = arith.divf %370, %371 : vector<8x1xf32>
    %cst_150 = arith.constant 9.99999974E-6 : f32
    %373 = vector.broadcast %cst_150 : f32 to vector<8x1xf32>
    %374 = arith.addf %372, %373 : vector<8x1xf32>
    %375 = math.rsqrt %374 : vector<8x1xf32>
    %376 = vector.broadcast %375 : vector<8x1xf32> to vector<8x32xf32>
    %377 = arith.mulf %367, %376 : vector<8x32xf32>
    %378 = vector.broadcast %360 : vector<1x32xf32> to vector<8x32xf32>
    %379 = arith.mulf %377, %378 : vector<8x32xf32>
    %380 = vector.broadcast %361 : vector<1x32xf32> to vector<8x32xf32>
    %381 = arith.addf %379, %380 : vector<8x32xf32>
    %c0_151 = arith.constant 0 : index
    %c0_152 = arith.constant 0 : index
    %382 = vector.load %arg32[%c0_151, %c0_152] : memref<32x128xf32, #tpu.memory_space<vmem>>, vector<32x128xf32>
    %383 = arith.truncf %381 : vector<8x32xf32> to vector<8x32xbf16>
    %384 = arith.truncf %382 : vector<32x128xf32> to vector<32x128xbf16>
    %cst_153 = arith.constant dense<0.000000e+00> : vector<8x128xf32>
    %385 = tpu.matmul %383, %384, %cst_153 {dimension_numbers = #tpu.dot_dimension_numbers<[1], [0], [0], [1], [0, 0, 1, 1], [], []>} : vector<8x32xbf16>, vector<32x128xbf16>, vector<8x128xf32> -> vector<8x128xf32>
    %c0_154 = arith.constant 0 : index
    %c0_155 = arith.constant 0 : index
    %386 = vector.load %arg33[%c0_154, %c0_155] : memref<1x128xf32, #tpu.memory_space<vmem>>, vector<1x128xf32>
    %387 = vector.broadcast %386 : vector<1x128xf32> to vector<8x128xf32>
    %388 = arith.addf %385, %387 : vector<8x128xf32>
    %cst_156 = arith.constant 5.000000e-01 : f32
    %389 = vector.broadcast %cst_156 : f32 to vector<8x128xf32>
    %390 = arith.mulf %389, %388 : vector<8x128xf32>
    %cst_157 = arith.constant 0.707106769 : f32
    %391 = vector.broadcast %cst_157 : f32 to vector<8x128xf32>
    %392 = arith.mulf %388, %391 : vector<8x128xf32>
    %cst_158 = arith.constant 0.000000e+00 : f32
    %393 = vector.broadcast %cst_158 : f32 to vector<8x128xf32>
    %394 = arith.cmpf oge, %392, %393 : vector<8x128xf32>
    %cst_159 = arith.constant 1.000000e+00 : f32
    %cst_160 = arith.constant -1.000000e+00 : f32
    %395 = vector.broadcast %cst_159 : f32 to vector<8x128xf32>
    %396 = vector.broadcast %cst_160 : f32 to vector<8x128xf32>
    %397 = arith.select %394, %395, %396 : vector<8x128xi1>, vector<8x128xf32>
    %398 = math.absf %392 : vector<8x128xf32>
    %cst_161 = arith.constant 0.327591091 : f32
    %399 = vector.broadcast %cst_161 : f32 to vector<8x128xf32>
    %400 = arith.mulf %399, %398 : vector<8x128xf32>
    %cst_162 = arith.constant 1.000000e+00 : f32
    %401 = vector.broadcast %cst_162 : f32 to vector<8x128xf32>
    %402 = arith.addf %401, %400 : vector<8x128xf32>
    %cst_163 = arith.constant 1.000000e+00 : f32
    %403 = vector.broadcast %cst_163 : f32 to vector<8x128xf32>
    %404 = arith.divf %403, %402 : vector<8x128xf32>
    %cst_164 = arith.constant 1.06140542 : f32
    %405 = vector.broadcast %cst_164 : f32 to vector<8x128xf32>
    %406 = arith.mulf %404, %405 : vector<8x128xf32>
    %cst_165 = arith.constant -1.45315206 : f32
    %407 = vector.broadcast %cst_165 : f32 to vector<8x128xf32>
    %408 = arith.addf %407, %406 : vector<8x128xf32>
    %409 = arith.mulf %404, %408 : vector<8x128xf32>
    %cst_166 = arith.constant 1.42141378 : f32
    %410 = vector.broadcast %cst_166 : f32 to vector<8x128xf32>
    %411 = arith.addf %410, %409 : vector<8x128xf32>
    %412 = arith.mulf %404, %411 : vector<8x128xf32>
    %cst_167 = arith.constant -0.284496725 : f32
    %413 = vector.broadcast %cst_167 : f32 to vector<8x128xf32>
    %414 = arith.addf %413, %412 : vector<8x128xf32>
    %415 = arith.mulf %404, %414 : vector<8x128xf32>
    %cst_168 = arith.constant 0.254829586 : f32
    %416 = vector.broadcast %cst_168 : f32 to vector<8x128xf32>
    %417 = arith.addf %416, %415 : vector<8x128xf32>
    %418 = arith.mulf %404, %417 : vector<8x128xf32>
    %cst_169 = arith.constant 0.000000e+00 : f32
    %419 = vector.broadcast %cst_169 : f32 to vector<8x128xf32>
    %420 = arith.subf %419, %398 : vector<8x128xf32>
    %421 = arith.mulf %420, %398 : vector<8x128xf32>
    %422 = math.exp %421 : vector<8x128xf32>
    %423 = arith.mulf %418, %422 : vector<8x128xf32>
    %cst_170 = arith.constant 1.000000e+00 : f32
    %424 = vector.broadcast %cst_170 : f32 to vector<8x128xf32>
    %425 = arith.subf %424, %423 : vector<8x128xf32>
    %426 = arith.mulf %397, %425 : vector<8x128xf32>
    %cst_171 = arith.constant 1.000000e+00 : f32
    %427 = vector.broadcast %cst_171 : f32 to vector<8x128xf32>
    %428 = arith.addf %427, %426 : vector<8x128xf32>
    %429 = arith.mulf %390, %428 : vector<8x128xf32>
    %c0_172 = arith.constant 0 : index
    %c0_173 = arith.constant 0 : index
    %430 = vector.load %arg34[%c0_172, %c0_173] : memref<128x32xf32, #tpu.memory_space<vmem>>, vector<128x32xf32>
    %431 = arith.truncf %429 : vector<8x128xf32> to vector<8x128xbf16>
    %432 = arith.truncf %430 : vector<128x32xf32> to vector<128x32xbf16>
    %cst_174 = arith.constant dense<0.000000e+00> : vector<8x32xf32>
    %433 = tpu.matmul %431, %432, %cst_174 {dimension_numbers = #tpu.dot_dimension_numbers<[1], [0], [0], [1], [0, 0, 1, 1], [], []>} : vector<8x128xbf16>, vector<128x32xbf16>, vector<8x32xf32> -> vector<8x32xf32>
    %434 = arith.addf %359, %433 : vector<8x32xf32>
    %c0_175 = arith.constant 0 : index
    %c0_176 = arith.constant 0 : index
    %435 = vector.load %arg35[%c0_175, %c0_176] : memref<1x32xf32, #tpu.memory_space<vmem>>, vector<1x32xf32>
    %436 = vector.broadcast %435 : vector<1x32xf32> to vector<8x32xf32>
    %437 = arith.addf %434, %436 : vector<8x32xf32>
    %438 = arith.addf %437, %246 : vector<8x32xf32>
    %c0_177 = arith.constant 0 : index
    %c0_178 = arith.constant 0 : index
    %439 = vector.load %arg36[%c0_177, %c0_178] : memref<1x32xf32, #tpu.memory_space<vmem>>, vector<1x32xf32>
    %c0_179 = arith.constant 0 : index
    %c0_180 = arith.constant 0 : index
    %440 = vector.load %arg37[%c0_179, %c0_180] : memref<1x32xf32, #tpu.memory_space<vmem>>, vector<1x32xf32>
    %cst_181 = arith.constant dense<0.000000e+00> : vector<8xf32>
    %441 = vector.multi_reduction <add>, %438, %cst_181 [1] : vector<8x32xf32> to vector<8xf32>
    %442 = vector.shape_cast %441 : vector<8xf32> to vector<8x1xf32>
    %cst_182 = arith.constant 3.200000e+01 : f32
    %443 = vector.broadcast %cst_182 : f32 to vector<8x1xf32>
    %444 = arith.divf %442, %443 : vector<8x1xf32>
    %445 = vector.broadcast %444 : vector<8x1xf32> to vector<8x32xf32>
    %446 = arith.subf %438, %445 : vector<8x32xf32>
    %447 = arith.mulf %446, %446 : vector<8x32xf32>
    %cst_183 = arith.constant dense<0.000000e+00> : vector<8xf32>
    %448 = vector.multi_reduction <add>, %447, %cst_183 [1] : vector<8x32xf32> to vector<8xf32>
    %449 = vector.shape_cast %448 : vector<8xf32> to vector<8x1xf32>
    %cst_184 = arith.constant 3.200000e+01 : f32
    %450 = vector.broadcast %cst_184 : f32 to vector<8x1xf32>
    %451 = arith.divf %449, %450 : vector<8x1xf32>
    %cst_185 = arith.constant 9.99999974E-6 : f32
    %452 = vector.broadcast %cst_185 : f32 to vector<8x1xf32>
    %453 = arith.addf %451, %452 : vector<8x1xf32>
    %454 = math.rsqrt %453 : vector<8x1xf32>
    %455 = vector.broadcast %454 : vector<8x1xf32> to vector<8x32xf32>
    %456 = arith.mulf %446, %455 : vector<8x32xf32>
    %457 = vector.broadcast %439 : vector<1x32xf32> to vector<8x32xf32>
    %458 = arith.mulf %456, %457 : vector<8x32xf32>
    %459 = vector.broadcast %440 : vector<1x32xf32> to vector<8x32xf32>
    %460 = arith.addf %458, %459 : vector<8x32xf32>
    %c0_186 = arith.constant 0 : index
    %c0_187 = arith.constant 0 : index
    %c0_188 = arith.constant 0 : index
    %461 = vector.load %arg38[%c0_186, %c0_187, %c0_188] : memref<1x8x32xf32, #tpu.memory_space<vmem>>, vector<1x8x32xf32>
    %462 = vector.shape_cast %461 : vector<1x8x32xf32> to vector<8x32xf32>
    %463 = vector.shape_cast %460 : vector<8x32xf32> to vector<1x8x32xf32>
    tpu.vector_store %arg38[%c0_186, %c0_187, %c0_188], %463 {strides = array<i32>} : memref<1x8x32xf32, #tpu.memory_space<vmem>>, vector<1x8x32xf32>,
    return
  }
  func.func @transform_0(%arg0: i32) -> (i32, i32, i32) {
    %c0_i32 = arith.constant 0 : i32
    %c0_i32_0 = arith.constant 0 : i32
    %c0_i32_1 = arith.constant 0 : i32
    return %arg0, %c0_i32, %c0_i32_0 : i32, i32, i32
  }
  func.func @transform_1(%arg0: i32) -> (i32, i32, i32) {
    %c0_i32 = arith.constant 0 : i32
    %c0_i32_0 = arith.constant 0 : i32
    %c0_i32_1 = arith.constant 0 : i32
    return %arg0, %c0_i32, %c0_i32_0 : i32, i32, i32
  }
  func.func @transform_2(%arg0: i32) -> (i32, i32, i32) {
    %c0_i32 = arith.constant 0 : i32
    %c0_i32_0 = arith.constant 0 : i32
    %c0_i32_1 = arith.constant 0 : i32
    return %arg0, %c0_i32, %c0_i32_0 : i32, i32, i32
  }
  func.func @transform_3(%arg0: i32) -> (i32, i32) {
    %c0_i32 = arith.constant 0 : i32
    %c0_i32_0 = arith.constant 0 : i32
    %c0_i32_1 = arith.constant 0 : i32
    return %c0_i32, %c0_i32_0 : i32, i32
  }
  func.func @transform_4(%arg0: i32) -> (i32, i32) {
    %c0_i32 = arith.constant 0 : i32
    %c0_i32_0 = arith.constant 0 : i32
    %c0_i32_1 = arith.constant 0 : i32
    return %c0_i32, %c0_i32_0 : i32, i32
  }
  func.func @transform_5(%arg0: i32) -> (i32, i32) {
    %c0_i32 = arith.constant 0 : i32
    %c0_i32_0 = arith.constant 0 : i32
    %c0_i32_1 = arith.constant 0 : i32
    return %c0_i32, %c0_i32_0 : i32, i32
  }
  func.func @transform_6(%arg0: i32) -> (i32, i32) {
    %c0_i32 = arith.constant 0 : i32
    %c0_i32_0 = arith.constant 0 : i32
    %c0_i32_1 = arith.constant 0 : i32
    return %c0_i32, %c0_i32_0 : i32, i32
  }
  func.func @transform_7(%arg0: i32) -> (i32, i32) {
    %c0_i32 = arith.constant 0 : i32
    %c0_i32_0 = arith.constant 0 : i32
    %c0_i32_1 = arith.constant 0 : i32
    return %c0_i32, %c0_i32_0 : i32, i32
  }
  func.func @transform_8(%arg0: i32) -> (i32, i32) {
    %c0_i32 = arith.constant 0 : i32
    %c0_i32_0 = arith.constant 0 : i32
    %c0_i32_1 = arith.constant 0 : i32
    return %c0_i32, %c0_i32_0 : i32, i32
  }
  func.func @transform_9(%arg0: i32) -> (i32, i32) {
    %c0_i32 = arith.constant 0 : i32
    %c0_i32_0 = arith.constant 0 : i32
    %c0_i32_1 = arith.constant 0 : i32
    return %c0_i32, %c0_i32_0 : i32, i32
  }
  func.func @transform_10(%arg0: i32) -> (i32, i32) {
    %c0_i32 = arith.constant 0 : i32
    %c0_i32_0 = arith.constant 0 : i32
    %c0_i32_1 = arith.constant 0 : i32
    return %c0_i32, %c0_i32_0 : i32, i32
  }
  func.func @transform_11(%arg0: i32) -> (i32, i32) {
    %c0_i32 = arith.constant 0 : i32
    %c0_i32_0 = arith.constant 0 : i32
    %c0_i32_1 = arith.constant 0 : i32
    return %c0_i32, %c0_i32_0 : i32, i32
  }
  func.func @transform_12(%arg0: i32) -> (i32, i32) {
    %c0_i32 = arith.constant 0 : i32
    %c0_i32_0 = arith.constant 0 : i32
    %c0_i32_1 = arith.constant 0 : i32
    return %c0_i32, %c0_i32_0 : i32, i32
  }
  func.func @transform_13(%arg0: i32) -> (i32, i32) {
    %c0_i32 = arith.constant 0 : i32
    %c0_i32_0 = arith.constant 0 : i32
    %c0_i32_1 = arith.constant 0 : i32
    return %c0_i32, %c0_i32_0 : i32, i32
  }
  func.func @transform_14(%arg0: i32) -> (i32, i32) {
    %c0_i32 = arith.constant 0 : i32
    %c0_i32_0 = arith.constant 0 : i32
    %c0_i32_1 = arith.constant 0 : i32
    return %c0_i32, %c0_i32_0 : i32, i32
  }
  func.func @transform_15(%arg0: i32) -> (i32, i32) {
    %c0_i32 = arith.constant 0 : i32
    %c0_i32_0 = arith.constant 0 : i32
    %c0_i32_1 = arith.constant 0 : i32
    return %c0_i32, %c0_i32_0 : i32, i32
  }
  func.func @transform_16(%arg0: i32) -> (i32, i32) {
    %c0_i32 = arith.constant 0 : i32
    %c0_i32_0 = arith.constant 0 : i32
    %c0_i32_1 = arith.constant 0 : i32
    return %c0_i32, %c0_i32_0 : i32, i32
  }
  func.func @transform_17(%arg0: i32) -> (i32, i32) {
    %c0_i32 = arith.constant 0 : i32
    %c0_i32_0 = arith.constant 0 : i32
    %c0_i32_1 = arith.constant 0 : i32
    return %c0_i32, %c0_i32_0 : i32, i32
  }
  func.func @transform_18(%arg0: i32) -> (i32, i32) {
    %c0_i32 = arith.constant 0 : i32
    %c0_i32_0 = arith.constant 0 : i32
    %c0_i32_1 = arith.constant 0 : i32
    return %c0_i32, %c0_i32_0 : i32, i32
  }
  func.func @transform_19(%arg0: i32) -> (i32, i32) {
    %c0_i32 = arith.constant 0 : i32
    %c0_i32_0 = arith.constant 0 : i32
    %c0_i32_1 = arith.constant 0 : i32
    return %c0_i32, %c0_i32_0 : i32, i32
  }
  func.func @transform_20(%arg0: i32) -> (i32, i32) {
    %c0_i32 = arith.constant 0 : i32
    %c0_i32_0 = arith.constant 0 : i32
    %c0_i32_1 = arith.constant 0 : i32
    return %c0_i32, %c0_i32_0 : i32, i32
  }
  func.func @transform_21(%arg0: i32) -> (i32, i32) {
    %c0_i32 = arith.constant 0 : i32
    %c0_i32_0 = arith.constant 0 : i32
    %c0_i32_1 = arith.constant 0 : i32
    return %c0_i32, %c0_i32_0 : i32, i32
  }
  func.func @transform_22(%arg0: i32) -> (i32, i32) {
    %c0_i32 = arith.constant 0 : i32
    %c0_i32_0 = arith.constant 0 : i32
    %c0_i32_1 = arith.constant 0 : i32
    return %c0_i32, %c0_i32_0 : i32, i32
  }
  func.func @transform_23(%arg0: i32) -> (i32, i32) {
    %c0_i32 = arith.constant 0 : i32
    %c0_i32_0 = arith.constant 0 : i32
    %c0_i32_1 = arith.constant 0 : i32
    return %c0_i32, %c0_i32_0 : i32, i32
  }
  func.func @transform_24(%arg0: i32) -> (i32, i32) {
    %c0_i32 = arith.constant 0 : i32
    %c0_i32_0 = arith.constant 0 : i32
    %c0_i32_1 = arith.constant 0 : i32
    return %c0_i32, %c0_i32_0 : i32, i32
  }
  func.func @transform_25(%arg0: i32) -> (i32, i32) {
    %c0_i32 = arith.constant 0 : i32
    %c0_i32_0 = arith.constant 0 : i32
    %c0_i32_1 = arith.constant 0 : i32
    return %c0_i32, %c0_i32_0 : i32, i32
  }
  func.func @transform_26(%arg0: i32) -> (i32, i32) {
    %c0_i32 = arith.constant 0 : i32
    %c0_i32_0 = arith.constant 0 : i32
    %c0_i32_1 = arith.constant 0 : i32
    return %c0_i32, %c0_i32_0 : i32, i32
  }
  func.func @transform_27(%arg0: i32) -> (i32, i32) {
    %c0_i32 = arith.constant 0 : i32
    %c0_i32_0 = arith.constant 0 : i32
    %c0_i32_1 = arith.constant 0 : i32
    return %c0_i32, %c0_i32_0 : i32, i32
  }
  func.func @transform_28(%arg0: i32) -> (i32, i32) {
    %c0_i32 = arith.constant 0 : i32
    %c0_i32_0 = arith.constant 0 : i32
    %c0_i32_1 = arith.constant 0 : i32
    return %c0_i32, %c0_i32_0 : i32, i32
  }
  func.func @transform_29(%arg0: i32) -> (i32, i32) {
    %c0_i32 = arith.constant 0 : i32
    %c0_i32_0 = arith.constant 0 : i32
    %c0_i32_1 = arith.constant 0 : i32
    return %c0_i32, %c0_i32_0 : i32, i32
  }
  func.func @transform_30(%arg0: i32) -> (i32, i32) {
    %c0_i32 = arith.constant 0 : i32
    %c0_i32_0 = arith.constant 0 : i32
    %c0_i32_1 = arith.constant 0 : i32
    return %c0_i32, %c0_i32_0 : i32, i32
  }
  func.func @transform_31(%arg0: i32) -> (i32, i32) {
    %c0_i32 = arith.constant 0 : i32
    %c0_i32_0 = arith.constant 0 : i32
    %c0_i32_1 = arith.constant 0 : i32
    return %c0_i32, %c0_i32_0 : i32, i32
  }
  func.func @transform_32(%arg0: i32) -> (i32, i32) {
    %c0_i32 = arith.constant 0 : i32
    %c0_i32_0 = arith.constant 0 : i32
    %c0_i32_1 = arith.constant 0 : i32
    return %c0_i32, %c0_i32_0 : i32, i32
  }
  func.func @transform_33(%arg0: i32) -> (i32, i32) {
    %c0_i32 = arith.constant 0 : i32
    %c0_i32_0 = arith.constant 0 : i32
    %c0_i32_1 = arith.constant 0 : i32
    return %c0_i32, %c0_i32_0 : i32, i32
  }
  func.func @transform_34(%arg0: i32) -> (i32, i32) {
    %c0_i32 = arith.constant 0 : i32
    %c0_i32_0 = arith.constant 0 : i32
    %c0_i32_1 = arith.constant 0 : i32
    return %c0_i32, %c0_i32_0 : i32, i32
  }
  func.func @transform_35(%arg0: i32) -> (i32, i32) {
    %c0_i32 = arith.constant 0 : i32
    %c0_i32_0 = arith.constant 0 : i32
    %c0_i32_1 = arith.constant 0 : i32
    return %c0_i32, %c0_i32_0 : i32, i32
  }
  func.func @transform_36(%arg0: i32) -> (i32, i32) {
    %c0_i32 = arith.constant 0 : i32
    %c0_i32_0 = arith.constant 0 : i32
    %c0_i32_1 = arith.constant 0 : i32
    return %c0_i32, %c0_i32_0 : i32, i32
  }
  func.func @transform_37(%arg0: i32) -> (i32, i32, i32) {
    %c0_i32 = arith.constant 0 : i32
    %c0_i32_0 = arith.constant 0 : i32
    %c0_i32_1 = arith.constant 0 : i32
    return %arg0, %c0_i32, %c0_i32_0 : i32, i32, i32
  }
}

</mosaic_0001>

<llo_original>
// kernel: multimodal_grouping_block.1
$region0: #{multimodal_grouping_block.1}
  #allocation0 [shape = 'u32[]', space=smem, size = 0x4, offset = 0x4, fixed_abs, tag = 'smem constant byte address 0x4 - core index']
  #allocation1 [shape = 'u32[72,128]{1,0:T(1,128)}', space=vmem, size = 0x9000, scoped, tag = 'internal scratch']
  %s0 = inlined_call_operand.smem [shape: u32[38], index: -1, kind: input, shape index: {}]
  %s1 = sld [smem:[%s0]]
  %s2 = scalar_lea.smem %s0, 1
  %s3 = sld [smem:[%s2]]
  %s4 = scalar_lea.smem %s0, 2
  %s5 = sld [smem:[%s4]]
  %s6 = scalar_lea.smem %s0, 3
  %s7 = sld [smem:[%s6]]
  %s8 = scalar_lea.smem %s0, 4
  %s9 = sld [smem:[%s8]]
  %s10 = scalar_lea.smem %s0, 5
  %s11 = sld [smem:[%s10]]
  %s12 = scalar_lea.smem %s0, 6
  %s13 = sld [smem:[%s12]]
  %s14 = scalar_lea.smem %s0, 7
  %s15 = sld [smem:[%s14]]
  %s16 = scalar_lea.smem %s0, 8
  %s17 = sld [smem:[%s16]]
  %s18 = scalar_lea.smem %s0, 9
  %s19 = sld [smem:[%s18]]
  %s20 = scalar_lea.smem %s0, 10
  %s21 = sld [smem:[%s20]]
  %s22 = scalar_lea.smem %s0, 11
  %s23 = sld [smem:[%s22]]
  %s24 = scalar_lea.smem %s0, 12
  %s25 = sld [smem:[%s24]]
  %s26 = scalar_lea.smem %s0, 13
  %s27 = sld [smem:[%s26]]
  %s28 = scalar_lea.smem %s0, 14
  %s29 = sld [smem:[%s28]]
  %s30 = scalar_lea.smem %s0, 15
  %s31 = sld [smem:[%s30]]
  %s32 = scalar_lea.smem %s0, 16
  %s33 = sld [smem:[%s32]]
  %s34 = scalar_lea.smem %s0, 17
  %s35 = sld [smem:[%s34]]
  %s36 = scalar_lea.smem %s0, 18
  %s37 = sld [smem:[%s36]]
  %s38 = scalar_lea.smem %s0, 19
  %s39 = sld [smem:[%s38]]
  %s40 = scalar_lea.smem %s0, 20
  %s41 = sld [smem:[%s40]]
  %s42 = scalar_lea.smem %s0, 21
  %s43 = sld [smem:[%s42]]
  %s44 = scalar_lea.smem %s0, 22
  %s45 = sld [smem:[%s44]]
  %s46 = scalar_lea.smem %s0, 23
  %s47 = sld [smem:[%s46]]
  %s48 = scalar_lea.smem %s0, 24
  %s49 = sld [smem:[%s48]]
  %s50 = scalar_lea.smem %s0, 25
  %s51 = sld [smem:[%s50]]
  %s52 = scalar_lea.smem %s0, 26
  %s53 = sld [smem:[%s52]]
  %s54 = scalar_lea.smem %s0, 27
  %s55 = sld [smem:[%s54]]
  %s56 = scalar_lea.smem %s0, 28
  %s57 = sld [smem:[%s56]]
  %s58 = scalar_lea.smem %s0, 29
  %s59 = sld [smem:[%s58]]
  %s60 = scalar_lea.smem %s0, 30
  %s61 = sld [smem:[%s60]]
  %s62 = scalar_lea.smem %s0, 31
  %s63 = sld [smem:[%s62]]
  %s64 = scalar_lea.smem %s0, 32
  %s65 = sld [smem:[%s64]]
  %s66 = scalar_lea.smem %s0, 33
  %s67 = sld [smem:[%s66]]
  %s68 = scalar_lea.smem %s0, 34
  %s69 = sld [smem:[%s68]]
  %s70 = scalar_lea.smem %s0, 35
  %s71 = sld [smem:[%s70]]
  %s72 = scalar_lea.smem %s0, 36
  %s73 = sld [smem:[%s72]]
  %s74 = scalar_lea.smem %s0, 37
  %s75 = sld [smem:[%s74]]
  %s76 = sld [smem:[#allocation0]]
  $region229: #{multimodal_grouping_block.1} parent=0
    _
  %s78 = ssub.s32 1, %s76
  %s79 = scalar_select 0, %s78, %s76
  $region1: #{multimodal_grouping_block.1} parent=0
    #allocation2 [shape = 'u8[8192]{0}', space=vmem, size = 0x2000, scoped, tag = 'input window, operand 0']
    #allocation3 [shape = 's32[2]{0}', space=sflag, size = 0x8, scoped, tag = 'scoped memory for multimodal_grouping_block.1']
    #allocation4 [shape = 's32[2]{0}', space=sflag, size = 0x8, scoped, tag = 'scoped memory for multimodal_grouping_block.1']
    #allocation5 [shape = 'u8[8192]{0}', space=vmem, size = 0x2000, scoped, tag = 'input window, operand 2']
    #allocation6 [shape = 's32[2]{0}', space=sflag, size = 0x8, scoped, tag = 'scoped memory for multimodal_grouping_block.1']
    #allocation7 [shape = 'u8[512]{0}', space=vmem, size = 0x400, scoped, tag = 'input window, operand 23, single buffered']
    #allocation8 [shape = 'u8[512]{0}', space=vmem, size = 0x400, scoped, tag = 'input window, operand 24, single buffered']
    #allocation9 [shape = 's32[1]{0}', space=sflag, size = 0x4, scoped, tag = 'scoped memory for multimodal_grouping_block.1']
    #allocation10 [shape = 'u8[512]{0}', space=vmem, size = 0x400, scoped, tag = 'input window, operand 26, single buffered']
    #allocation11 [shape = 'u8[512]{0}', space=vmem, size = 0x400, scoped, tag = 'input window, operand 28, single buffered']
    #allocation12 [shape = 's32[1]{0}', space=sflag, size = 0x4, scoped, tag = 'scoped memory for multimodal_grouping_block.1']
    #allocation13 [shape = 'u8[512]{0}', space=vmem, size = 0x400, scoped, tag = 'input window, operand 29, single buffered']
    #allocation14 [shape = 'u8[512]{0}', space=vmem, size = 0x400, scoped, tag = 'input window, operand 30, single buffered']
    #allocation15 [shape = 's32[1]{0}', space=sflag, size = 0x4, scoped, tag = 'scoped memory for multimodal_grouping_block.1']
    #allocation16 [shape = 'u8[512]{0}', space=vmem, size = 0x400, scoped, tag = 'input window, operand 32, single buffered']
    #allocation17 [shape = 'u8[512]{0}', space=vmem, size = 0x400, scoped, tag = 'input window, operand 34, single buffered']
    #allocation18 [shape = 's32[1]{0}', space=sflag, size = 0x4, scoped, tag = 'scoped memory for multimodal_grouping_block.1']
    #allocation19 [shape = 'u8[512]{0}', space=vmem, size = 0x400, scoped, tag = 'input window, operand 35, single buffered']
    #allocation20 [shape = 'u8[512]{0}', space=vmem, size = 0x400, scoped, tag = 'input window, operand 36, single buffered']
    #allocation21 [shape = 's32[1]{0}', space=sflag, size = 0x4, scoped, tag = 'scoped memory for multimodal_grouping_block.1']
    #allocation22 [shape = 'u8[8192]{0}', space=vmem, size = 0x2000, scoped, tag = 'output window, operand 0']
    %80 = vsyncpa [#allocation3], 0
    %s81 = scalar_lea.sflag [#allocation3], 1
    %82 = vsyncpa %s81, 0
    %83 = vsyncpa [#allocation6], 0
    %s84 = scalar_lea.sflag [#allocation6], 1
    %85 = vsyncpa %s84, 0
    %86 = vsyncpa [#allocation9], 0
    %87 = vsyncpa [#allocation12], 0
    %88 = vsyncpa [#allocation15], 0
    %89 = vsyncpa [#allocation18], 0
    %90 = vsyncpa [#allocation21], 0
    %91 = vsyncpa [#allocation4], 0
    %s92 = scalar_lea.sflag [#allocation4], 1
    %93 = vsyncpa %s92, 0
    loop: start=0, step=1, limit=4
    $region2: #{multimodal_grouping_block.1} parent=1 // loop_pre_header
      _
    $region3: #{multimodal_grouping_block.1} parent=1 // loop_header
      %s95 = sphi 0, %s99
      %p96 = scmp.ge.s32.totalorder %s95, 4
      %s105 = sphi 0, %s107
      %s108 = sphi 0, %s105
      %s109 = sphi 0, %s108
      %s125 = sphi 0, %s109
      %s131 = sphi 0, %s133
      %s134 = sphi 0, %s131
      %s135 = sphi 0, %s134
      %s151 = sphi 0, %s135
      %s157 = sphi 0, %s159
      %s160 = sphi 0, %s157
      %s161 = sphi 0, %s160
      %s177 = sphi 0, %s161
      %s181 = sphi 0, %s181
      %s183 = sphi 0, %s181
      %s184 = sphi 0, %s183
      %s198 = sphi 0, %s184
      %s202 = sphi 0, %s202
      %s204 = sphi 0, %s202
      %s205 = sphi 0, %s204
      %s219 = sphi 0, %s205
      %s223 = sphi 0, %s223
      %s225 = sphi 0, %s223
      %s226 = sphi 0, %s225
      %s240 = sphi 0, %s226
      %s244 = sphi 0, %s244
      %s246 = sphi 0, %s244
      %s247 = sphi 0, %s246
      %s261 = sphi 0, %s247
      %s265 = sphi 0, %s265
      %s267 = sphi 0, %s265
      %s268 = sphi 0, %s267
      %s282 = sphi 0, %s268
      %s286 = sphi 0, %s286
      %s288 = sphi 0, %s286
      %s289 = sphi 0, %s288
      %s303 = sphi 0, %s289
      %s307 = sphi 0, %s307
      %s309 = sphi 0, %s307
      %s310 = sphi 0, %s309
      %s324 = sphi 0, %s310
      %s328 = sphi 0, %s328
      %s330 = sphi 0, %s328
      %s331 = sphi 0, %s330
      %s345 = sphi 0, %s331
      %s349 = sphi 0, %s349
      %s351 = sphi 0, %s349
      %s352 = sphi 0, %s351
      %s366 = sphi 0, %s352
      %s370 = sphi 0, %s370
      %s372 = sphi 0, %s370
      %s373 = sphi 0, %s372
      %s387 = sphi 0, %s373
      %s391 = sphi 0, %s391
      %s393 = sphi 0, %s391
      %s394 = sphi 0, %s393
      %s408 = sphi 0, %s394
      %s412 = sphi 0, %s412
      %s414 = sphi 0, %s412
      %s415 = sphi 0, %s414
      %s429 = sphi 0, %s415
      %s433 = sphi 0, %s433
      %s435 = sphi 0, %s433
      %s436 = sphi 0, %s435
      %s450 = sphi 0, %s436
      %s454 = sphi 0, %s454
      %s456 = sphi 0, %s454
      %s457 = sphi 0, %s456
      %s471 = sphi 0, %s457
      %s475 = sphi 0, %s475
      %s477 = sphi 0, %s475
      %s478 = sphi 0, %s477
      %s492 = sphi 0, %s478
      %s496 = sphi 0, %s496
      %s498 = sphi 0, %s496
      %s499 = sphi 0, %s498
      %s513 = sphi 0, %s499
      %s517 = sphi 0, %s517
      %s519 = sphi 0, %s517
      %s520 = sphi 0, %s519
      %s534 = sphi 0, %s520
      %s538 = sphi 0, %s538
      %s540 = sphi 0, %s538
      %s541 = sphi 0, %s540
      %s555 = sphi 0, %s541
      %s559 = sphi 0, %s559
      %s561 = sphi 0, %s559
      %s562 = sphi 0, %s561
      %s576 = sphi 0, %s562
      %s580 = sphi 0, %s580
      %s582 = sphi 0, %s580
      %s583 = sphi 0, %s582
      %s597 = sphi 0, %s583
      %s601 = sphi 0, %s601
      %s603 = sphi 0, %s601
      %s604 = sphi 0, %s603
      %s618 = sphi 0, %s604
      %s622 = sphi 0, %s622
      %s624 = sphi 0, %s622
      %s625 = sphi 0, %s624
      %s639 = sphi 0, %s625
      %s643 = sphi 0, %s643
      %s645 = sphi 0, %s643
      %s646 = sphi 0, %s645
      %s660 = sphi 0, %s646
      %s664 = sphi 0, %s664
      %s666 = sphi 0, %s664
      %s667 = sphi 0, %s666
      %s681 = sphi 0, %s667
      %s685 = sphi 0, %s685
      %s687 = sphi 0, %s685
      %s688 = sphi 0, %s687
      %s702 = sphi 0, %s688
      %s706 = sphi 0, %s706
      %s708 = sphi 0, %s706
      %s709 = sphi 0, %s708
      %s723 = sphi 0, %s709
      %s727 = sphi 0, %s727
      %s729 = sphi 0, %s727
      %s730 = sphi 0, %s729
      %s744 = sphi 0, %s730
      %s748 = sphi 0, %s748
      %s750 = sphi 0, %s748
      %s751 = sphi 0, %s750
      %s765 = sphi 0, %s751
      %s769 = sphi 0, %s769
      %s771 = sphi 0, %s769
      %s772 = sphi 0, %s771
      %s786 = sphi 0, %s772
      %s790 = sphi 0, %s790
      %s792 = sphi 0, %s790
      %s793 = sphi 0, %s792
      %s807 = sphi 0, %s793
      %s811 = sphi 0, %s811
      %s813 = sphi 0, %s811
      %s814 = sphi 0, %s813
      %s828 = sphi 0, %s814
      %s832 = sphi 0, %s832
      %s834 = sphi 0, %s832
      %s835 = sphi 0, %s834
      %s849 = sphi 0, %s835
      %s853 = sphi 0, %s853
      %s855 = sphi 0, %s853
      %s856 = sphi 0, %s855
      %s870 = sphi 0, %s856
      %s874 = sphi 0, %s874
      %s876 = sphi 0, %s874
      %s877 = sphi 0, %s876
      %s891 = sphi 0, %s877
      %s897 = sphi 0, %s899
      %s900 = sphi 0, %s897
      %s901 = sphi 0, %s900
      %s917 = sphi 0, %s901
    $region4: #{multimodal_grouping_block.1} parent=1 // loop_header_branch
      %98 = sbr.rel (%p96) target = $region8
    $region5: #{multimodal_grouping_block.1} parent=1 // loop_body
      %s100 = ssub.s32 %s95, 1
      %s101 = ssub.s32 %s95, 2
      %s102 = sadd.s32 %s95, 1
      %s103 = ssub.s32 %s95, %s102
      %p104 = scmp.eq.s32.totalorder %s103, 0
      %s106 = sadd.s32 %s105, 1
      %s107 = scalar_select %p104, %s105, %s106
      %p110 = pneg %p104
      %p111 = scmp.eq.s32.totalorder %s95, 1
      %p112 = por %p110, %p111
      %p113 = scmp.ne.s32.totalorder %s105, %s108
      %p114 = scmp.eq.s32.totalorder %s95, 0
      %p115 = por %p113, %p114
      %p116 = scmp.ne.s32.totalorder %s105, %s108
      %p117 = scmp.eq.s32.totalorder %s100, 1
      %p118 = por %p116, %p117
      %p119 = scmp.ne.s32.totalorder %s108, %s109
      %p120 = scmp.eq.s32.totalorder %s100, 0
      %p121 = por %p119, %p120
      %p122 = scmp.ne.s32.totalorder %s108, %s109
      %p123 = scmp.eq.s32.totalorder %s101, 1
      %p124 = por %p122, %p123
      %p126 = scmp.ne.s32.totalorder %s109, %s125
      %p127 = scmp.eq.s32.totalorder %s101, 0
      %p128 = por %p126, %p127
      %s129 = ssub.s32 %s95, %s102
      %p130 = scmp.eq.s32.totalorder %s129, 0
      %s132 = sadd.s32 %s131, 1
      %s133 = scalar_select %p130, %s131, %s132
      %p136 = pneg %p130
      %p137 = scmp.eq.s32.totalorder %s95, 1
      %p138 = por %p136, %p137
      %p139 = scmp.ne.s32.totalorder %s131, %s134
      %p140 = scmp.eq.s32.totalorder %s95, 0
      %p141 = por %p139, %p140
      %p142 = scmp.ne.s32.totalorder %s131, %s134
      %p143 = scmp.eq.s32.totalorder %s100, 1
      %p144 = por %p142, %p143
      %p145 = scmp.ne.s32.totalorder %s134, %s135
      %p146 = scmp.eq.s32.totalorder %s100, 0
      %p147 = por %p145, %p146
      %p148 = scmp.ne.s32.totalorder %s134, %s135
      %p149 = scmp.eq.s32.totalorder %s101, 1
      %p150 = por %p148, %p149
      %p152 = scmp.ne.s32.totalorder %s135, %s151
      %p153 = scmp.eq.s32.totalorder %s101, 0
      %p154 = por %p152, %p153
      %s155 = ssub.s32 %s95, %s102
      %p156 = scmp.eq.s32.totalorder %s155, 0
      %s158 = sadd.s32 %s157, 1
      %s159 = scalar_select %p156, %s157, %s158
      %p162 = pneg %p156
      %p163 = scmp.eq.s32.totalorder %s95, 1
      %p164 = por %p162, %p163
      %p165 = scmp.ne.s32.totalorder %s157, %s160
      %p166 = scmp.eq.s32.totalorder %s95, 0
      %p167 = por %p165, %p166
      %p168 = scmp.ne.s32.totalorder %s157, %s160
      %p169 = scmp.eq.s32.totalorder %s100, 1
      %p170 = por %p168, %p169
      %p171 = scmp.ne.s32.totalorder %s160, %s161
      %p172 = scmp.eq.s32.totalorder %s100, 0
      %p173 = por %p171, %p172
      %p174 = scmp.ne.s32.totalorder %s160, %s161
      %p175 = scmp.eq.s32.totalorder %s101, 1
      %p176 = por %p174, %p175
      %p178 = scmp.ne.s32.totalorder %s161, %s177
      %p179 = scmp.eq.s32.totalorder %s101, 0
      %p180 = por %p178, %p179
      %s182 = sadd.s32 %s181, 1
      %p185 = scmp.eq.s32.totalorder %s95, 1
      %p186 = scmp.ne.s32.totalorder %s181, %s183
      %p187 = scmp.eq.s32.totalorder %s95, 0
      %p188 = por %p186, %p187
      %p189 = scmp.ne.s32.totalorder %s181, %s183
      %p190 = scmp.eq.s32.totalorder %s100, 1
      %p191 = por %p189, %p190
      %p192 = scmp.ne.s32.totalorder %s183, %s184
      %p193 = scmp.eq.s32.totalorder %s100, 0
      %p194 = por %p192, %p193
      %p195 = scmp.ne.s32.totalorder %s183, %s184
      %p196 = scmp.eq.s32.totalorder %s101, 1
      %p197 = por %p195, %p196
      %p199 = scmp.ne.s32.totalorder %s184, %s198
      %p200 = scmp.eq.s32.totalorder %s101, 0
      %p201 = por %p199, %p200
      %s203 = sadd.s32 %s202, 1
      %p206 = scmp.eq.s32.totalorder %s95, 1
      %p207 = scmp.ne.s32.totalorder %s202, %s204
      %p208 = scmp.eq.s32.totalorder %s95, 0
      %p209 = por %p207, %p208
      %p210 = scmp.ne.s32.totalorder %s202, %s204
      %p211 = scmp.eq.s32.totalorder %s100, 1
      %p212 = por %p210, %p211
      %p213 = scmp.ne.s32.totalorder %s204, %s205
      %p214 = scmp.eq.s32.totalorder %s100, 0
      %p215 = por %p213, %p214
      %p216 = scmp.ne.s32.totalorder %s204, %s205
      %p217 = scmp.eq.s32.totalorder %s101, 1
      %p218 = por %p216, %p217
      %p220 = scmp.ne.s32.totalorder %s205, %s219
      %p221 = scmp.eq.s32.totalorder %s101, 0
      %p222 = por %p220, %p221
      %s224 = sadd.s32 %s223, 1
      %p227 = scmp.eq.s32.totalorder %s95, 1
      %p228 = scmp.ne.s32.totalorder %s223, %s225
      %p229 = scmp.eq.s32.totalorder %s95, 0
      %p230 = por %p228, %p229
      %p231 = scmp.ne.s32.totalorder %s223, %s225
      %p232 = scmp.eq.s32.totalorder %s100, 1
      %p233 = por %p231, %p232
      %p234 = scmp.ne.s32.totalorder %s225, %s226
      %p235 = scmp.eq.s32.totalorder %s100, 0
      %p236 = por %p234, %p235
      %p237 = scmp.ne.s32.totalorder %s225, %s226
      %p238 = scmp.eq.s32.totalorder %s101, 1
      %p239 = por %p237, %p238
      %p241 = scmp.ne.s32.totalorder %s226, %s240
      %p242 = scmp.eq.s32.totalorder %s101, 0
      %p243 = por %p241, %p242
      %s245 = sadd.s32 %s244, 1
      %p248 = scmp.eq.s32.totalorder %s95, 1
      %p249 = scmp.ne.s32.totalorder %s244, %s246
      %p250 = scmp.eq.s32.totalorder %s95, 0
      %p251 = por %p249, %p250
      %p252 = scmp.ne.s32.totalorder %s244, %s246
      %p253 = scmp.eq.s32.totalorder %s100, 1
      %p254 = por %p252, %p253
      %p255 = scmp.ne.s32.totalorder %s246, %s247
      %p256 = scmp.eq.s32.totalorder %s100, 0
      %p257 = por %p255, %p256
      %p258 = scmp.ne.s32.totalorder %s246, %s247
      %p259 = scmp.eq.s32.totalorder %s101, 1
      %p260 = por %p258, %p259
      %p262 = scmp.ne.s32.totalorder %s247, %s261
      %p263 = scmp.eq.s32.totalorder %s101, 0
      %p264 = por %p262, %p263
      %s266 = sadd.s32 %s265, 1
      %p269 = scmp.eq.s32.totalorder %s95, 1
      %p270 = scmp.ne.s32.totalorder %s265, %s267
      %p271 = scmp.eq.s32.totalorder %s95, 0
      %p272 = por %p270, %p271
      %p273 = scmp.ne.s32.totalorder %s265, %s267
      %p274 = scmp.eq.s32.totalorder %s100, 1
      %p275 = por %p273, %p274
      %p276 = scmp.ne.s32.totalorder %s267, %s268
      %p277 = scmp.eq.s32.totalorder %s100, 0
      %p278 = por %p276, %p277
      %p279 = scmp.ne.s32.totalorder %s267, %s268
      %p280 = scmp.eq.s32.totalorder %s101, 1
      %p281 = por %p279, %p280
      %p283 = scmp.ne.s32.totalorder %s268, %s282
      %p284 = scmp.eq.s32.totalorder %s101, 0
      %p285 = por %p283, %p284
      %s287 = sadd.s32 %s286, 1
      %p290 = scmp.eq.s32.totalorder %s95, 1
      %p291 = scmp.ne.s32.totalorder %s286, %s288
      %p292 = scmp.eq.s32.totalorder %s95, 0
      %p293 = por %p291, %p292
      %p294 = scmp.ne.s32.totalorder %s286, %s288
      %p295 = scmp.eq.s32.totalorder %s100, 1
      %p296 = por %p294, %p295
      %p297 = scmp.ne.s32.totalorder %s288, %s289
      %p298 = scmp.eq.s32.totalorder %s100, 0
      %p299 = por %p297, %p298
      %p300 = scmp.ne.s32.totalorder %s288, %s289
      %p301 = scmp.eq.s32.totalorder %s101, 1
      %p302 = por %p300, %p301
      %p304 = scmp.ne.s32.totalorder %s289, %s303
      %p305 = scmp.eq.s32.totalorder %s101, 0
      %p306 = por %p304, %p305
      %s308 = sadd.s32 %s307, 1
      %p311 = scmp.eq.s32.totalorder %s95, 1
      %p312 = scmp.ne.s32.totalorder %s307, %s309
      %p313 = scmp.eq.s32.totalorder %s95, 0
      %p314 = por %p312, %p313
      %p315 = scmp.ne.s32.totalorder %s307, %s309
      %p316 = scmp.eq.s32.totalorder %s100, 1
      %p317 = por %p315, %p316
      %p318 = scmp.ne.s32.totalorder %s309, %s310
      %p319 = scmp.eq.s32.totalorder %s100, 0
      %p320 = por %p318, %p319
      %p321 = scmp.ne.s32.totalorder %s309, %s310
      %p322 = scmp.eq.s32.totalorder %s101, 1
      %p323 = por %p321, %p322
      %p325 = scmp.ne.s32.totalorder %s310, %s324
      %p326 = scmp.eq.s32.totalorder %s101, 0
      %p327 = por %p325, %p326
      %s329 = sadd.s32 %s328, 1
      %p332 = scmp.eq.s32.totalorder %s95, 1
      %p333 = scmp.ne.s32.totalorder %s328, %s330
      %p334 = scmp.eq.s32.totalorder %s95, 0
      %p335 = por %p333, %p334
      %p336 = scmp.ne.s32.totalorder %s328, %s330
      %p337 = scmp.eq.s32.totalorder %s100, 1
      %p338 = por %p336, %p337
      %p339 = scmp.ne.s32.totalorder %s330, %s331
      %p340 = scmp.eq.s32.totalorder %s100, 0
      %p341 = por %p339, %p340
      %p342 = scmp.ne.s32.totalorder %s330, %s331
      %p343 = scmp.eq.s32.totalorder %s101, 1
      %p344 = por %p342, %p343
      %p346 = scmp.ne.s32.totalorder %s331, %s345
      %p347 = scmp.eq.s32.totalorder %s101, 0
      %p348 = por %p346, %p347
      %s350 = sadd.s32 %s349, 1
      %p353 = scmp.eq.s32.totalorder %s95, 1
      %p354 = scmp.ne.s32.totalorder %s349, %s351
      %p355 = scmp.eq.s32.totalorder %s95, 0
      %p356 = por %p354, %p355
      %p357 = scmp.ne.s32.totalorder %s349, %s351
      %p358 = scmp.eq.s32.totalorder %s100, 1
      %p359 = por %p357, %p358
      %p360 = scmp.ne.s32.totalorder %s351, %s352
      %p361 = scmp.eq.s32.totalorder %s100, 0
      %p362 = por %p360, %p361
      %p363 = scmp.ne.s32.totalorder %s351, %s352
      %p364 = scmp.eq.s32.totalorder %s101, 1
      %p365 = por %p363, %p364
      %p367 = scmp.ne.s32.totalorder %s352, %s366
      %p368 = scmp.eq.s32.totalorder %s101, 0
      %p369 = por %p367, %p368
      %s371 = sadd.s32 %s370, 1
      %p374 = scmp.eq.s32.totalorder %s95, 1
      %p375 = scmp.ne.s32.totalorder %s370, %s372
      %p376 = scmp.eq.s32.totalorder %s95, 0
      %p377 = por %p375, %p376
      %p378 = scmp.ne.s32.totalorder %s370, %s372
      %p379 = scmp.eq.s32.totalorder %s100, 1
      %p380 = por %p378, %p379
      %p381 = scmp.ne.s32.totalorder %s372, %s373
      %p382 = scmp.eq.s32.totalorder %s100, 0
      %p383 = por %p381, %p382
      %p384 = scmp.ne.s32.totalorder %s372, %s373
      %p385 = scmp.eq.s32.totalorder %s101, 1
      %p386 = por %p384, %p385
      %p388 = scmp.ne.s32.totalorder %s373, %s387
      %p389 = scmp.eq.s32.totalorder %s101, 0
      %p390 = por %p388, %p389
      %s392 = sadd.s32 %s391, 1
      %p395 = scmp.eq.s32.totalorder %s95, 1
      %p396 = scmp.ne.s32.totalorder %s391, %s393
      %p397 = scmp.eq.s32.totalorder %s95, 0
      %p398 = por %p396, %p397
      %p399 = scmp.ne.s32.totalorder %s391, %s393
      %p400 = scmp.eq.s32.totalorder %s100, 1
      %p401 = por %p399, %p400
      %p402 = scmp.ne.s32.totalorder %s393, %s394
      %p403 = scmp.eq.s32.totalorder %s100, 0
      %p404 = por %p402, %p403
      %p405 = scmp.ne.s32.totalorder %s393, %s394
      %p406 = scmp.eq.s32.totalorder %s101, 1
      %p407 = por %p405, %p406
      %p409 = scmp.ne.s32.totalorder %s394, %s408
      %p410 = scmp.eq.s32.totalorder %s101, 0
      %p411 = por %p409, %p410
      %s413 = sadd.s32 %s412, 1
      %p416 = scmp.eq.s32.totalorder %s95, 1
      %p417 = scmp.ne.s32.totalorder %s412, %s414
      %p418 = scmp.eq.s32.totalorder %s95, 0
      %p419 = por %p417, %p418
      %p420 = scmp.ne.s32.totalorder %s412, %s414
      %p421 = scmp.eq.s32.totalorder %s100, 1
      %p422 = por %p420, %p421
      %p423 = scmp.ne.s32.totalorder %s414, %s415
      %p424 = scmp.eq.s32.totalorder %s100, 0
      %p425 = por %p423, %p424
      %p426 = scmp.ne.s32.totalorder %s414, %s415
      %p427 = scmp.eq.s32.totalorder %s101, 1
      %p428 = por %p426, %p427
      %p430 = scmp.ne.s32.totalorder %s415, %s429
      %p431 = scmp.eq.s32.totalorder %s101, 0
      %p432 = por %p430, %p431
      %s434 = sadd.s32 %s433, 1
      %p437 = scmp.eq.s32.totalorder %s95, 1
      %p438 = scmp.ne.s32.totalorder %s433, %s435
      %p439 = scmp.eq.s32.totalorder %s95, 0
      %p440 = por %p438, %p439
      %p441 = scmp.ne.s32.totalorder %s433, %s435
      %p442 = scmp.eq.s32.totalorder %s100, 1
      %p443 = por %p441, %p442
      %p444 = scmp.ne.s32.totalorder %s435, %s436
      %p445 = scmp.eq.s32.totalorder %s100, 0
      %p446 = por %p444, %p445
      %p447 = scmp.ne.s32.totalorder %s435, %s436
      %p448 = scmp.eq.s32.totalorder %s101, 1
      %p449 = por %p447, %p448
      %p451 = scmp.ne.s32.totalorder %s436, %s450
      %p452 = scmp.eq.s32.totalorder %s101, 0
      %p453 = por %p451, %p452
      %s455 = sadd.s32 %s454, 1
      %p458 = scmp.eq.s32.totalorder %s95, 1
      %p459 = scmp.ne.s32.totalorder %s454, %s456
      %p460 = scmp.eq.s32.totalorder %s95, 0
      %p461 = por %p459, %p460
      %p462 = scmp.ne.s32.totalorder %s454, %s456
      %p463 = scmp.eq.s32.totalorder %s100, 1
      %p464 = por %p462, %p463
      %p465 = scmp.ne.s32.totalorder %s456, %s457
      %p466 = scmp.eq.s32.totalorder %s100, 0
      %p467 = por %p465, %p466
      %p468 = scmp.ne.s32.totalorder %s456, %s457
      %p469 = scmp.eq.s32.totalorder %s101, 1
      %p470 = por %p468, %p469
      %p472 = scmp.ne.s32.totalorder %s457, %s471
      %p473 = scmp.eq.s32.totalorder %s101, 0
      %p474 = por %p472, %p473
      %s476 = sadd.s32 %s475, 1
      %p479 = scmp.eq.s32.totalorder %s95, 1
      %p480 = scmp.ne.s32.totalorder %s475, %s477
      %p481 = scmp.eq.s32.totalorder %s95, 0
      %p482 = por %p480, %p481
      %p483 = scmp.ne.s32.totalorder %s475, %s477
      %p484 = scmp.eq.s32.totalorder %s100, 1
      %p485 = por %p483, %p484
      %p486 = scmp.ne.s32.totalorder %s477, %s478
      %p487 = scmp.eq.s32.totalorder %s100, 0
      %p488 = por %p486, %p487
      %p489 = scmp.ne.s32.totalorder %s477, %s478
      %p490 = scmp.eq.s32.totalorder %s101, 1
      %p491 = por %p489, %p490
      %p493 = scmp.ne.s32.totalorder %s478, %s492
      %p494 = scmp.eq.s32.totalorder %s101, 0
      %p495 = por %p493, %p494
      %s497 = sadd.s32 %s496, 1
      %p500 = scmp.eq.s32.totalorder %s95, 1
      %p501 = scmp.ne.s32.totalorder %s496, %s498
      %p502 = scmp.eq.s32.totalorder %s95, 0
      %p503 = por %p501, %p502
      %p504 = scmp.ne.s32.totalorder %s496, %s498
      %p505 = scmp.eq.s32.totalorder %s100, 1
      %p506 = por %p504, %p505
      %p507 = scmp.ne.s32.totalorder %s498, %s499
      %p508 = scmp.eq.s32.totalorder %s100, 0
      %p509 = por %p507, %p508
      %p510 = scmp.ne.s32.totalorder %s498, %s499
      %p511 = scmp.eq.s32.totalorder %s101, 1
      %p512 = por %p510, %p511
      %p514 = scmp.ne.s32.totalorder %s499, %s513
      %p515 = scmp.eq.s32.totalorder %s101, 0
      %p516 = por %p514, %p515
      %s518 = sadd.s32 %s517, 1
      %p521 = scmp.eq.s32.totalorder %s95, 1
      %p522 = scmp.ne.s32.totalorder %s517, %s519
      %p523 = scmp.eq.s32.totalorder %s95, 0
      %p524 = por %p522, %p523
      %p525 = scmp.ne.s32.totalorder %s517, %s519
      %p526 = scmp.eq.s32.totalorder %s100, 1
      %p527 = por %p525, %p526
      %p528 = scmp.ne.s32.totalorder %s519, %s520
      %p529 = scmp.eq.s32.totalorder %s100, 0
      %p530 = por %p528, %p529
      %p531 = scmp.ne.s32.totalorder %s519, %s520
      %p532 = scmp.eq.s32.totalorder %s101, 1
      %p533 = por %p531, %p532
      %p535 = scmp.ne.s32.totalorder %s520, %s534
      %p536 = scmp.eq.s32.totalorder %s101, 0
      %p537 = por %p535, %p536
      %s539 = sadd.s32 %s538, 1
      %p542 = scmp.eq.s32.totalorder %s95, 1
      %p543 = scmp.ne.s32.totalorder %s538, %s540
      %p544 = scmp.eq.s32.totalorder %s95, 0
      %p545 = por %p543, %p544
      %p546 = scmp.ne.s32.totalorder %s538, %s540
      %p547 = scmp.eq.s32.totalorder %s100, 1
      %p548 = por %p546, %p547
      %p549 = scmp.ne.s32.totalorder %s540, %s541
      %p550 = scmp.eq.s32.totalorder %s100, 0
      %p551 = por %p549, %p550
      %p552 = scmp.ne.s32.totalorder %s540, %s541
      %p553 = scmp.eq.s32.totalorder %s101, 1
      %p554 = por %p552, %p553
      %p556 = scmp.ne.s32.totalorder %s541, %s555
      %p557 = scmp.eq.s32.totalorder %s101, 0
      %p558 = por %p556, %p557
      %s560 = sadd.s32 %s559, 1
      %p563 = scmp.eq.s32.totalorder %s95, 1
      %p564 = scmp.ne.s32.totalorder %s559, %s561
      %p565 = scmp.eq.s32.totalorder %s95, 0
      %p566 = por %p564, %p565
      %p567 = scmp.ne.s32.totalorder %s559, %s561
      %p568 = scmp.eq.s32.totalorder %s100, 1
      %p569 = por %p567, %p568
      %p570 = scmp.ne.s32.totalorder %s561, %s562
      %p571 = scmp.eq.s32.totalorder %s100, 0
      %p572 = por %p570, %p571
      %p573 = scmp.ne.s32.totalorder %s561, %s562
      %p574 = scmp.eq.s32.totalorder %s101, 1
      %p575 = por %p573, %p574
      %p577 = scmp.ne.s32.totalorder %s562, %s576
      %p578 = scmp.eq.s32.totalorder %s101, 0
      %p579 = por %p577, %p578
      %s581 = sadd.s32 %s580, 1
      %p584 = scmp.eq.s32.totalorder %s95, 1
      %p585 = scmp.ne.s32.totalorder %s580, %s582
      %p586 = scmp.eq.s32.totalorder %s95, 0
      %p587 = por %p585, %p586
      %p588 = scmp.ne.s32.totalorder %s580, %s582
      %p589 = scmp.eq.s32.totalorder %s100, 1
      %p590 = por %p588, %p589
      %p591 = scmp.ne.s32.totalorder %s582, %s583
      %p592 = scmp.eq.s32.totalorder %s100, 0
      %p593 = por %p591, %p592
      %p594 = scmp.ne.s32.totalorder %s582, %s583
      %p595 = scmp.eq.s32.totalorder %s101, 1
      %p596 = por %p594, %p595
      %p598 = scmp.ne.s32.totalorder %s583, %s597
      %p599 = scmp.eq.s32.totalorder %s101, 0
      %p600 = por %p598, %p599
      %s602 = sadd.s32 %s601, 1
      %p605 = scmp.eq.s32.totalorder %s95, 1
      %p606 = scmp.ne.s32.totalorder %s601, %s603
      %p607 = scmp.eq.s32.totalorder %s95, 0
      %p608 = por %p606, %p607
      %p609 = scmp.ne.s32.totalorder %s601, %s603
      %p610 = scmp.eq.s32.totalorder %s100, 1
      %p611 = por %p609, %p610
      %p612 = scmp.ne.s32.totalorder %s603, %s604
      %p613 = scmp.eq.s32.totalorder %s100, 0
      %p614 = por %p612, %p613
      %p615 = scmp.ne.s32.totalorder %s603, %s604
      %p616 = scmp.eq.s32.totalorder %s101, 1
      %p617 = por %p615, %p616
      %p619 = scmp.ne.s32.totalorder %s604, %s618
      %p620 = scmp.eq.s32.totalorder %s101, 0
      %p621 = por %p619, %p620
      %s623 = sadd.s32 %s622, 1
      %p626 = scmp.eq.s32.totalorder %s95, 1
      %p627 = scmp.ne.s32.totalorder %s622, %s624
      %p628 = scmp.eq.s32.totalorder %s95, 0
      %p629 = por %p627, %p628
      %p630 = scmp.ne.s32.totalorder %s622, %s624
      %p631 = scmp.eq.s32.totalorder %s100, 1
      %p632 = por %p630, %p631
      %p633 = scmp.ne.s32.totalorder %s624, %s625
      %p634 = scmp.eq.s32.totalorder %s100, 0
      %p635 = por %p633, %p634
      %p636 = scmp.ne.s32.totalorder %s624, %s625
      %p637 = scmp.eq.s32.totalorder %s101, 1
      %p638 = por %p636, %p637
      %p640 = scmp.ne.s32.totalorder %s625, %s639
      %p641 = scmp.eq.s32.totalorder %s101, 0
      %p642 = por %p640, %p641
      %s644 = sadd.s32 %s643, 1
      %p647 = scmp.eq.s32.totalorder %s95, 1
      %p648 = scmp.ne.s32.totalorder %s643, %s645
      %p649 = scmp.eq.s32.totalorder %s95, 0
      %p650 = por %p648, %p649
      %p651 = scmp.ne.s32.totalorder %s643, %s645
      %p652 = scmp.eq.s32.totalorder %s100, 1
      %p653 = por %p651, %p652
      %p654 = scmp.ne.s32.totalorder %s645, %s646
      %p655 = scmp.eq.s32.totalorder %s100, 0
      %p656 = por %p654, %p655
      %p657 = scmp.ne.s32.totalorder %s645, %s646
      %p658 = scmp.eq.s32.totalorder %s101, 1
      %p659 = por %p657, %p658
      %p661 = scmp.ne.s32.totalorder %s646, %s660
      %p662 = scmp.eq.s32.totalorder %s101, 0
      %p663 = por %p661, %p662
      %s665 = sadd.s32 %s664, 1
      %p668 = scmp.eq.s32.totalorder %s95, 1
      %p669 = scmp.ne.s32.totalorder %s664, %s666
      %p670 = scmp.eq.s32.totalorder %s95, 0
      %p671 = por %p669, %p670
      %p672 = scmp.ne.s32.totalorder %s664, %s666
      %p673 = scmp.eq.s32.totalorder %s100, 1
      %p674 = por %p672, %p673
      %p675 = scmp.ne.s32.totalorder %s666, %s667
      %p676 = scmp.eq.s32.totalorder %s100, 0
      %p677 = por %p675, %p676
      %p678 = scmp.ne.s32.totalorder %s666, %s667
      %p679 = scmp.eq.s32.totalorder %s101, 1
      %p680 = por %p678, %p679
      %p682 = scmp.ne.s32.totalorder %s667, %s681
      %p683 = scmp.eq.s32.totalorder %s101, 0
      %p684 = por %p682, %p683
      %s686 = sadd.s32 %s685, 1
      %p689 = scmp.eq.s32.totalorder %s95, 1
      %p690 = scmp.ne.s32.totalorder %s685, %s687
      %p691 = scmp.eq.s32.totalorder %s95, 0
      %p692 = por %p690, %p691
      %p693 = scmp.ne.s32.totalorder %s685, %s687
      %p694 = scmp.eq.s32.totalorder %s100, 1
      %p695 = por %p693, %p694
      %p696 = scmp.ne.s32.totalorder %s687, %s688
      %p697 = scmp.eq.s32.totalorder %s100, 0
      %p698 = por %p696, %p697
      %p699 = scmp.ne.s32.totalorder %s687, %s688
      %p700 = scmp.eq.s32.totalorder %s101, 1
      %p701 = por %p699, %p700
      %p703 = scmp.ne.s32.totalorder %s688, %s702
      %p704 = scmp.eq.s32.totalorder %s101, 0
      %p705 = por %p703, %p704
      %s707 = sadd.s32 %s706, 1
      %p710 = scmp.eq.s32.totalorder %s95, 1
      %p711 = scmp.ne.s32.totalorder %s706, %s708
      %p712 = scmp.eq.s32.totalorder %s95, 0
      %p713 = por %p711, %p712
      %p714 = scmp.ne.s32.totalorder %s706, %s708
      %p715 = scmp.eq.s32.totalorder %s100, 1
      %p716 = por %p714, %p715
      %p717 = scmp.ne.s32.totalorder %s708, %s709
      %p718 = scmp.eq.s32.totalorder %s100, 0
      %p719 = por %p717, %p718
      %p720 = scmp.ne.s32.totalorder %s708, %s709
      %p721 = scmp.eq.s32.totalorder %s101, 1
      %p722 = por %p720, %p721
      %p724 = scmp.ne.s32.totalorder %s709, %s723
      %p725 = scmp.eq.s32.totalorder %s101, 0
      %p726 = por %p724, %p725
      %s728 = sadd.s32 %s727, 1
      %p731 = scmp.eq.s32.totalorder %s95, 1
      %p732 = scmp.ne.s32.totalorder %s727, %s729
      %p733 = scmp.eq.s32.totalorder %s95, 0
      %p734 = por %p732, %p733
      %p735 = scmp.ne.s32.totalorder %s727, %s729
      %p736 = scmp.eq.s32.totalorder %s100, 1
      %p737 = por %p735, %p736
      %p738 = scmp.ne.s32.totalorder %s729, %s730
      %p739 = scmp.eq.s32.totalorder %s100, 0
      %p740 = por %p738, %p739
      %p741 = scmp.ne.s32.totalorder %s729, %s730
      %p742 = scmp.eq.s32.totalorder %s101, 1
      %p743 = por %p741, %p742
      %p745 = scmp.ne.s32.totalorder %s730, %s744
      %p746 = scmp.eq.s32.totalorder %s101, 0
      %p747 = por %p745, %p746
      %s749 = sadd.s32 %s748, 1
      %p752 = scmp.eq.s32.totalorder %s95, 1
      %p753 = scmp.ne.s32.totalorder %s748, %s750
      %p754 = scmp.eq.s32.totalorder %s95, 0
      %p755 = por %p753, %p754
      %p756 = scmp.ne.s32.totalorder %s748, %s750
      %p757 = scmp.eq.s32.totalorder %s100, 1
      %p758 = por %p756, %p757
      %p759 = scmp.ne.s32.totalorder %s750, %s751
      %p760 = scmp.eq.s32.totalorder %s100, 0
      %p761 = por %p759, %p760
      %p762 = scmp.ne.s32.totalorder %s750, %s751
      %p763 = scmp.eq.s32.totalorder %s101, 1
      %p764 = por %p762, %p763
      %p766 = scmp.ne.s32.totalorder %s751, %s765
      %p767 = scmp.eq.s32.totalorder %s101, 0
      %p768 = por %p766, %p767
      %s770 = sadd.s32 %s769, 1
      %p773 = scmp.eq.s32.totalorder %s95, 1
      %p774 = scmp.ne.s32.totalorder %s769, %s771
      %p775 = scmp.eq.s32.totalorder %s95, 0
      %p776 = por %p774, %p775
      %p777 = scmp.ne.s32.totalorder %s769, %s771
      %p778 = scmp.eq.s32.totalorder %s100, 1
      %p779 = por %p777, %p778
      %p780 = scmp.ne.s32.totalorder %s771, %s772
      %p781 = scmp.eq.s32.totalorder %s100, 0
      %p782 = por %p780, %p781
      %p783 = scmp.ne.s32.totalorder %s771, %s772
      %p784 = scmp.eq.s32.totalorder %s101, 1
      %p785 = por %p783, %p784
      %p787 = scmp.ne.s32.totalorder %s772, %s786
      %p788 = scmp.eq.s32.totalorder %s101, 0
      %p789 = por %p787, %p788
      %s791 = sadd.s32 %s790, 1
      %p794 = scmp.eq.s32.totalorder %s95, 1
      %p795 = scmp.ne.s32.totalorder %s790, %s792
      %p796 = scmp.eq.s32.totalorder %s95, 0
      %p797 = por %p795, %p796
      %p798 = scmp.ne.s32.totalorder %s790, %s792
      %p799 = scmp.eq.s32.totalorder %s100, 1
      %p800 = por %p798, %p799
      %p801 = scmp.ne.s32.totalorder %s792, %s793
      %p802 = scmp.eq.s32.totalorder %s100, 0
      %p803 = por %p801, %p802
      %p804 = scmp.ne.s32.totalorder %s792, %s793
      %p805 = scmp.eq.s32.totalorder %s101, 1
      %p806 = por %p804, %p805
      %p808 = scmp.ne.s32.totalorder %s793, %s807
      %p809 = scmp.eq.s32.totalorder %s101, 0
      %p810 = por %p808, %p809
      %s812 = sadd.s32 %s811, 1
      %p815 = scmp.eq.s32.totalorder %s95, 1
      %p816 = scmp.ne.s32.totalorder %s811, %s813
      %p817 = scmp.eq.s32.totalorder %s95, 0
      %p818 = por %p816, %p817
      %p819 = scmp.ne.s32.totalorder %s811, %s813
      %p820 = scmp.eq.s32.totalorder %s100, 1
      %p821 = por %p819, %p820
      %p822 = scmp.ne.s32.totalorder %s813, %s814
      %p823 = scmp.eq.s32.totalorder %s100, 0
      %p824 = por %p822, %p823
      %p825 = scmp.ne.s32.totalorder %s813, %s814
      %p826 = scmp.eq.s32.totalorder %s101, 1
      %p827 = por %p825, %p826
      %p829 = scmp.ne.s32.totalorder %s814, %s828
      %p830 = scmp.eq.s32.totalorder %s101, 0
      %p831 = por %p829, %p830
      %s833 = sadd.s32 %s832, 1
      %p836 = scmp.eq.s32.totalorder %s95, 1
      %p837 = scmp.ne.s32.totalorder %s832, %s834
      %p838 = scmp.eq.s32.totalorder %s95, 0
      %p839 = por %p837, %p838
      %p840 = scmp.ne.s32.totalorder %s832, %s834
      %p841 = scmp.eq.s32.totalorder %s100, 1
      %p842 = por %p840, %p841
      %p843 = scmp.ne.s32.totalorder %s834, %s835
      %p844 = scmp.eq.s32.totalorder %s100, 0
      %p845 = por %p843, %p844
      %p846 = scmp.ne.s32.totalorder %s834, %s835
      %p847 = scmp.eq.s32.totalorder %s101, 1
      %p848 = por %p846, %p847
      %p850 = scmp.ne.s32.totalorder %s835, %s849
      %p851 = scmp.eq.s32.totalorder %s101, 0
      %p852 = por %p850, %p851
      %s854 = sadd.s32 %s853, 1
      %p857 = scmp.eq.s32.totalorder %s95, 1
      %p858 = scmp.ne.s32.totalorder %s853, %s855
      %p859 = scmp.eq.s32.totalorder %s95, 0
      %p860 = por %p858, %p859
      %p861 = scmp.ne.s32.totalorder %s853, %s855
      %p862 = scmp.eq.s32.totalorder %s100, 1
      %p863 = por %p861, %p862
      %p864 = scmp.ne.s32.totalorder %s855, %s856
      %p865 = scmp.eq.s32.totalorder %s100, 0
      %p866 = por %p864, %p865
      %p867 = scmp.ne.s32.totalorder %s855, %s856
      %p868 = scmp.eq.s32.totalorder %s101, 1
      %p869 = por %p867, %p868
      %p871 = scmp.ne.s32.totalorder %s856, %s870
      %p872 = scmp.eq.s32.totalorder %s101, 0
      %p873 = por %p871, %p872
      %s875 = sadd.s32 %s874, 1
      %p878 = scmp.eq.s32.totalorder %s95, 1
      %p879 = scmp.ne.s32.totalorder %s874, %s876
      %p880 = scmp.eq.s32.totalorder %s95, 0
      %p881 = por %p879, %p880
      %p882 = scmp.ne.s32.totalorder %s874, %s876
      %p883 = scmp.eq.s32.totalorder %s100, 1
      %p884 = por %p882, %p883
      %p885 = scmp.ne.s32.totalorder %s876, %s877
      %p886 = scmp.eq.s32.totalorder %s100, 0
      %p887 = por %p885, %p886
      %p888 = scmp.ne.s32.totalorder %s876, %s877
      %p889 = scmp.eq.s32.totalorder %s101, 1
      %p890 = por %p888, %p889
      %p892 = scmp.ne.s32.totalorder %s877, %s891
      %p893 = scmp.eq.s32.totalorder %s101, 0
      %p894 = por %p892, %p893
      %s895 = ssub.s32 %s95, %s102
      %p896 = scmp.eq.s32.totalorder %s895, 0
      %s898 = sadd.s32 %s897, 1
      %s899 = scalar_select %p896, %s897, %s898
      %p902 = pneg %p896
      %p903 = scmp.eq.s32.totalorder %s95, 1
      %p904 = por %p902, %p903
      %p905 = scmp.ne.s32.totalorder %s897, %s900
      %p906 = scmp.eq.s32.totalorder %s95, 0
      %p907 = por %p905, %p906
      %p908 = scmp.ne.s32.totalorder %s897, %s900
      %p909 = scmp.eq.s32.totalorder %s100, 1
      %p910 = por %p908, %p909
      %p911 = scmp.ne.s32.totalorder %s900, %s901
      %p912 = scmp.eq.s32.totalorder %s100, 0
      %p913 = por %p911, %p912
      %p914 = scmp.ne.s32.totalorder %s900, %s901
      %p915 = scmp.eq.s32.totalorder %s101, 1
      %p916 = por %p914, %p915
      %p918 = scmp.ne.s32.totalorder %s901, %s917
      %p919 = scmp.eq.s32.totalorder %s101, 0
      %p920 = por %p918, %p919
      %p921 = scmp.le.s32.totalorder 1, %s95
      %p922 = scmp.lt.s32.totalorder %s95, 3
      %p923 = pnand %p921, %p922
      %p924 = pneg %p923
      // Predicated region
      $region9: #{multimodal_grouping_block.1} parent=5 // pred_check
        _
      $region10: #{multimodal_grouping_block.1} parent=5 // pred_check_branch
        %926 = sbr.rel (%p923) target = $region12
      $region11: #{multimodal_grouping_block.1} parent=5 // pred_region
        %s927 = ssub.s32 %s95, 1
        // Predicated region
        $region13: #{multimodal_grouping_block.1} parent=11 // pred_check
          %p928 = pneg %p194
        $region14: #{multimodal_grouping_block.1} parent=11 // pred_check_branch
          %930 = sbr.rel (%p928) target = $region16
        $region15: #{multimodal_grouping_block.1} parent=11 // pred_region
          _
        $region16: #{multimodal_grouping_block.1} parent=11 // pred_fallthru
          _
        // Predicated region
        $region17: #{multimodal_grouping_block.1} parent=11 // pred_check
          %p931 = pneg %p215
        $region18: #{multimodal_grouping_block.1} parent=11 // pred_check_branch
          %933 = sbr.rel (%p931) target = $region20
        $region19: #{multimodal_grouping_block.1} parent=11 // pred_region
          _
        $region20: #{multimodal_grouping_block.1} parent=11 // pred_fallthru
          _
        // Predicated region
        $region21: #{multimodal_grouping_block.1} parent=11 // pred_check
          %p934 = pneg %p236
        $region22: #{multimodal_grouping_block.1} parent=11 // pred_check_branch
          %936 = sbr.rel (%p934) target = $region24
        $region23: #{multimodal_grouping_block.1} parent=11 // pred_region
          _
        $region24: #{multimodal_grouping_block.1} parent=11 // pred_fallthru
          _
        // Predicated region
        $region25: #{multimodal_grouping_block.1} parent=11 // pred_check
          %p937 = pneg %p257
        $region26: #{multimodal_grouping_block.1} parent=11 // pred_check_branch
          %939 = sbr.rel (%p937) target = $region28
        $region27: #{multimodal_grouping_block.1} parent=11 // pred_region
          _
        $region28: #{multimodal_grouping_block.1} parent=11 // pred_fallthru
          _
        // Predicated region
        $region29: #{multimodal_grouping_block.1} parent=11 // pred_check
          %p940 = pneg %p278
        $region30: #{multimodal_grouping_block.1} parent=11 // pred_check_branch
          %942 = sbr.rel (%p940) target = $region32
        $region31: #{multimodal_grouping_block.1} parent=11 // pred_region
          _
        $region32: #{multimodal_grouping_block.1} parent=11 // pred_fallthru
          _
        // Predicated region
        $region33: #{multimodal_grouping_block.1} parent=11 // pred_check
          %p943 = pneg %p299
        $region34: #{multimodal_grouping_block.1} parent=11 // pred_check_branch
          %945 = sbr.rel (%p943) target = $region36
        $region35: #{multimodal_grouping_block.1} parent=11 // pred_region
          _
        $region36: #{multimodal_grouping_block.1} parent=11 // pred_fallthru
          _
        // Predicated region
        $region37: #{multimodal_grouping_block.1} parent=11 // pred_check
          %p946 = pneg %p320
        $region38: #{multimodal_grouping_block.1} parent=11 // pred_check_branch
          %948 = sbr.rel (%p946) target = $region40
        $region39: #{multimodal_grouping_block.1} parent=11 // pred_region
          _
        $region40: #{multimodal_grouping_block.1} parent=11 // pred_fallthru
          _
        // Predicated region
        $region41: #{multimodal_grouping_block.1} parent=11 // pred_check
          %p949 = pneg %p341
        $region42: #{multimodal_grouping_block.1} parent=11 // pred_check_branch
          %951 = sbr.rel (%p949) target = $region44
        $region43: #{multimodal_grouping_block.1} parent=11 // pred_region
          _
        $region44: #{multimodal_grouping_block.1} parent=11 // pred_fallthru
          _
        // Predicated region
        $region45: #{multimodal_grouping_block.1} parent=11 // pred_check
          %p952 = pneg %p362
        $region46: #{multimodal_grouping_block.1} parent=11 // pred_check_branch
          %954 = sbr.rel (%p952) target = $region48
        $region47: #{multimodal_grouping_block.1} parent=11 // pred_region
          _
        $region48: #{multimodal_grouping_block.1} parent=11 // pred_fallthru
          _
        // Predicated region
        $region49: #{multimodal_grouping_block.1} parent=11 // pred_check
          %p955 = pneg %p383
        $region50: #{multimodal_grouping_block.1} parent=11 // pred_check_branch
          %957 = sbr.rel (%p955) target = $region52
        $region51: #{multimodal_grouping_block.1} parent=11 // pred_region
          _
        $region52: #{multimodal_grouping_block.1} parent=11 // pred_fallthru
          _
        // Predicated region
        $region53: #{multimodal_grouping_block.1} parent=11 // pred_check
          %p958 = pneg %p404
        $region54: #{multimodal_grouping_block.1} parent=11 // pred_check_branch
          %960 = sbr.rel (%p958) target = $region56
        $region55: #{multimodal_grouping_block.1} parent=11 // pred_region
          _
        $region56: #{multimodal_grouping_block.1} parent=11 // pred_fallthru
          _
        // Predicated region
        $region57: #{multimodal_grouping_block.1} parent=11 // pred_check
          %p961 = pneg %p425
        $region58: #{multimodal_grouping_block.1} parent=11 // pred_check_branch
          %963 = sbr.rel (%p961) target = $region60
        $region59: #{multimodal_grouping_block.1} parent=11 // pred_region
          _
        $region60: #{multimodal_grouping_block.1} parent=11 // pred_fallthru
          _
        // Predicated region
        $region61: #{multimodal_grouping_block.1} parent=11 // pred_check
          %p964 = pneg %p446
        $region62: #{multimodal_grouping_block.1} parent=11 // pred_check_branch
          %966 = sbr.rel (%p964) target = $region64
        $region63: #{multimodal_grouping_block.1} parent=11 // pred_region
          _
        $region64: #{multimodal_grouping_block.1} parent=11 // pred_fallthru
          _
        // Predicated region
        $region65: #{multimodal_grouping_block.1} parent=11 // pred_check
          %p967 = pneg %p467
        $region66: #{multimodal_grouping_block.1} parent=11 // pred_check_branch
          %969 = sbr.rel (%p967) target = $region68
        $region67: #{multimodal_grouping_block.1} parent=11 // pred_region
          _
        $region68: #{multimodal_grouping_block.1} parent=11 // pred_fallthru
          _
        // Predicated region
        $region69: #{multimodal_grouping_block.1} parent=11 // pred_check
          %p970 = pneg %p488
        $region70: #{multimodal_grouping_block.1} parent=11 // pred_check_branch
          %972 = sbr.rel (%p970) target = $region72
        $region71: #{multimodal_grouping_block.1} parent=11 // pred_region
          _
        $region72: #{multimodal_grouping_block.1} parent=11 // pred_fallthru
          _
        // Predicated region
        $region73: #{multimodal_grouping_block.1} parent=11 // pred_check
          %p973 = pneg %p509
        $region74: #{multimodal_grouping_block.1} parent=11 // pred_check_branch
          %975 = sbr.rel (%p973) target = $region76
        $region75: #{multimodal_grouping_block.1} parent=11 // pred_region
          _
        $region76: #{multimodal_grouping_block.1} parent=11 // pred_fallthru
          _
        // Predicated region
        $region77: #{multimodal_grouping_block.1} parent=11 // pred_check
          %p976 = pneg %p530
        $region78: #{multimodal_grouping_block.1} parent=11 // pred_check_branch
          %978 = sbr.rel (%p976) target = $region80
        $region79: #{multimodal_grouping_block.1} parent=11 // pred_region
          _
        $region80: #{multimodal_grouping_block.1} parent=11 // pred_fallthru
          _
        // Predicated region
        $region81: #{multimodal_grouping_block.1} parent=11 // pred_check
          %p979 = pneg %p551
        $region82: #{multimodal_grouping_block.1} parent=11 // pred_check_branch
          %981 = sbr.rel (%p979) target = $region84
        $region83: #{multimodal_grouping_block.1} parent=11 // pred_region
          _
        $region84: #{multimodal_grouping_block.1} parent=11 // pred_fallthru
          _
        // Predicated region
        $region85: #{multimodal_grouping_block.1} parent=11 // pred_check
          %p982 = pneg %p572
        $region86: #{multimodal_grouping_block.1} parent=11 // pred_check_branch
          %984 = sbr.rel (%p982) target = $region88
        $region87: #{multimodal_grouping_block.1} parent=11 // pred_region
          _
        $region88: #{multimodal_grouping_block.1} parent=11 // pred_fallthru
          _
        // Predicated region
        $region89: #{multimodal_grouping_block.1} parent=11 // pred_check
          %p985 = pneg %p593
        $region90: #{multimodal_grouping_block.1} parent=11 // pred_check_branch
          %987 = sbr.rel (%p985) target = $region92
        $region91: #{multimodal_grouping_block.1} parent=11 // pred_region
          _
        $region92: #{multimodal_grouping_block.1} parent=11 // pred_fallthru
          _
        // Predicated region
        $region93: #{multimodal_grouping_block.1} parent=11 // pred_check
          %p988 = pneg %p614
        $region94: #{multimodal_grouping_block.1} parent=11 // pred_check_branch
          %990 = sbr.rel (%p988) target = $region96
        $region95: #{multimodal_grouping_block.1} parent=11 // pred_region
          %992 = vsyncadd [#allocation6], 0
          %s994 = sshll.u32 %s47, 4
          %s995 = int_to_ptr.hbm [resolvable:$true] %s994
          %s996 = sshll.u32 [#allocation7], 4
          %s997 = int_to_ptr.vmem [resolvable:$true] %s996
          %999 = dma.hbm_to_vmem [thread:$0]  %s995, 16, %s997, [#allocation6]
        $region96: #{multimodal_grouping_block.1} parent=11 // pred_fallthru
          _
        // Predicated region
        $region97: #{multimodal_grouping_block.1} parent=11 // pred_check
          %p1000 = pneg %p635
        $region98: #{multimodal_grouping_block.1} parent=11 // pred_check_branch
          %1002 = sbr.rel (%p1000) target = $region100
        $region99: #{multimodal_grouping_block.1} parent=11 // pred_region
          %1004 = vsyncadd [#allocation9], 0
          %s1006 = sshll.u32 %s49, 4
          %s1007 = int_to_ptr.hbm [resolvable:$true] %s1006
          %s1008 = sshll.u32 [#allocation8], 4
          %s1009 = int_to_ptr.vmem [resolvable:$true] %s1008
          %1011 = dma.hbm_to_vmem [thread:$0]  %s1007, 16, %s1009, [#allocation9]
        $region100: #{multimodal_grouping_block.1} parent=11 // pred_fallthru
          _
        // Predicated region
        $region101: #{multimodal_grouping_block.1} parent=11 // pred_check
          %p1012 = pneg %p656
        $region102: #{multimodal_grouping_block.1} parent=11 // pred_check_branch
          %1014 = sbr.rel (%p1012) target = $region104
        $region103: #{multimodal_grouping_block.1} parent=11 // pred_region
          _
        $region104: #{multimodal_grouping_block.1} parent=11 // pred_fallthru
          _
        // Predicated region
        $region105: #{multimodal_grouping_block.1} parent=11 // pred_check
          %p1015 = pneg %p677
        $region106: #{multimodal_grouping_block.1} parent=11 // pred_check_branch
          %1017 = sbr.rel (%p1015) target = $region108
        $region107: #{multimodal_grouping_block.1} parent=11 // pred_region
          %1019 = vsyncadd [#allocation9], 0
          %s1021 = sshll.u32 %s53, 4
          %s1022 = int_to_ptr.hbm [resolvable:$true] %s1021
          %s1023 = sshll.u32 [#allocation10], 4
          %s1024 = int_to_ptr.vmem [resolvable:$true] %s1023
          %1026 = dma.hbm_to_vmem [thread:$0]  %s1022, 16, %s1024, [#allocation9]
        $region108: #{multimodal_grouping_block.1} parent=11 // pred_fallthru
          _
        // Predicated region
        $region109: #{multimodal_grouping_block.1} parent=11 // pred_check
          %p1027 = pneg %p698
        $region110: #{multimodal_grouping_block.1} parent=11 // pred_check_branch
          %1029 = sbr.rel (%p1027) target = $region112
        $region111: #{multimodal_grouping_block.1} parent=11 // pred_region
          _
        $region112: #{multimodal_grouping_block.1} parent=11 // pred_fallthru
          _
        // Predicated region
        $region113: #{multimodal_grouping_block.1} parent=11 // pred_check
          %p1030 = pneg %p719
        $region114: #{multimodal_grouping_block.1} parent=11 // pred_check_branch
          %1032 = sbr.rel (%p1030) target = $region116
        $region115: #{multimodal_grouping_block.1} parent=11 // pred_region
          %1034 = vsyncadd [#allocation12], 0
          %s1036 = sshll.u32 %s57, 4
          %s1037 = int_to_ptr.hbm [resolvable:$true] %s1036
          %s1038 = sshll.u32 [#allocation11], 4
          %s1039 = int_to_ptr.vmem [resolvable:$true] %s1038
          %1041 = dma.hbm_to_vmem [thread:$0]  %s1037, 16, %s1039, [#allocation12]
        $region116: #{multimodal_grouping_block.1} parent=11 // pred_fallthru
          _
        // Predicated region
        $region117: #{multimodal_grouping_block.1} parent=11 // pred_check
          %p1042 = pneg %p740
        $region118: #{multimodal_grouping_block.1} parent=11 // pred_check_branch
          %1044 = sbr.rel (%p1042) target = $region120
        $region119: #{multimodal_grouping_block.1} parent=11 // pred_region
          %1046 = vsyncadd [#allocation12], 0
          %s1048 = sshll.u32 %s59, 4
          %s1049 = int_to_ptr.hbm [resolvable:$true] %s1048
          %s1050 = sshll.u32 [#allocation13], 4
          %s1051 = int_to_ptr.vmem [resolvable:$true] %s1050
          %1053 = dma.hbm_to_vmem [thread:$0]  %s1049, 16, %s1051, [#allocation12]
        $region120: #{multimodal_grouping_block.1} parent=11 // pred_fallthru
          _
        // Predicated region
        $region121: #{multimodal_grouping_block.1} parent=11 // pred_check
          %p1054 = pneg %p761
        $region122: #{multimodal_grouping_block.1} parent=11 // pred_check_branch
          %1056 = sbr.rel (%p1054) target = $region124
        $region123: #{multimodal_grouping_block.1} parent=11 // pred_region
          %1058 = vsyncadd [#allocation15], 0
          %s1060 = sshll.u32 %s61, 4
          %s1061 = int_to_ptr.hbm [resolvable:$true] %s1060
          %s1062 = sshll.u32 [#allocation14], 4
          %s1063 = int_to_ptr.vmem [resolvable:$true] %s1062
          %1065 = dma.hbm_to_vmem [thread:$0]  %s1061, 16, %s1063, [#allocation15]
        $region124: #{multimodal_grouping_block.1} parent=11 // pred_fallthru
          _
        // Predicated region
        $region125: #{multimodal_grouping_block.1} parent=11 // pred_check
          %p1066 = pneg %p782
        $region126: #{multimodal_grouping_block.1} parent=11 // pred_check_branch
          %1068 = sbr.rel (%p1066) target = $region128
        $region127: #{multimodal_grouping_block.1} parent=11 // pred_region
          _
        $region128: #{multimodal_grouping_block.1} parent=11 // pred_fallthru
          _
        // Predicated region
        $region129: #{multimodal_grouping_block.1} parent=11 // pred_check
          %p1069 = pneg %p803
        $region130: #{multimodal_grouping_block.1} parent=11 // pred_check_branch
          %1071 = sbr.rel (%p1069) target = $region132
        $region131: #{multimodal_grouping_block.1} parent=11 // pred_region
          %1073 = vsyncadd [#allocation15], 0
          %s1075 = sshll.u32 %s65, 4
          %s1076 = int_to_ptr.hbm [resolvable:$true] %s1075
          %s1077 = sshll.u32 [#allocation16], 4
          %s1078 = int_to_ptr.vmem [resolvable:$true] %s1077
          %1080 = dma.hbm_to_vmem [thread:$0]  %s1076, 16, %s1078, [#allocation15]
        $region132: #{multimodal_grouping_block.1} parent=11 // pred_fallthru
          _
        // Predicated region
        $region133: #{multimodal_grouping_block.1} parent=11 // pred_check
          %p1081 = pneg %p824
        $region134: #{multimodal_grouping_block.1} parent=11 // pred_check_branch
          %1083 = sbr.rel (%p1081) target = $region136
        $region135: #{multimodal_grouping_block.1} parent=11 // pred_region
          _
        $region136: #{multimodal_grouping_block.1} parent=11 // pred_fallthru
          _
        // Predicated region
        $region137: #{multimodal_grouping_block.1} parent=11 // pred_check
          %p1084 = pneg %p845
        $region138: #{multimodal_grouping_block.1} parent=11 // pred_check_branch
          %1086 = sbr.rel (%p1084) target = $region140
        $region139: #{multimodal_grouping_block.1} parent=11 // pred_region
          %1088 = vsyncadd [#allocation18], 0
          %s1090 = sshll.u32 %s69, 4
          %s1091 = int_to_ptr.hbm [resolvable:$true] %s1090
          %s1092 = sshll.u32 [#allocation17], 4
          %s1093 = int_to_ptr.vmem [resolvable:$true] %s1092
          %1095 = dma.hbm_to_vmem [thread:$0]  %s1091, 16, %s1093, [#allocation18]
        $region140: #{multimodal_grouping_block.1} parent=11 // pred_fallthru
          _
        // Predicated region
        $region141: #{multimodal_grouping_block.1} parent=11 // pred_check
          %p1096 = pneg %p866
        $region142: #{multimodal_grouping_block.1} parent=11 // pred_check_branch
          %1098 = sbr.rel (%p1096) target = $region144
        $region143: #{multimodal_grouping_block.1} parent=11 // pred_region
          %1100 = vsyncadd [#allocation18], 0
          %s1102 = sshll.u32 %s71, 4
          %s1103 = int_to_ptr.hbm [resolvable:$true] %s1102
          %s1104 = sshll.u32 [#allocation19], 4
          %s1105 = int_to_ptr.vmem [resolvable:$true] %s1104
          %1107 = dma.hbm_to_vmem [thread:$0]  %s1103, 16, %s1105, [#allocation18]
        $region144: #{multimodal_grouping_block.1} parent=11 // pred_fallthru
          _
        // Predicated region
        $region145: #{multimodal_grouping_block.1} parent=11 // pred_check
          %p1108 = pneg %p887
        $region146: #{multimodal_grouping_block.1} parent=11 // pred_check_branch
          %1110 = sbr.rel (%p1108) target = $region148
        $region147: #{multimodal_grouping_block.1} parent=11 // pred_region
          %1112 = vsyncadd [#allocation21], 0
          %s1114 = sshll.u32 %s73, 4
          %s1115 = int_to_ptr.hbm [resolvable:$true] %s1114
          %s1116 = sshll.u32 [#allocation20], 4
          %s1117 = int_to_ptr.vmem [resolvable:$true] %s1116
          %1119 = dma.hbm_to_vmem [thread:$0]  %s1115, 16, %s1117, [#allocation21]
        $region148: #{multimodal_grouping_block.1} parent=11 // pred_fallthru
          _
      $region12: #{multimodal_grouping_block.1} parent=5 // pred_fallthru
        _
      %p1120 = scmp.lt.s32.totalorder %s95, 2
      // Predicated region
      $region149: #{multimodal_grouping_block.1} parent=5 // pred_check
        %p1121 = pneg %p1120
      $region150: #{multimodal_grouping_block.1} parent=5 // pred_check_branch
        %1123 = sbr.rel (%p1121) target = $region152
      $region151: #{multimodal_grouping_block.1} parent=5 // pred_region
        // Predicated region
        $region153: #{multimodal_grouping_block.1} parent=151 // pred_check
          %p1124 = pneg %p115
        $region154: #{multimodal_grouping_block.1} parent=151 // pred_check_branch
          %1126 = sbr.rel (%p1124) target = $region156
        $region155: #{multimodal_grouping_block.1} parent=151 // pred_region
          %s1127 = sand.u32 %s105, 1
          %s1128 = scalar_lea.sflag [#allocation3], %s1127
          %s1129 = sand.u32 %s105, 1
          %s1130 = smul.addr %s1129, 8
          %s1131 = scalar_lea.vmem [#allocation2], %s1130
          %1133 = vsyncadd %s1128, 0
          %s1134 = smul.addr %s95, 8
          %s1135 = scalar_lea.hbm %s1, %s1134
          %s1137 = sshll.u32 %s1135, 4
          %s1138 = int_to_ptr.hbm [resolvable:$true] %s1137
          %s1139 = sshll.u32 %s1131, 4
          %s1140 = int_to_ptr.vmem [resolvable:$true] %s1139
          %1142 = dma.hbm_to_vmem [thread:$0]  %s1138, 128, %s1140, %s1128
        $region156: #{multimodal_grouping_block.1} parent=151 // pred_fallthru
          _
        // Predicated region
        $region157: #{multimodal_grouping_block.1} parent=151 // pred_check
          %p1143 = pneg %p141
        $region158: #{multimodal_grouping_block.1} parent=151 // pred_check_branch
          %1145 = sbr.rel (%p1143) target = $region160
        $region159: #{multimodal_grouping_block.1} parent=151 // pred_region
          %p1146 = scmp.lt.s32.totalorder %s95, 1
          %s1147 = scalar_select %p1146, %s95, 1
          %s1148 = smul.addr %s1147, 2
          %s1149 = smul.addr %s1148, 8
          %s1150 = scalar_lea.vmem %s3, %s1149
        $region160: #{multimodal_grouping_block.1} parent=151 // pred_fallthru
          _
        // Predicated region
        $region161: #{multimodal_grouping_block.1} parent=151 // pred_check
          %p1151 = pneg %p167
        $region162: #{multimodal_grouping_block.1} parent=151 // pred_check_branch
          %1153 = sbr.rel (%p1151) target = $region164
        $region163: #{multimodal_grouping_block.1} parent=151 // pred_region
          %s1154 = sand.u32 %s95, 1
          %s1155 = scalar_lea.sflag [#allocation6], %s1154
          %s1156 = sand.u32 %s157, 1
          %s1157 = smul.addr %s1156, 8
          %s1158 = scalar_lea.vmem [#allocation5], %s1157
          %1160 = vsyncadd %s1155, 0
          %s1161 = smul.addr %s95, 8
          %s1162 = scalar_lea.hbm %s5, %s1161
          %s1164 = sshll.u32 %s1162, 4
          %s1165 = int_to_ptr.hbm [resolvable:$true] %s1164
          %s1166 = sshll.u32 %s1158, 4
          %s1167 = int_to_ptr.vmem [resolvable:$true] %s1166
          %1169 = dma.hbm_to_vmem [thread:$0]  %s1165, 128, %s1167, %s1155
        $region164: #{multimodal_grouping_block.1} parent=151 // pred_fallthru
          _
      $region152: #{multimodal_grouping_block.1} parent=5 // pred_fallthru
        _
      %p1170 = scmp.le.s32.totalorder 1, %s95
      %p1171 = scmp.lt.s32.totalorder %s95, 3
      %p1172 = pnand %p1170, %p1171
      %p1173 = pneg %p1172
      // Predicated region
      $region165: #{multimodal_grouping_block.1} parent=5 // pred_check
        _
      $region166: #{multimodal_grouping_block.1} parent=5 // pred_check_branch
        %1175 = sbr.rel (%p1172) target = $region168
      $region167: #{multimodal_grouping_block.1} parent=5 // pred_region
        %s1176 = ssub.s32 %s95, 1
        %s1177 = sand.u32 %s108, 1
        %s1178 = scalar_lea.sflag [#allocation3], %s1177
        %s1179 = sand.u32 %s108, 1
        %s1180 = smul.addr %s1179, 8
        %s1181 = scalar_lea.vmem [#allocation2], %s1180
        // Predicated region
        $region169: #{multimodal_grouping_block.1} parent=167 // pred_check
          %p1182 = pneg %p121
        $region170: #{multimodal_grouping_block.1} parent=167 // pred_check_branch
          %1184 = sbr.rel (%p1182) target = $region172
        $region171: #{multimodal_grouping_block.1} parent=167 // pred_region
          %1186 = dma.done %s1178, 128
        $region172: #{multimodal_grouping_block.1} parent=167 // pred_fallthru
          _
        %s1187 = sand.u32 %s100, 1
        %s1188 = scalar_lea.sflag [#allocation6], %s1187
        %s1189 = sand.u32 %s160, 1
        %s1190 = smul.addr %s1189, 8
        %s1191 = scalar_lea.vmem [#allocation5], %s1190
        // Predicated region
        $region173: #{multimodal_grouping_block.1} parent=167 // pred_check
          %p1192 = pneg %p173
        $region174: #{multimodal_grouping_block.1} parent=167 // pred_check_branch
          %1194 = sbr.rel (%p1192) target = $region176
        $region175: #{multimodal_grouping_block.1} parent=167 // pred_region
          %1196 = dma.done %s1188, 128
        $region176: #{multimodal_grouping_block.1} parent=167 // pred_fallthru
          _
        // Predicated region
        $region177: #{multimodal_grouping_block.1} parent=167 // pred_check
          %p1197 = pneg %p614
        $region178: #{multimodal_grouping_block.1} parent=167 // pred_check_branch
          %1199 = sbr.rel (%p1197) target = $region180
        $region179: #{multimodal_grouping_block.1} parent=167 // pred_region
          %1201 = dma.done [#allocation6], 16
        $region180: #{multimodal_grouping_block.1} parent=167 // pred_fallthru
          _
        // Predicated region
        $region181: #{multimodal_grouping_block.1} parent=167 // pred_check
          %p1202 = pneg %p635
        $region182: #{multimodal_grouping_block.1} parent=167 // pred_check_branch
          %1204 = sbr.rel (%p1202) target = $region184
        $region183: #{multimodal_grouping_block.1} parent=167 // pred_region
          %1206 = dma.done [#allocation9], 16
        $region184: #{multimodal_grouping_block.1} parent=167 // pred_fallthru
          _
        // Predicated region
        $region185: #{multimodal_grouping_block.1} parent=167 // pred_check
          %p1207 = pneg %p677
        $region186: #{multimodal_grouping_block.1} parent=167 // pred_check_branch
          %1209 = sbr.rel (%p1207) target = $region188
        $region187: #{multimodal_grouping_block.1} parent=167 // pred_region
          %1211 = dma.done [#allocation9], 16
        $region188: #{multimodal_grouping_block.1} parent=167 // pred_fallthru
          _
        // Predicated region
        $region189: #{multimodal_grouping_block.1} parent=167 // pred_check
          %p1212 = pneg %p719
        $region190: #{multimodal_grouping_block.1} parent=167 // pred_check_branch
          %1214 = sbr.rel (%p1212) target = $region192
        $region191: #{multimodal_grouping_block.1} parent=167 // pred_region
          %1216 = dma.done [#allocation12], 16
        $region192: #{multimodal_grouping_block.1} parent=167 // pred_fallthru
          _
        // Predicated region
        $region193: #{multimodal_grouping_block.1} parent=167 // pred_check
          %p1217 = pneg %p740
        $region194: #{multimodal_grouping_block.1} parent=167 // pred_check_branch
          %1219 = sbr.rel (%p1217) target = $region196
        $region195: #{multimodal_grouping_block.1} parent=167 // pred_region
          %1221 = dma.done [#allocation12], 16
        $region196: #{multimodal_grouping_block.1} parent=167 // pred_fallthru
          _
        // Predicated region
        $region197: #{multimodal_grouping_block.1} parent=167 // pred_check
          %p1222 = pneg %p761
        $region198: #{multimodal_grouping_block.1} parent=167 // pred_check_branch
          %1224 = sbr.rel (%p1222) target = $region200
        $region199: #{multimodal_grouping_block.1} parent=167 // pred_region
          %1226 = dma.done [#allocation15], 16
        $region200: #{multimodal_grouping_block.1} parent=167 // pred_fallthru
          _
        // Predicated region
        $region201: #{multimodal_grouping_block.1} parent=167 // pred_check
          %p1227 = pneg %p803
        $region202: #{multimodal_grouping_block.1} parent=167 // pred_check_branch
          %1229 = sbr.rel (%p1227) target = $region204
        $region203: #{multimodal_grouping_block.1} parent=167 // pred_region
          %1231 = dma.done [#allocation15], 16
        $region204: #{multimodal_grouping_block.1} parent=167 // pred_fallthru
          _
        // Predicated region
        $region205: #{multimodal_grouping_block.1} parent=167 // pred_check
          %p1232 = pneg %p845
        $region206: #{multimodal_grouping_block.1} parent=167 // pred_check_branch
          %1234 = sbr.rel (%p1232) target = $region208
        $region207: #{multimodal_grouping_block.1} parent=167 // pred_region
          %1236 = dma.done [#allocation18], 16
        $region208: #{multimodal_grouping_block.1} parent=167 // pred_fallthru
          _
        // Predicated region
        $region209: #{multimodal_grouping_block.1} parent=167 // pred_check
          %p1237 = pneg %p866
        $region210: #{multimodal_grouping_block.1} parent=167 // pred_check_branch
          %1239 = sbr.rel (%p1237) target = $region212
        $region211: #{multimodal_grouping_block.1} parent=167 // pred_region
          %1241 = dma.done [#allocation18], 16
        $region212: #{multimodal_grouping_block.1} parent=167 // pred_fallthru
          _
        // Predicated region
        $region213: #{multimodal_grouping_block.1} parent=167 // pred_check
          %p1242 = pneg %p887
        $region214: #{multimodal_grouping_block.1} parent=167 // pred_check_branch
          %1244 = sbr.rel (%p1242) target = $region216
        $region215: #{multimodal_grouping_block.1} parent=167 // pred_region
          %1246 = dma.done [#allocation21], 16
        $region216: #{multimodal_grouping_block.1} parent=167 // pred_fallthru
          _
        %s1247 = sand.u32 %s108, 1
        %s1248 = scalar_lea.sflag [#allocation3], %s1247
        %s1249 = sand.u32 %s108, 1
        %s1250 = smul.addr %s1249, 8
        %s1251 = scalar_lea.vmem [#allocation2], %s1250
        %p1252 = pneg %p121
        %p1253 = pneg %p118
        %p1254 = scmp.lt.s32.totalorder %s100, 1
        %s1255 = scalar_select %p1254, %s100, 1
        %s1256 = smul.addr %s1255, 2
        %s1257 = smul.addr %s1256, 8
        %s1258 = scalar_lea.vmem %s3, %s1257
        %p1259 = pneg %p147
        %p1260 = pneg %p144
        %s1261 = sand.u32 %s100, 1
        %s1262 = scalar_lea.sflag [#allocation6], %s1261
        %s1263 = sand.u32 %s160, 1
        %s1264 = smul.addr %s1263, 8
        %s1265 = scalar_lea.vmem [#allocation5], %s1264
        %p1266 = pneg %p173
        %p1267 = pneg %p170
        %p1268 = pneg %p194
        %p1269 = pneg %p191
        %p1270 = pneg %p215
        %p1271 = pneg %p212
        %p1272 = pneg %p236
        %p1273 = pneg %p233
        %p1274 = pneg %p257
        %p1275 = pneg %p254
        %p1276 = pneg %p278
        %p1277 = pneg %p275
        %p1278 = pneg %p299
        %p1279 = pneg %p296
        %p1280 = pneg %p320
        %p1281 = pneg %p317
        %p1282 = pneg %p341
        %p1283 = pneg %p338
        %p1284 = pneg %p362
        %p1285 = pneg %p359
        %p1286 = pneg %p383
        %p1287 = pneg %p380
        %p1288 = pneg %p404
        %p1289 = pneg %p401
        %p1290 = pneg %p425
        %p1291 = pneg %p422
        %p1292 = pneg %p446
        %p1293 = pneg %p443
        %p1294 = pneg %p467
        %p1295 = pneg %p464
        %p1296 = pneg %p488
        %p1297 = pneg %p485
        %p1298 = pneg %p509
        %p1299 = pneg %p506
        %p1300 = pneg %p530
        %p1301 = pneg %p527
        %p1302 = pneg %p551
        %p1303 = pneg %p548
        %p1304 = pneg %p572
        %p1305 = pneg %p569
        %p1306 = pneg %p593
        %p1307 = pneg %p590
        %p1308 = pneg %p614
        %p1309 = pneg %p611
        %p1310 = pneg %p635
        %p1311 = pneg %p632
        %p1312 = pneg %p656
        %p1313 = pneg %p653
        %p1314 = pneg %p677
        %p1315 = pneg %p674
        %p1316 = pneg %p698
        %p1317 = pneg %p695
        %p1318 = pneg %p719
        %p1319 = pneg %p716
        %p1320 = pneg %p740
        %p1321 = pneg %p737
        %p1322 = pneg %p761
        %p1323 = pneg %p758
        %p1324 = pneg %p782
        %p1325 = pneg %p779
        %p1326 = pneg %p803
        %p1327 = pneg %p800
        %p1328 = pneg %p824
        %p1329 = pneg %p821
        %p1330 = pneg %p845
        %p1331 = pneg %p842
        %p1332 = pneg %p866
        %p1333 = pneg %p863
        %p1334 = pneg %p887
        %p1335 = pneg %p884
        %p1336 = pneg %p913
        %p1337 = pneg %p910
        %s1338 = sand.u32 %s900, 1
        %s1339 = scalar_lea.sflag [#allocation4], %s1338
        %s1340 = sand.u32 %s900, 1
        %s1341 = smul.addr %s1340, 8
        %s1342 = scalar_lea.vmem [#allocation22], %s1341
        %p1343 = scmp.lt.s32.totalorder %s100, 1
        %s1344 = scalar_select %p1343, %s100, 1
        %s1345 = smul.addr %s1344, 2
        %s1346 = smul.addr %s1345, 8
        %s1347 = scalar_lea.vmem %s3, %s1346
        %v1349 = vld [vmem:[%s1191] sm:$0xff]
        %v1350 = vld [vmem:[%s7] sm:$0x1]
        %v1351 = vld [vmem:[%s9] sm:$0x1]
        %vm1352 = vcmask 261120
        %v1353 = vsel %vm1352, %v1349, 0.0
        %1354 = vadd.xlane.f32.xlu0 %v1353
        %v1355 = vpop.xlane.xlu0 %1354
        %v1356 = vrcp.pop 32.0
        %v1357 = vmul.f32 32.0, %v1356
        %v1358 = vsub.f32 1.0, %v1357
        %v1359 = vmul.f32 %v1356, %v1358
        %v1360 = vadd.f32 %v1356, %v1359
        %vm1361 = vweird.f32 %v1356
        %v1362 = vsel %vm1361, %v1356, %v1360
        %v1363 = vmul.f32 %v1355, %v1362
        %v1364 = vsub.f32 %v1349, %v1363
        %v1365 = vmul.f32 %v1364, %v1364
        %v1366 = vsel %vm1352, %v1365, 0.0
        %1367 = vadd.xlane.f32.xlu0 %v1366
        %v1368 = vpop.xlane.xlu0 %1367
        %v1369 = vmul.f32 %v1368, %v1362
        %v1370 = vadd.f32 %v1369, 1e-05
        %v1371 = vrsqrt.pop %v1370
        %v1372 = vmul.f32 %v1371, %v1370
        %v1373 = vmul.f32 %v1372, %v1371
        %v1374 = vmul.f32 0.5, %v1373
        %v1375 = vsub.f32 1.5, %v1374
        %v1376 = vmul.f32 %v1371, %v1375
        %vm1377 = vweird.f32 %v1370
        %vm1378 = vweird.f32 %v1371
        %vm1379 = vmor %vm1377, %vm1378
        %v1380 = vsel %vm1379, %v1371, %v1376
        %v1381 = vmul.f32 %v1364, %v1380
        %v1383 = vperm.slane %v1350, 0
        %v1385 = vmul.f32 %v1381, %v1383
        %v1387 = vperm.slane %v1351, 0
        %v1389 = vadd.f32 %v1385, %v1387
        %v1390 = vld [vmem:[%s1347] sm:$0xff]
        %v1391 = vld [vmem:[%s1347 + $0x8] sm:$0xff]
        %v1392 = vld [vmem:[%s11] sm:$0x1]
        %v1393 = vld [vmem:[%s13] sm:$0x1]
        %v1394 = vsel %vm1352, %v1390, 0.0
        %1395 = vadd.xlane.f32.xlu0 %v1394
        %v1396 = vpop.xlane.xlu0 %1395
        %v1397 = vsel %vm1352, %v1391, 0.0
        %1398 = vadd.xlane.f32.xlu0 %v1397
        %v1399 = vpop.xlane.xlu0 %1398
        %v1400 = vmul.f32 %v1396, %v1362
        %v1401 = vmul.f32 %v1399, %v1362
        %v1402 = vsub.f32 %v1390, %v1400
        %v1403 = vsub.f32 %v1391, %v1401
        %v1404 = vmul.f32 %v1402, %v1402
        %v1405 = vmul.f32 %v1403, %v1403
        %v1406 = vsel %vm1352, %v1404, 0.0
        %1407 = vadd.xlane.f32.xlu0 %v1406
        %v1408 = vpop.xlane.xlu0 %1407
        %v1409 = vsel %vm1352, %v1405, 0.0
        %1410 = vadd.xlane.f32.xlu0 %v1409
        %v1411 = vpop.xlane.xlu0 %1410
        %v1412 = vmul.f32 %v1408, %v1362
        %v1413 = vmul.f32 %v1411, %v1362
        %v1414 = vadd.f32 %v1412, 1e-05
        %v1415 = vadd.f32 %v1413, 1e-05
        %v1416 = vrsqrt.pop %v1414
        %v1417 = vmul.f32 %v1416, %v1414
        %v1418 = vmul.f32 %v1417, %v1416
        %v1419 = vmul.f32 0.5, %v1418
        %v1420 = vsub.f32 1.5, %v1419
        %v1421 = vmul.f32 %v1416, %v1420
        %vm1422 = vweird.f32 %v1414
        %vm1423 = vweird.f32 %v1416
        %vm1424 = vmor %vm1422, %vm1423
        %v1425 = vsel %vm1424, %v1416, %v1421
        %v1426 = vrsqrt.pop %v1415
        %v1427 = vmul.f32 %v1426, %v1415
        %v1428 = vmul.f32 %v1427, %v1426
        %v1429 = vmul.f32 0.5, %v1428
        %v1430 = vsub.f32 1.5, %v1429
        %v1431 = vmul.f32 %v1426, %v1430
        %vm1432 = vweird.f32 %v1415
        %vm1433 = vweird.f32 %v1426
        %vm1434 = vmor %vm1432, %vm1433
        %v1435 = vsel %vm1434, %v1426, %v1431
        %v1436 = vmul.f32 %v1402, %v1425
        %v1437 = vmul.f32 %v1403, %v1435
        %v1439 = vperm.slane %v1392, 0
        %v1441 = vmul.f32 %v1436, %v1439
        %v1442 = vmul.f32 %v1437, %v1439
        %v1444 = vperm.slane %v1393, 0
        %v1446 = vadd.f32 %v1441, %v1444
        %v1447 = vadd.f32 %v1442, %v1444
        %v1448 = vld [vmem:[%s15] sm:$0xff]
        %v1449 = vld [vmem:[%s15 + $0x8] sm:$0xff]
        %v1450 = vld [vmem:[%s15 + $0x10] sm:$0xff]
        %v1451 = vld [vmem:[%s15 + $0x18] sm:$0xff]
        %v1452 = vpack.c.bf16 %v1389, %v1389
        %v1453 = vpack.c.bf16 %v1449, %v1448
        %v1454 = vpack.c.bf16 %v1451, %v1450
        %v1455 = vld [vmem:[%s17] sm:$0x1]
        %v1457 = vperm.slane %v1455, 0
        %v1460 = vsel %vm1352, %v1452, 0
        %1462 = vmatpush.bf16.msra.mxu0 0
        %1463 = vmatpush.bf16.msra.mxu0 0
        %1464 = vmatpush.bf16.msra.mxu0 0
        %1465 = vmatpush.bf16.msra.mxu0 0
        %1466 = vmatpush.bf16.msra.mxu0 0
        %1467 = vmatpush.bf16.msra.mxu0 0
        %1468 = vmatpush.bf16.msra.mxu0 %v1454
        %1469 = vmatpush.bf16.msra.mxu0 %v1453
        %1470 = vmatmul.bf16.gmra.mxu0 %v1460
        %v1471 = vpop.f32.mrf.mxu0
        %v1472 = vadd.f32 %v1457, %v1471
        %v1473 = vpop.f32.mrf.mxu0
        %1474 = vdwg.mxu0
        %v1475 = vld [vmem:[%s19] sm:$0xff]
        %v1476 = vld [vmem:[%s19 + $0x8] sm:$0xff]
        %v1477 = vld [vmem:[%s19 + $0x10] sm:$0xff]
        %v1478 = vld [vmem:[%s19 + $0x18] sm:$0xff]
        %v1479 = vpack.c.bf16 %v1447, %v1446
        %v1480 = vpack.c.bf16 %v1476, %v1475
        %v1481 = vpack.c.bf16 %v1478, %v1477
        %v1482 = vld [vmem:[%s21] sm:$0x1]
        %v1484 = vperm.slane %v1482, 0
        %v1487 = vsel %vm1352, %v1479, 0
        %1489 = vmatpush.bf16.msra.mxu0 0
        %1490 = vmatpush.bf16.msra.mxu0 0
        %1491 = vmatpush.bf16.msra.mxu0 0
        %1492 = vmatpush.bf16.msra.mxu0 0
        %1493 = vmatpush.bf16.msra.mxu0 0
        %1494 = vmatpush.bf16.msra.mxu0 0
        %1495 = vmatpush.bf16.msra.mxu0 %v1481
        %1496 = vmatpush.bf16.msra.mxu0 %v1480
        %1497 = vmatmul.bf16.gmra.mxu0 %v1487
        %v1498 = vpop.f32.mrf.mxu0
        %v1499 = vadd.f32 %v1484, %v1498
        %v1500 = vpop.f32.mrf.mxu0
        %v1501 = vadd.f32 %v1484, %v1500
        %1502 = vdwg.mxu0
        %v1503 = vld [vmem:[%s23] sm:$0xff]
        %v1504 = vld [vmem:[%s23 + $0x8] sm:$0xff]
        %v1505 = vld [vmem:[%s23 + $0x10] sm:$0xff]
        %v1506 = vld [vmem:[%s23 + $0x18] sm:$0xff]
        %v1507 = vpack.c.bf16 %v1504, %v1503
        %v1508 = vpack.c.bf16 %v1506, %v1505
        %v1509 = vld [vmem:[%s25] sm:$0x1]
        %v1511 = vperm.slane %v1509, 0
        %1513 = vmatpush.bf16.msra.mxu0 0
        %1514 = vmatpush.bf16.msra.mxu0 0
        %1515 = vmatpush.bf16.msra.mxu0 0
        %1516 = vmatpush.bf16.msra.mxu0 0
        %1517 = vmatpush.bf16.msra.mxu0 0
        %1518 = vmatpush.bf16.msra.mxu0 0
        %1519 = vmatpush.bf16.msra.mxu0 %v1508
        %1520 = vmatpush.bf16.msra.mxu0 %v1507
        %1521 = vmatmul.bf16.gmra.mxu0 %v1487
        %v1522 = vpop.f32.mrf.mxu0
        %v1523 = vadd.f32 %v1511, %v1522
        %v1524 = vpop.f32.mrf.mxu0
        %v1525 = vadd.f32 %v1511, %v1524
        %1526 = vdwg.mxu0
        %v1527 = vmul.f32 %v1472, 0.35355338
        %v1528 = vpack.c.bf16 %v1527, %v1527
        %v1529 = vpack.c.bf16 %v1499, %v1499
        %v1530 = vpack.c.bf16 %v1501, %v1501
        %v1531 = vpack.c.bf16 %v1523, %v1523
        %v1532 = vpack.c.bf16 %v1525, %v1525
        %v1535 = vunpack.c.l.b16 %v1529
        %v1536 = vunpack.c.l.b16 %v1530
        %v1537 = vpack.c.b16 %v1536, %v1535
        %vm1538 = vcmask 64512
        %v1540 = vsel %vm1538, %v1528, 0
        %v1543 = vsel %vm1538, %v1537, 0
        %1545 = vmatpush.bf16.xpose.msra.mxu0 0
        %1546 = vmatpush.bf16.xpose.msra.mxu0 0
        %1547 = vmatpush.bf16.xpose.msra.mxu0 0
        %1548 = vmatpush.bf16.xpose.msra.mxu0 0
        %1549 = vmatpush.bf16.xpose.msra.mxu0 0
        %1550 = vmatpush.bf16.xpose.msra.mxu0 0
        %1551 = vmatpush.bf16.xpose.msra.mxu0 0
        %1552 = vmatpush.bf16.xpose.msra.mxu0 %v1543
        %1553 = vmatmul.bf16.gmra.mxu0 %v1540
        %v1554 = vpop.f32.mrf.mxu0
        %v1555 = vadd.f32 0.0, %v1554
        %v1556 = vpop.f32.mrf.mxu0
        %1557 = vdwg.mxu0
        %vm1558 = vcmask 130048
        %v1559 = vsel %vm1558, %v1555, -inf
        %1560 = vmax.xlane.f32.xlu0 %v1559
        %v1561 = vpop.xlane.xlu0 %1560
        %v1562 = vsub.f32 %v1555, %v1561
        %v1563 = vmul.f32 %v1562, 1.442695
        %v1564 = vpow.pop %v1563
        %v1565 = vsel %vm1558, %v1564, 0.0
        %1566 = vadd.xlane.f32.xlu0 %v1565
        %v1567 = vpop.xlane.xlu0 %1566
        %v1568 = vrcp.pop %v1567
        %v1569 = vmul.f32 %v1564, %v1568
        %v1570 = vpack.c.bf16 %v1569, %v1569
        %v1573 = vunpack.c.l.b16 %v1531
        %v1574 = vunpack.c.l.b16 %v1532
        %v1575 = vpack.c.b16 %v1574, %v1573
        %v1578 = vsel %vm1558, %v1570, 0
        %1580 = vmatpush.bf16.msra.mxu0 0
        %1581 = vmatpush.bf16.msra.mxu0 0
        %1582 = vmatpush.bf16.msra.mxu0 0
        %1583 = vmatpush.bf16.msra.mxu0 0
        %1584 = vmatpush.bf16.msra.mxu0 0
        %1585 = vmatpush.bf16.msra.mxu0 0
        %1586 = vmatpush.bf16.msra.mxu0 0
        %1587 = vmatpush.bf16.msra.mxu0 %v1575
        %1588 = vmatmul.bf16.gmra.mxu0 %v1578
        %v1589 = vpop.f32.mrf.mxu0
        %v1590 = vadd.f32 0.0, %v1589
        %v1591 = vpop.f32.mrf.mxu0
        %1592 = vdwg.mxu0
        %v1594 = vunpack.c.l.b16 %v1528
        %v1595 = vpack.c.b16 %v1594, %v1594
        %1596 = vrot.lane.b32.xlu0 %v1595, 120
        %v1597 = vpop.permute.xlu0 %1596
        %1598 = vrot.lane.b32.xlu0 %v1537, 120
        %v1599 = vpop.permute.xlu0 %1598
        %v1601 = vsel %vm1538, %v1597, 0
        %v1604 = vsel %vm1538, %v1599, 0
        %1606 = vmatpush.bf16.xpose.msra.mxu0 0
        %1607 = vmatpush.bf16.xpose.msra.mxu0 0
        %1608 = vmatpush.bf16.xpose.msra.mxu0 0
        %1609 = vmatpush.bf16.xpose.msra.mxu0 0
        %1610 = vmatpush.bf16.xpose.msra.mxu0 0
        %1611 = vmatpush.bf16.xpose.msra.mxu0 0
        %1612 = vmatpush.bf16.xpose.msra.mxu0 0
        %1613 = vmatpush.bf16.xpose.msra.mxu0 %v1604
        %1614 = vmatmul.bf16.gmra.mxu0 %v1601
        %v1615 = vpop.f32.mrf.mxu0
        %v1616 = vadd.f32 0.0, %v1615
        %v1617 = vpop.f32.mrf.mxu0
        %1618 = vdwg.mxu0
        %v1619 = vsel %vm1558, %v1616, -inf
        %1620 = vmax.xlane.f32.xlu0 %v1619
        %v1621 = vpop.xlane.xlu0 %1620
        %v1622 = vsub.f32 %v1616, %v1621
        %v1623 = vmul.f32 %v1622, 1.442695
        %v1624 = vpow.pop %v1623
        %v1625 = vsel %vm1558, %v1624, 0.0
        %1626 = vadd.xlane.f32.xlu0 %v1625
        %v1627 = vpop.xlane.xlu0 %1626
        %v1628 = vrcp.pop %v1627
        %v1629 = vmul.f32 %v1624, %v1628
        %v1630 = vpack.c.bf16 %v1629, %v1629
        %1631 = vrot.lane.b32.xlu0 %v1575, 120
        %v1632 = vpop.permute.xlu0 %1631
        %v1635 = vsel %vm1558, %v1630, 0
        %1637 = vmatpush.bf16.msra.mxu0 0
        %1638 = vmatpush.bf16.msra.mxu0 0
        %1639 = vmatpush.bf16.msra.mxu0 0
        %1640 = vmatpush.bf16.msra.mxu0 0
        %1641 = vmatpush.bf16.msra.mxu0 0
        %1642 = vmatpush.bf16.msra.mxu0 0
        %1643 = vmatpush.bf16.msra.mxu0 0
        %1644 = vmatpush.bf16.msra.mxu0 %v1632
        %1645 = vmatmul.bf16.gmra.mxu0 %v1635
        %v1646 = vpop.f32.mrf.mxu0
        %v1647 = vadd.f32 0.0, %v1646
        %v1648 = vpop.f32.mrf.mxu0
        %1649 = vdwg.mxu0
        %1650 = vrot.lane.b32.xlu0 %v1595, 112
        %v1651 = vpop.permute.xlu0 %1650
        %1652 = vrot.lane.b32.xlu0 %v1537, 112
        %v1653 = vpop.permute.xlu0 %1652
        %v1655 = vsel %vm1538, %v1651, 0
        %v1658 = vsel %vm1538, %v1653, 0
        %1660 = vmatpush.bf16.xpose.msra.mxu0 0
        %1661 = vmatpush.bf16.xpose.msra.mxu0 0
        %1662 = vmatpush.bf16.xpose.msra.mxu0 0
        %1663 = vmatpush.bf16.xpose.msra.mxu0 0
        %1664 = vmatpush.bf16.xpose.msra.mxu0 0
        %1665 = vmatpush.bf16.xpose.msra.mxu0 0
        %1666 = vmatpush.bf16.xpose.msra.mxu0 0
        %1667 = vmatpush.bf16.xpose.msra.mxu0 %v1658
        %1668 = vmatmul.bf16.gmra.mxu0 %v1655
        %v1669 = vpop.f32.mrf.mxu0
        %v1670 = vadd.f32 0.0, %v1669
        %v1671 = vpop.f32.mrf.mxu0
        %1672 = vdwg.mxu0
        %v1673 = vsel %vm1558, %v1670, -inf
        %1674 = vmax.xlane.f32.xlu0 %v1673
        %v1675 = vpop.xlane.xlu0 %1674
        %v1676 = vsub.f32 %v1670, %v1675
        %v1677 = vmul.f32 %v1676, 1.442695
        %v1678 = vpow.pop %v1677
        %v1679 = vsel %vm1558, %v1678, 0.0
        %1680 = vadd.xlane.f32.xlu0 %v1679
        %v1681 = vpop.xlane.xlu0 %1680
        %v1682 = vrcp.pop %v1681
        %v1683 = vmul.f32 %v1678, %v1682
        %v1684 = vpack.c.bf16 %v1683, %v1683
        %1685 = vrot.lane.b32.xlu0 %v1575, 112
        %v1686 = vpop.permute.xlu0 %1685
        %v1689 = vsel %vm1558, %v1684, 0
        %1691 = vmatpush.bf16.msra.mxu0 0
        %1692 = vmatpush.bf16.msra.mxu0 0
        %1693 = vmatpush.bf16.msra.mxu0 0
        %1694 = vmatpush.bf16.msra.mxu0 0
        %1695 = vmatpush.bf16.msra.mxu0 0
        %1696 = vmatpush.bf16.msra.mxu0 0
        %1697 = vmatpush.bf16.msra.mxu0 0
        %1698 = vmatpush.bf16.msra.mxu0 %v1686
        %1699 = vmatmul.bf16.gmra.mxu0 %v1689
        %v1700 = vpop.f32.mrf.mxu0
        %v1701 = vadd.f32 0.0, %v1700
        %v1702 = vpop.f32.mrf.mxu0
        %1703 = vdwg.mxu0
        %1704 = vrot.lane.b32.xlu0 %v1595, 104
        %v1705 = vpop.permute.xlu0 %1704
        %1706 = vrot.lane.b32.xlu0 %v1537, 104
        %v1707 = vpop.permute.xlu0 %1706
        %v1709 = vsel %vm1538, %v1705, 0
        %v1712 = vsel %vm1538, %v1707, 0
        %1714 = vmatpush.bf16.xpose.msra.mxu0 0
        %1715 = vmatpush.bf16.xpose.msra.mxu0 0
        %1716 = vmatpush.bf16.xpose.msra.mxu0 0
        %1717 = vmatpush.bf16.xpose.msra.mxu0 0
        %1718 = vmatpush.bf16.xpose.msra.mxu0 0
        %1719 = vmatpush.bf16.xpose.msra.mxu0 0
        %1720 = vmatpush.bf16.xpose.msra.mxu0 0
        %1721 = vmatpush.bf16.xpose.msra.mxu0 %v1712
        %1722 = vmatmul.bf16.gmra.mxu0 %v1709
        %v1723 = vpop.f32.mrf.mxu0
        %v1724 = vadd.f32 0.0, %v1723
        %v1725 = vpop.f32.mrf.mxu0
        %1726 = vdwg.mxu0
        %v1727 = vsel %vm1558, %v1724, -inf
        %1728 = vmax.xlane.f32.xlu0 %v1727
        %v1729 = vpop.xlane.xlu0 %1728
        %v1730 = vsub.f32 %v1724, %v1729
        %v1731 = vmul.f32 %v1730, 1.442695
        %v1732 = vpow.pop %v1731
        %v1733 = vsel %vm1558, %v1732, 0.0
        %1734 = vadd.xlane.f32.xlu0 %v1733
        %v1735 = vpop.xlane.xlu0 %1734
        %v1736 = vrcp.pop %v1735
        %v1737 = vmul.f32 %v1732, %v1736
        %v1738 = vpack.c.bf16 %v1737, %v1737
        %1739 = vrot.lane.b32.xlu0 %v1575, 104
        %v1740 = vpop.permute.xlu0 %1739
        %v1743 = vsel %vm1558, %v1738, 0
        %1745 = vmatpush.bf16.msra.mxu0 0
        %1746 = vmatpush.bf16.msra.mxu0 0
        %1747 = vmatpush.bf16.msra.mxu0 0
        %1748 = vmatpush.bf16.msra.mxu0 0
        %1749 = vmatpush.bf16.msra.mxu0 0
        %1750 = vmatpush.bf16.msra.mxu0 0
        %1751 = vmatpush.bf16.msra.mxu0 0
        %1752 = vmatpush.bf16.msra.mxu0 %v1740
        %1753 = vmatmul.bf16.gmra.mxu0 %v1743
        %v1754 = vpop.f32.mrf.mxu0
        %v1755 = vadd.f32 0.0, %v1754
        %v1756 = vpop.f32.mrf.mxu0
        %1757 = vdwg.mxu0
        %1759 = vrot.lane.b32.xlu0 %v1647, 8
        %v1760 = vpop.permute.xlu0 %1759
        %1763 = vrot.lane.b32.xlu0 %v1701, 16
        %v1764 = vpop.permute.xlu0 %1763
        %1767 = vrot.lane.b32.xlu0 %v1755, 24
        %v1768 = vpop.permute.xlu0 %1767
        %v1770 = vsel %vm1538, %v1590, %v1760
        %v1771 = vsel %vm1558, %v1770, %v1764
        %vm1772 = vcmask 195584
        %v1773 = vsel %vm1772, %v1771, %v1768
        %v1774 = vld [vmem:[%s27] sm:$0xff]
        %v1775 = vld [vmem:[%s27 + $0x8] sm:$0xff]
        %v1776 = vld [vmem:[%s27 + $0x10] sm:$0xff]
        %v1777 = vld [vmem:[%s27 + $0x18] sm:$0xff]
        %v1778 = vpack.c.bf16 %v1773, %v1773
        %v1779 = vpack.c.bf16 %v1775, %v1774
        %v1780 = vpack.c.bf16 %v1777, %v1776
        %v1782 = vsel %vm1352, %v1778, 0
        %1784 = vmatpush.bf16.msra.mxu0 0
        %1785 = vmatpush.bf16.msra.mxu0 0
        %1786 = vmatpush.bf16.msra.mxu0 0
        %1787 = vmatpush.bf16.msra.mxu0 0
        %1788 = vmatpush.bf16.msra.mxu0 0
        %1789 = vmatpush.bf16.msra.mxu0 0
        %1790 = vmatpush.bf16.msra.mxu0 %v1780
        %1791 = vmatpush.bf16.msra.mxu0 %v1779
        %1792 = vmatmul.bf16.gmra.mxu0 %v1782
        %v1793 = vpop.f32.mrf.mxu0
        %v1794 = vadd.f32 0.0, %v1793
        %v1795 = vpop.f32.mrf.mxu0
        %1796 = vdwg.mxu0
        %v1797 = vadd.f32 %v1389, %v1794
        %v1798 = vld [vmem:[%s29] sm:$0x1]
        %v1800 = vperm.slane %v1798, 0
        %v1802 = vadd.f32 %v1797, %v1800
        %v1803 = vld [vmem:[%s31] sm:$0x1]
        %v1804 = vld [vmem:[%s33] sm:$0x1]
        %v1805 = vsel %vm1352, %v1802, 0.0
        %1806 = vadd.xlane.f32.xlu0 %v1805
        %v1807 = vpop.xlane.xlu0 %1806
        %v1808 = vmul.f32 %v1807, %v1362
        %v1809 = vsub.f32 %v1802, %v1808
        %v1810 = vmul.f32 %v1809, %v1809
        %v1811 = vsel %vm1352, %v1810, 0.0
        %1812 = vadd.xlane.f32.xlu0 %v1811
        %v1813 = vpop.xlane.xlu0 %1812
        %v1814 = vmul.f32 %v1813, %v1362
        %v1815 = vadd.f32 %v1814, 1e-05
        %v1816 = vrsqrt.pop %v1815
        %v1817 = vmul.f32 %v1816, %v1815
        %v1818 = vmul.f32 %v1817, %v1816
        %v1819 = vmul.f32 0.5, %v1818
        %v1820 = vsub.f32 1.5, %v1819
        %v1821 = vmul.f32 %v1816, %v1820
        %vm1822 = vweird.f32 %v1815
        %vm1823 = vweird.f32 %v1816
        %vm1824 = vmor %vm1822, %vm1823
        %v1825 = vsel %vm1824, %v1816, %v1821
        %v1826 = vmul.f32 %v1809, %v1825
        %v1828 = vperm.slane %v1803, 0
        %v1830 = vmul.f32 %v1826, %v1828
        %v1832 = vperm.slane %v1804, 0
        %v1834 = vadd.f32 %v1830, %v1832
        %v1835 = vld [vmem:[%s35] sm:$0xff]
        %v1836 = vld [vmem:[%s35 + $0x8] sm:$0xff]
        %v1837 = vld [vmem:[%s35 + $0x10] sm:$0xff]
        %v1838 = vld [vmem:[%s35 + $0x18] sm:$0xff]
        %v1839 = vpack.c.bf16 %v1834, %v1834
        %v1840 = vpack.c.bf16 %v1836, %v1835
        %v1841 = vpack.c.bf16 %v1838, %v1837
        %v1842 = vld [vmem:[%s37] sm:$0x1]
        %v1844 = vperm.slane %v1842, 0
        %v1847 = vsel %vm1352, %v1839, 0
        %1849 = vmatpush.bf16.msra.mxu0 0
        %1850 = vmatpush.bf16.msra.mxu0 0
        %1851 = vmatpush.bf16.msra.mxu0 0
        %1852 = vmatpush.bf16.msra.mxu0 0
        %1853 = vmatpush.bf16.msra.mxu0 0
        %1854 = vmatpush.bf16.msra.mxu0 0
        %1855 = vmatpush.bf16.msra.mxu0 %v1841
        %1856 = vmatpush.bf16.msra.mxu0 %v1840
        %1857 = vmatmul.bf16.gmra.mxu0 %v1847
        %v1858 = vpop.f32.mrf.mxu0
        %v1859 = vadd.f32 %v1844, %v1858
        %v1860 = vpop.f32.mrf.mxu0
        %1861 = vdwg.mxu0
        %v1862 = vmul.f32 %v1859, 0.5
        %v1863 = vmul.f32 %v1859, 0.70710677
        %vm1864 = vcmp.ge.f32.partialorder %v1863, 0.0
        %v1865 = vsel %vm1864, 1.0, -1.0
        %v1866 = vand.u32 2147483647, %v1863
        %v1867 = vmul.f32 %v1866, 0.3275911
        %v1868 = vadd.f32 %v1867, 1.0
        %v1869 = vrcp.pop %v1868
        %v1870 = vmul.f32 %v1868, %v1869
        %v1871 = vsub.f32 1.0, %v1870
        %v1872 = vmul.f32 %v1869, %v1871
        %v1873 = vadd.f32 %v1869, %v1872
        %vm1874 = vweird.f32 %v1868
        %vm1875 = vweird.f32 %v1869
        %vm1876 = vmor %vm1874, %vm1875
        %v1877 = vsel %vm1876, %v1869, %v1873
        %v1878 = vand.u32 2147483647, %v1868
        %vm1879 = vcmp.eq.f32.partialorder %v1878, 8.507059e+37
        %v1880 = vand.u32 %v1868, 2147483648
        %v1881 = vor.u32 1.1754944e-38, %v1880
        %v1882 = vsel %vm1879, %v1881, %v1877
        %v1883 = vmul.f32 1.0, %v1882
        %v1884 = vmul.f32 %v1883, 1.0614054
        %v1885 = vadd.f32 %v1884, -1.4531521
        %v1886 = vmul.f32 %v1883, %v1885
        %v1887 = vadd.f32 %v1886, 1.4214138
        %v1888 = vmul.f32 %v1883, %v1887
        %v1889 = vadd.f32 %v1888, -0.28449672
        %v1890 = vmul.f32 %v1883, %v1889
        %v1891 = vadd.f32 %v1890, 0.2548296
        %v1892 = vmul.f32 %v1883, %v1891
        %v1893 = vsub.f32 0.0, %v1866
        %v1894 = vmul.f32 %v1893, %v1866
        %v1895 = vmul.f32 %v1894, 1.442695
        %v1896 = vpow.pop %v1895
        %v1897 = vmul.f32 %v1892, %v1896
        %v1898 = vsub.f32 1.0, %v1897
        %v1899 = vmul.f32 %v1865, %v1898
        %v1900 = vadd.f32 %v1899, 1.0
        %v1901 = vmul.f32 %v1862, %v1900
        %v1902 = vld [vmem:[%s39] sm:$0xff]
        %v1903 = vld [vmem:[%s39 + $0x8] sm:$0xff]
        %v1904 = vld [vmem:[%s39 + $0x10] sm:$0xff]
        %v1905 = vld [vmem:[%s39 + $0x18] sm:$0xff]
        %v1906 = vld [vmem:[%s39 + $0x20] sm:$0xff]
        %v1907 = vld [vmem:[%s39 + $0x28] sm:$0xff]
        %v1908 = vld [vmem:[%s39 + $0x30] sm:$0xff]
        %v1909 = vld [vmem:[%s39 + $0x38] sm:$0xff]
        %v1910 = vld [vmem:[%s39 + $0x40] sm:$0xff]
        %v1911 = vld [vmem:[%s39 + $0x48] sm:$0xff]
        %v1912 = vld [vmem:[%s39 + $0x50] sm:$0xff]
        %v1913 = vld [vmem:[%s39 + $0x58] sm:$0xff]
        %v1914 = vld [vmem:[%s39 + $0x60] sm:$0xff]
        %v1915 = vld [vmem:[%s39 + $0x68] sm:$0xff]
        %v1916 = vld [vmem:[%s39 + $0x70] sm:$0xff]
        %v1917 = vld [vmem:[%s39 + $0x78] sm:$0xff]
        %v1918 = vpack.c.bf16 %v1901, %v1901
        %v1919 = vpack.c.bf16 %v1903, %v1902
        %v1920 = vpack.c.bf16 %v1905, %v1904
        %v1921 = vpack.c.bf16 %v1907, %v1906
        %v1922 = vpack.c.bf16 %v1909, %v1908
        %v1923 = vpack.c.bf16 %v1911, %v1910
        %v1924 = vpack.c.bf16 %v1913, %v1912
        %v1925 = vpack.c.bf16 %v1915, %v1914
        %v1926 = vpack.c.bf16 %v1917, %v1916
        %1927 = vmatpush.bf16.msra.mxu0 %v1926
        %1928 = vmatpush.bf16.msra.mxu0 %v1925
        %1929 = vmatpush.bf16.msra.mxu0 %v1924
        %1930 = vmatpush.bf16.msra.mxu0 %v1923
        %1931 = vmatpush.bf16.msra.mxu0 %v1922
        %1932 = vmatpush.bf16.msra.mxu0 %v1921
        %1933 = vmatpush.bf16.msra.mxu0 %v1920
        %1934 = vmatpush.bf16.msra.mxu0 %v1919
        %1935 = vmatmul.bf16.gmra.mxu0 %v1918
        %v1936 = vpop.f32.mrf.mxu0
        %v1937 = vadd.f32 0.0, %v1936
        %v1938 = vpop.f32.mrf.mxu0
        %1939 = vdwg.mxu0
        %v1940 = vadd.f32 %v1802, %v1937
        %v1941 = vld [vmem:[%s41] sm:$0x1]
        %v1943 = vperm.slane %v1941, 0
        %v1945 = vadd.f32 %v1940, %v1943
        %v1946 = vld [vmem:[%s43] sm:$0x1]
        %v1947 = vld [vmem:[%s45] sm:$0x1]
        %v1948 = vsel %vm1352, %v1945, 0.0
        %1949 = vadd.xlane.f32.xlu0 %v1948
        %v1950 = vpop.xlane.xlu0 %1949
        %v1951 = vmul.f32 %v1950, %v1362
        %v1952 = vsub.f32 %v1945, %v1951
        %v1953 = vmul.f32 %v1952, %v1952
        %v1954 = vsel %vm1352, %v1953, 0.0
        %1955 = vadd.xlane.f32.xlu0 %v1954
        %v1956 = vpop.xlane.xlu0 %1955
        %v1957 = vmul.f32 %v1956, %v1362
        %v1958 = vadd.f32 %v1957, 1e-05
        %v1959 = vrsqrt.pop %v1958
        %v1960 = vmul.f32 %v1959, %v1958
        %v1961 = vmul.f32 %v1960, %v1959
        %v1962 = vmul.f32 0.5, %v1961
        %v1963 = vsub.f32 1.5, %v1962
        %v1964 = vmul.f32 %v1959, %v1963
        %vm1965 = vweird.f32 %v1958
        %vm1966 = vweird.f32 %v1959
        %vm1967 = vmor %vm1965, %vm1966
        %v1968 = vsel %vm1967, %v1959, %v1964
        %v1969 = vmul.f32 %v1952, %v1968
        %v1971 = vperm.slane %v1946, 0
        %v1973 = vmul.f32 %v1969, %v1971
        %v1975 = vperm.slane %v1947, 0
        %v1977 = vadd.f32 %v1973, %v1975
        %v1978 = vld [vmem:[%s1181] sm:$0xff]
        %v1979 = vadd.f32 %v1978, %v1977
        %v1980 = vld [vmem:[#allocation7] sm:$0x1]
        %v1981 = vld [vmem:[#allocation8] sm:$0x1]
        %v1982 = vsel %vm1352, %v1979, 0.0
        %1983 = vadd.xlane.f32.xlu0 %v1982
        %v1984 = vpop.xlane.xlu0 %1983
        %v1985 = vmul.f32 %v1984, %v1362
        %v1986 = vsub.f32 %v1979, %v1985
        %v1987 = vmul.f32 %v1986, %v1986
        %v1988 = vsel %vm1352, %v1987, 0.0
        %1989 = vadd.xlane.f32.xlu0 %v1988
        %v1990 = vpop.xlane.xlu0 %1989
        %v1991 = vmul.f32 %v1990, %v1362
        %v1992 = vadd.f32 %v1991, 1e-05
        %v1993 = vrsqrt.pop %v1992
        %v1994 = vmul.f32 %v1993, %v1992
        %v1995 = vmul.f32 %v1994, %v1993
        %v1996 = vmul.f32 0.5, %v1995
        %v1997 = vsub.f32 1.5, %v1996
        %v1998 = vmul.f32 %v1993, %v1997
        %vm1999 = vweird.f32 %v1992
        %vm2000 = vweird.f32 %v1993
        %vm2001 = vmor %vm1999, %vm2000
        %v2002 = vsel %vm2001, %v1993, %v1998
        %v2003 = vmul.f32 %v1986, %v2002
        %v2005 = vperm.slane %v1980, 0
        %v2007 = vmul.f32 %v2003, %v2005
        %v2009 = vperm.slane %v1981, 0
        %v2011 = vadd.f32 %v2007, %v2009
        %v2012 = vld [vmem:[%s51] sm:$0xff]
        %v2013 = vld [vmem:[%s51 + $0x8] sm:$0xff]
        %v2014 = vld [vmem:[%s51 + $0x10] sm:$0xff]
        %v2015 = vld [vmem:[%s51 + $0x18] sm:$0xff]
        %v2016 = vpack.c.bf16 %v2011, %v2011
        %v2017 = vpack.c.bf16 %v2013, %v2012
        %v2018 = vpack.c.bf16 %v2015, %v2014
        %v2019 = vld [vmem:[#allocation10] sm:$0x1]
        %v2021 = vperm.slane %v2019, 0
        %v2024 = vsel %vm1352, %v2016, 0
        %2026 = vmatpush.bf16.msra.mxu0 0
        %2027 = vmatpush.bf16.msra.mxu0 0
        %2028 = vmatpush.bf16.msra.mxu0 0
        %2029 = vmatpush.bf16.msra.mxu0 0
        %2030 = vmatpush.bf16.msra.mxu0 0
        %2031 = vmatpush.bf16.msra.mxu0 0
        %2032 = vmatpush.bf16.msra.mxu0 %v2018
        %2033 = vmatpush.bf16.msra.mxu0 %v2017
        %2034 = vmatmul.bf16.gmra.mxu0 %v2024
        %v2035 = vpop.f32.mrf.mxu0
        %v2036 = vadd.f32 %v2021, %v2035
        %v2037 = vpop.f32.mrf.mxu0
        %2038 = vdwg.mxu0
        %v2039 = vmul.f32 %v2036, 0.35355338
        %v2040 = vpack.c.bf16 %v2039, %v2039
        %v2041 = vpack.c.bf16 %v2036, %v2036
        %v2043 = vunpack.c.l.b16 %v2041
        %v2044 = vpack.c.b16 %v2043, %v2043
        %2045 = vrot.lane.b32.xlu0 %v2044, 96
        %v2046 = vpop.permute.xlu0 %2045
        %v2048 = vsel %vm1538, %v2040, 0
        %v2051 = vsel %vm1538, %v2046, 0
        %2053 = vmatpush.bf16.xpose.msra.mxu0 0
        %2054 = vmatpush.bf16.xpose.msra.mxu0 0
        %2055 = vmatpush.bf16.xpose.msra.mxu0 0
        %2056 = vmatpush.bf16.xpose.msra.mxu0 0
        %2057 = vmatpush.bf16.xpose.msra.mxu0 0
        %2058 = vmatpush.bf16.xpose.msra.mxu0 0
        %2059 = vmatpush.bf16.xpose.msra.mxu0 0
        %2060 = vmatpush.bf16.xpose.msra.mxu0 %v2051
        %2061 = vmatmul.bf16.gmra.mxu0 %v2048
        %v2062 = vpop.f32.mrf.mxu0
        %v2063 = vadd.f32 0.0, %v2062
        %v2064 = vpop.f32.mrf.mxu0
        %2065 = vdwg.mxu0
        %v2066 = vsel %vm1538, %v2063, -inf
        %2067 = vmax.xlane.f32.xlu0 %v2066
        %v2068 = vpop.xlane.xlu0 %2067
        %v2069 = vsub.f32 %v2063, %v2068
        %v2070 = vmul.f32 %v2069, 1.442695
        %v2071 = vpow.pop %v2070
        %v2072 = vsel %vm1538, %v2071, 0.0
        %2073 = vadd.xlane.f32.xlu0 %v2072
        %v2074 = vpop.xlane.xlu0 %2073
        %v2075 = vrcp.pop %v2074
        %v2076 = vmul.f32 %v2071, %v2075
        %v2077 = vpack.c.bf16 %v2076, %v2076
        %2078 = vrot.lane.b32.xlu0 %v2044, 64
        %v2079 = vpop.permute.xlu0 %2078
        %v2081 = vsel %vm1538, %v2077, 0
        %vm2083 = vcmask 1043456
        %v2085 = vsel %vm2083, %v2079, 0
        %2087 = vmatpush.bf16.msra.mxu0 0
        %2088 = vmatpush.bf16.msra.mxu0 0
        %2089 = vmatpush.bf16.msra.mxu0 0
        %2090 = vmatpush.bf16.msra.mxu0 0
        %2091 = vmatpush.bf16.msra.mxu0 0
        %2092 = vmatpush.bf16.msra.mxu0 0
        %2093 = vmatpush.bf16.msra.mxu0 0
        %2094 = vmatpush.bf16.msra.mxu0 %v2085
        %2095 = vmatmul.bf16.gmra.mxu0 %v2081
        %v2096 = vpop.f32.mrf.mxu0
        %v2097 = vadd.f32 0.0, %v2096
        %v2098 = vpop.f32.mrf.mxu0
        %2099 = vdwg.mxu0
        %v2101 = vunpack.c.l.b16 %v2040
        %v2102 = vpack.c.b16 %v2101, %v2101
        %2103 = vrot.lane.b32.xlu0 %v2102, 120
        %v2104 = vpop.permute.xlu0 %2103
        %2105 = vrot.lane.b32.xlu0 %v2044, 88
        %v2106 = vpop.permute.xlu0 %2105
        %v2108 = vsel %vm1538, %v2104, 0
        %v2111 = vsel %vm1538, %v2106, 0
        %2113 = vmatpush.bf16.xpose.msra.mxu0 0
        %2114 = vmatpush.bf16.xpose.msra.mxu0 0
        %2115 = vmatpush.bf16.xpose.msra.mxu0 0
        %2116 = vmatpush.bf16.xpose.msra.mxu0 0
        %2117 = vmatpush.bf16.xpose.msra.mxu0 0
        %2118 = vmatpush.bf16.xpose.msra.mxu0 0
        %2119 = vmatpush.bf16.xpose.msra.mxu0 0
        %2120 = vmatpush.bf16.xpose.msra.mxu0 %v2111
        %2121 = vmatmul.bf16.gmra.mxu0 %v2108
        %v2122 = vpop.f32.mrf.mxu0
        %v2123 = vadd.f32 0.0, %v2122
        %v2124 = vpop.f32.mrf.mxu0
        %2125 = vdwg.mxu0
        %v2126 = vsel %vm1538, %v2123, -inf
        %2127 = vmax.xlane.f32.xlu0 %v2126
        %v2128 = vpop.xlane.xlu0 %2127
        %v2129 = vsub.f32 %v2123, %v2128
        %v2130 = vmul.f32 %v2129, 1.442695
        %v2131 = vpow.pop %v2130
        %v2132 = vsel %vm1538, %v2131, 0.0
        %2133 = vadd.xlane.f32.xlu0 %v2132
        %v2134 = vpop.xlane.xlu0 %2133
        %v2135 = vrcp.pop %v2134
        %v2136 = vmul.f32 %v2131, %v2135
        %v2137 = vpack.c.bf16 %v2136, %v2136
        %2138 = vrot.lane.b32.xlu0 %v2044, 56
        %v2139 = vpop.permute.xlu0 %2138
        %v2141 = vsel %vm1538, %v2137, 0
        %v2144 = vsel %vm2083, %v2139, 0
        %2146 = vmatpush.bf16.msra.mxu0 0
        %2147 = vmatpush.bf16.msra.mxu0 0
        %2148 = vmatpush.bf16.msra.mxu0 0
        %2149 = vmatpush.bf16.msra.mxu0 0
        %2150 = vmatpush.bf16.msra.mxu0 0
        %2151 = vmatpush.bf16.msra.mxu0 0
        %2152 = vmatpush.bf16.msra.mxu0 0
        %2153 = vmatpush.bf16.msra.mxu0 %v2144
        %2154 = vmatmul.bf16.gmra.mxu0 %v2141
        %v2155 = vpop.f32.mrf.mxu0
        %v2156 = vadd.f32 0.0, %v2155
        %v2157 = vpop.f32.mrf.mxu0
        %2158 = vdwg.mxu0
        %2159 = vrot.lane.b32.xlu0 %v2102, 112
        %v2160 = vpop.permute.xlu0 %2159
        %2161 = vrot.lane.b32.xlu0 %v2044, 80
        %v2162 = vpop.permute.xlu0 %2161
        %v2164 = vsel %vm1538, %v2160, 0
        %v2167 = vsel %vm1538, %v2162, 0
        %2169 = vmatpush.bf16.xpose.msra.mxu0 0
        %2170 = vmatpush.bf16.xpose.msra.mxu0 0
        %2171 = vmatpush.bf16.xpose.msra.mxu0 0
        %2172 = vmatpush.bf16.xpose.msra.mxu0 0
        %2173 = vmatpush.bf16.xpose.msra.mxu0 0
        %2174 = vmatpush.bf16.xpose.msra.mxu0 0
        %2175 = vmatpush.bf16.xpose.msra.mxu0 0
        %2176 = vmatpush.bf16.xpose.msra.mxu0 %v2167
        %2177 = vmatmul.bf16.gmra.mxu0 %v2164
        %v2178 = vpop.f32.mrf.mxu0
        %v2179 = vadd.f32 0.0, %v2178
        %v2180 = vpop.f32.mrf.mxu0
        %2181 = vdwg.mxu0
        %v2182 = vsel %vm1538, %v2179, -inf
        %2183 = vmax.xlane.f32.xlu0 %v2182
        %v2184 = vpop.xlane.xlu0 %2183
        %v2185 = vsub.f32 %v2179, %v2184
        %v2186 = vmul.f32 %v2185, 1.442695
        %v2187 = vpow.pop %v2186
        %v2188 = vsel %vm1538, %v2187, 0.0
        %2189 = vadd.xlane.f32.xlu0 %v2188
        %v2190 = vpop.xlane.xlu0 %2189
        %v2191 = vrcp.pop %v2190
        %v2192 = vmul.f32 %v2187, %v2191
        %v2193 = vpack.c.bf16 %v2192, %v2192
        %2194 = vrot.lane.b32.xlu0 %v2044, 48
        %v2195 = vpop.permute.xlu0 %2194
        %v2197 = vsel %vm1538, %v2193, 0
        %v2200 = vsel %vm2083, %v2195, 0
        %2202 = vmatpush.bf16.msra.mxu0 0
        %2203 = vmatpush.bf16.msra.mxu0 0
        %2204 = vmatpush.bf16.msra.mxu0 0
        %2205 = vmatpush.bf16.msra.mxu0 0
        %2206 = vmatpush.bf16.msra.mxu0 0
        %2207 = vmatpush.bf16.msra.mxu0 0
        %2208 = vmatpush.bf16.msra.mxu0 0
        %2209 = vmatpush.bf16.msra.mxu0 %v2200
        %2210 = vmatmul.bf16.gmra.mxu0 %v2197
        %v2211 = vpop.f32.mrf.mxu0
        %v2212 = vadd.f32 0.0, %v2211
        %v2213 = vpop.f32.mrf.mxu0
        %2214 = vdwg.mxu0
        %2215 = vrot.lane.b32.xlu0 %v2102, 104
        %v2216 = vpop.permute.xlu0 %2215
        %2217 = vrot.lane.b32.xlu0 %v2044, 72
        %v2218 = vpop.permute.xlu0 %2217
        %v2220 = vsel %vm1538, %v2216, 0
        %v2223 = vsel %vm1538, %v2218, 0
        %2225 = vmatpush.bf16.xpose.msra.mxu0 0
        %2226 = vmatpush.bf16.xpose.msra.mxu0 0
        %2227 = vmatpush.bf16.xpose.msra.mxu0 0
        %2228 = vmatpush.bf16.xpose.msra.mxu0 0
        %2229 = vmatpush.bf16.xpose.msra.mxu0 0
        %2230 = vmatpush.bf16.xpose.msra.mxu0 0
        %2231 = vmatpush.bf16.xpose.msra.mxu0 0
        %2232 = vmatpush.bf16.xpose.msra.mxu0 %v2223
        %2233 = vmatmul.bf16.gmra.mxu0 %v2220
        %v2234 = vpop.f32.mrf.mxu0
        %v2235 = vadd.f32 0.0, %v2234
        %v2236 = vpop.f32.mrf.mxu0
        %2237 = vdwg.mxu0
        %v2238 = vsel %vm1538, %v2235, -inf
        %2239 = vmax.xlane.f32.xlu0 %v2238
        %v2240 = vpop.xlane.xlu0 %2239
        %v2241 = vsub.f32 %v2235, %v2240
        %v2242 = vmul.f32 %v2241, 1.442695
        %v2243 = vpow.pop %v2242
        %v2244 = vsel %vm1538, %v2243, 0.0
        %2245 = vadd.xlane.f32.xlu0 %v2244
        %v2246 = vpop.xlane.xlu0 %2245
        %v2247 = vrcp.pop %v2246
        %v2248 = vmul.f32 %v2243, %v2247
        %v2249 = vpack.c.bf16 %v2248, %v2248
        %2250 = vrot.lane.b32.xlu0 %v2044, 40
        %v2251 = vpop.permute.xlu0 %2250
        %v2253 = vsel %vm1538, %v2249, 0
        %v2256 = vsel %vm2083, %v2251, 0
        %2258 = vmatpush.bf16.msra.mxu0 0
        %2259 = vmatpush.bf16.msra.mxu0 0
        %2260 = vmatpush.bf16.msra.mxu0 0
        %2261 = vmatpush.bf16.msra.mxu0 0
        %2262 = vmatpush.bf16.msra.mxu0 0
        %2263 = vmatpush.bf16.msra.mxu0 0
        %2264 = vmatpush.bf16.msra.mxu0 0
        %2265 = vmatpush.bf16.msra.mxu0 %v2256
        %2266 = vmatmul.bf16.gmra.mxu0 %v2253
        %v2267 = vpop.f32.mrf.mxu0
        %v2268 = vadd.f32 0.0, %v2267
        %v2269 = vpop.f32.mrf.mxu0
        %2270 = vdwg.mxu0
        %2272 = vrot.lane.b32.xlu0 %v2156, 8
        %v2273 = vpop.permute.xlu0 %2272
        %2276 = vrot.lane.b32.xlu0 %v2212, 16
        %v2277 = vpop.permute.xlu0 %2276
        %2280 = vrot.lane.b32.xlu0 %v2268, 24
        %v2281 = vpop.permute.xlu0 %2280
        %v2283 = vsel %vm1538, %v2097, %v2273
        %v2284 = vsel %vm1558, %v2283, %v2277
        %v2285 = vsel %vm1772, %v2284, %v2281
        %v2286 = vld [vmem:[%s55] sm:$0xff]
        %v2287 = vld [vmem:[%s55 + $0x8] sm:$0xff]
        %v2288 = vld [vmem:[%s55 + $0x10] sm:$0xff]
        %v2289 = vld [vmem:[%s55 + $0x18] sm:$0xff]
        %v2290 = vpack.c.bf16 %v2285, %v2285
        %v2291 = vpack.c.bf16 %v2287, %v2286
        %v2292 = vpack.c.bf16 %v2289, %v2288
        %v2294 = vsel %vm1352, %v2290, 0
        %2296 = vmatpush.bf16.msra.mxu0 0
        %2297 = vmatpush.bf16.msra.mxu0 0
        %2298 = vmatpush.bf16.msra.mxu0 0
        %2299 = vmatpush.bf16.msra.mxu0 0
        %2300 = vmatpush.bf16.msra.mxu0 0
        %2301 = vmatpush.bf16.msra.mxu0 0
        %2302 = vmatpush.bf16.msra.mxu0 %v2292
        %2303 = vmatpush.bf16.msra.mxu0 %v2291
        %2304 = vmatmul.bf16.gmra.mxu0 %v2294
        %v2305 = vpop.f32.mrf.mxu0
        %v2306 = vadd.f32 0.0, %v2305
        %v2307 = vpop.f32.mrf.mxu0
        %2308 = vdwg.mxu0
        %v2309 = vadd.f32 %v1979, %v2306
        %v2310 = vld [vmem:[#allocation11] sm:$0x1]
        %v2312 = vperm.slane %v2310, 0
        %v2314 = vadd.f32 %v2309, %v2312
        %v2315 = vld [vmem:[#allocation13] sm:$0x1]
        %v2316 = vld [vmem:[#allocation14] sm:$0x1]
        %v2317 = vsel %vm1352, %v2314, 0.0
        %2318 = vadd.xlane.f32.xlu0 %v2317
        %v2319 = vpop.xlane.xlu0 %2318
        %v2320 = vmul.f32 %v2319, %v1362
        %v2321 = vsub.f32 %v2314, %v2320
        %v2322 = vmul.f32 %v2321, %v2321
        %v2323 = vsel %vm1352, %v2322, 0.0
        %2324 = vadd.xlane.f32.xlu0 %v2323
        %v2325 = vpop.xlane.xlu0 %2324
        %v2326 = vmul.f32 %v2325, %v1362
        %v2327 = vadd.f32 %v2326, 1e-05
        %v2328 = vrsqrt.pop %v2327
        %v2329 = vmul.f32 %v2328, %v2327
        %v2330 = vmul.f32 %v2329, %v2328
        %v2331 = vmul.f32 0.5, %v2330
        %v2332 = vsub.f32 1.5, %v2331
        %v2333 = vmul.f32 %v2328, %v2332
        %vm2334 = vweird.f32 %v2327
        %vm2335 = vweird.f32 %v2328
        %vm2336 = vmor %vm2334, %vm2335
        %v2337 = vsel %vm2336, %v2328, %v2333
        %v2338 = vmul.f32 %v2321, %v2337
        %v2340 = vperm.slane %v2315, 0
        %v2342 = vmul.f32 %v2338, %v2340
        %v2344 = vperm.slane %v2316, 0
        %v2346 = vadd.f32 %v2342, %v2344
        %v2347 = vld [vmem:[%s63] sm:$0xff]
        %v2348 = vld [vmem:[%s63 + $0x8] sm:$0xff]
        %v2349 = vld [vmem:[%s63 + $0x10] sm:$0xff]
        %v2350 = vld [vmem:[%s63 + $0x18] sm:$0xff]
        %v2351 = vpack.c.bf16 %v2346, %v2346
        %v2352 = vpack.c.bf16 %v2348, %v2347
        %v2353 = vpack.c.bf16 %v2350, %v2349
        %v2354 = vld [vmem:[#allocation16] sm:$0x1]
        %v2356 = vperm.slane %v2354, 0
        %v2359 = vsel %vm1352, %v2351, 0
        %2361 = vmatpush.bf16.msra.mxu0 0
        %2362 = vmatpush.bf16.msra.mxu0 0
        %2363 = vmatpush.bf16.msra.mxu0 0
        %2364 = vmatpush.bf16.msra.mxu0 0
        %2365 = vmatpush.bf16.msra.mxu0 0
        %2366 = vmatpush.bf16.msra.mxu0 0
        %2367 = vmatpush.bf16.msra.mxu0 %v2353
        %2368 = vmatpush.bf16.msra.mxu0 %v2352
        %2369 = vmatmul.bf16.gmra.mxu0 %v2359
        %v2370 = vpop.f32.mrf.mxu0
        %v2371 = vadd.f32 %v2356, %v2370
        %v2372 = vpop.f32.mrf.mxu0
        %2373 = vdwg.mxu0
        %v2374 = vmul.f32 %v2371, 0.5
        %v2375 = vmul.f32 %v2371, 0.70710677
        %vm2376 = vcmp.ge.f32.partialorder %v2375, 0.0
        %v2377 = vsel %vm2376, 1.0, -1.0
        %v2378 = vand.u32 2147483647, %v2375
        %v2379 = vmul.f32 %v2378, 0.3275911
        %v2380 = vadd.f32 %v2379, 1.0
        %v2381 = vrcp.pop %v2380
        %v2382 = vmul.f32 %v2380, %v2381
        %v2383 = vsub.f32 1.0, %v2382
        %v2384 = vmul.f32 %v2381, %v2383
        %v2385 = vadd.f32 %v2381, %v2384
        %vm2386 = vweird.f32 %v2380
        %vm2387 = vweird.f32 %v2381
        %vm2388 = vmor %vm2386, %vm2387
        %v2389 = vsel %vm2388, %v2381, %v2385
        %v2390 = vand.u32 2147483647, %v2380
        %vm2391 = vcmp.eq.f32.partialorder %v2390, 8.507059e+37
        %v2392 = vand.u32 %v2380, 2147483648
        %v2393 = vor.u32 1.1754944e-38, %v2392
        %v2394 = vsel %vm2391, %v2393, %v2389
        %v2395 = vmul.f32 1.0, %v2394
        %v2396 = vmul.f32 %v2395, 1.0614054
        %v2397 = vadd.f32 %v2396, -1.4531521
        %v2398 = vmul.f32 %v2395, %v2397
        %v2399 = vadd.f32 %v2398, 1.4214138
        %v2400 = vmul.f32 %v2395, %v2399
        %v2401 = vadd.f32 %v2400, -0.28449672
        %v2402 = vmul.f32 %v2395, %v2401
        %v2403 = vadd.f32 %v2402, 0.2548296
        %v2404 = vmul.f32 %v2395, %v2403
        %v2405 = vsub.f32 0.0, %v2378
        %v2406 = vmul.f32 %v2405, %v2378
        %v2407 = vmul.f32 %v2406, 1.442695
        %v2408 = vpow.pop %v2407
        %v2409 = vmul.f32 %v2404, %v2408
        %v2410 = vsub.f32 1.0, %v2409
        %v2411 = vmul.f32 %v2377, %v2410
        %v2412 = vadd.f32 %v2411, 1.0
        %v2413 = vmul.f32 %v2374, %v2412
        %v2414 = vld [vmem:[%s67] sm:$0xff]
        %v2415 = vld [vmem:[%s67 + $0x8] sm:$0xff]
        %v2416 = vld [vmem:[%s67 + $0x10] sm:$0xff]
        %v2417 = vld [vmem:[%s67 + $0x18] sm:$0xff]
        %v2418 = vld [vmem:[%s67 + $0x20] sm:$0xff]
        %v2419 = vld [vmem:[%s67 + $0x28] sm:$0xff]
        %v2420 = vld [vmem:[%s67 + $0x30] sm:$0xff]
        %v2421 = vld [vmem:[%s67 + $0x38] sm:$0xff]
        %v2422 = vld [vmem:[%s67 + $0x40] sm:$0xff]
        %v2423 = vld [vmem:[%s67 + $0x48] sm:$0xff]
        %v2424 = vld [vmem:[%s67 + $0x50] sm:$0xff]
        %v2425 = vld [vmem:[%s67 + $0x58] sm:$0xff]
        %v2426 = vld [vmem:[%s67 + $0x60] sm:$0xff]
        %v2427 = vld [vmem:[%s67 + $0x68] sm:$0xff]
        %v2428 = vld [vmem:[%s67 + $0x70] sm:$0xff]
        %v2429 = vld [vmem:[%s67 + $0x78] sm:$0xff]
        %v2430 = vpack.c.bf16 %v2413, %v2413
        %v2431 = vpack.c.bf16 %v2415, %v2414
        %v2432 = vpack.c.bf16 %v2417, %v2416
        %v2433 = vpack.c.bf16 %v2419, %v2418
        %v2434 = vpack.c.bf16 %v2421, %v2420
        %v2435 = vpack.c.bf16 %v2423, %v2422
        %v2436 = vpack.c.bf16 %v2425, %v2424
        %v2437 = vpack.c.bf16 %v2427, %v2426
        %v2438 = vpack.c.bf16 %v2429, %v2428
        %2439 = vmatpush.bf16.msra.mxu0 %v2438
        %2440 = vmatpush.bf16.msra.mxu0 %v2437
        %2441 = vmatpush.bf16.msra.mxu0 %v2436
        %2442 = vmatpush.bf16.msra.mxu0 %v2435
        %2443 = vmatpush.bf16.msra.mxu0 %v2434
        %2444 = vmatpush.bf16.msra.mxu0 %v2433
        %2445 = vmatpush.bf16.msra.mxu0 %v2432
        %2446 = vmatpush.bf16.msra.mxu0 %v2431
        %2447 = vmatmul.bf16.gmra.mxu0 %v2430
        %v2448 = vpop.f32.mrf.mxu0
        %v2449 = vadd.f32 0.0, %v2448
        %v2450 = vpop.f32.mrf.mxu0
        %2451 = vdwg.mxu0
        %v2452 = vadd.f32 %v2314, %v2449
        %v2453 = vld [vmem:[#allocation17] sm:$0x1]
        %v2455 = vperm.slane %v2453, 0
        %v2457 = vadd.f32 %v2452, %v2455
        %v2458 = vadd.f32 %v2457, %v1977
        %v2459 = vld [vmem:[#allocation19] sm:$0x1]
        %v2460 = vld [vmem:[#allocation20] sm:$0x1]
        %v2461 = vsel %vm1352, %v2458, 0.0
        %2462 = vadd.xlane.f32.xlu0 %v2461
        %v2463 = vpop.xlane.xlu0 %2462
        %v2464 = vmul.f32 %v2463, %v1362
        %v2465 = vsub.f32 %v2458, %v2464
        %v2466 = vmul.f32 %v2465, %v2465
        %v2467 = vsel %vm1352, %v2466, 0.0
        %2468 = vadd.xlane.f32.xlu0 %v2467
        %v2469 = vpop.xlane.xlu0 %2468
        %v2470 = vmul.f32 %v2469, %v1362
        %v2471 = vadd.f32 %v2470, 1e-05
        %v2472 = vrsqrt.pop %v2471
        %v2473 = vmul.f32 %v2472, %v2471
        %v2474 = vmul.f32 %v2473, %v2472
        %v2475 = vmul.f32 0.5, %v2474
        %v2476 = vsub.f32 1.5, %v2475
        %v2477 = vmul.f32 %v2472, %v2476
        %vm2478 = vweird.f32 %v2471
        %vm2479 = vweird.f32 %v2472
        %vm2480 = vmor %vm2478, %vm2479
        %v2481 = vsel %vm2480, %v2472, %v2477
        %v2482 = vmul.f32 %v2465, %v2481
        %v2484 = vperm.slane %v2459, 0
        %v2486 = vmul.f32 %v2482, %v2484
        %v2488 = vperm.slane %v2460, 0
        %v2490 = vadd.f32 %v2486, %v2488
        %2491 = vst.msk [vmem:[%s1342] sm:$0xff] %vm1352, %v2490
        %s2492 = sand.u32 %s900, 1
        %s2493 = scalar_lea.sflag [#allocation4], %s2492
        %s2494 = sand.u32 %s900, 1
        %s2495 = smul.addr %s2494, 8
        %s2496 = scalar_lea.vmem [#allocation22], %s2495
        // Predicated region
        $region217: #{multimodal_grouping_block.1} parent=167 // pred_check
          %p2497 = pneg %p910
        $region218: #{multimodal_grouping_block.1} parent=167 // pred_check_branch
          %2499 = sbr.rel (%p2497) target = $region220
        $region219: #{multimodal_grouping_block.1} parent=167 // pred_region
          %2501 = vsyncadd %s2493, 0
          %s2502 = smul.addr %s100, 8
          %s2503 = scalar_lea.hbm %s75, %s2502
          %s2505 = sshll.u32 %s2496, 4
          %s2506 = int_to_ptr.vmem [resolvable:$true] %s2505
          %s2507 = sshll.u32 %s2503, 4
          %s2508 = int_to_ptr.hbm [resolvable:$true] %s2507
          %2510 = dma.vmem_to_hbm [thread:$0]  %s2506, 128, %s2508, %s2493
        $region220: #{multimodal_grouping_block.1} parent=167 // pred_fallthru
          _
      $region168: #{multimodal_grouping_block.1} parent=5 // pred_fallthru
        _
      %p2511 = scmp.le.s32.totalorder 2, %s95
      // Predicated region
      $region221: #{multimodal_grouping_block.1} parent=5 // pred_check
        %p2512 = pneg %p2511
      $region222: #{multimodal_grouping_block.1} parent=5 // pred_check_branch
        %2514 = sbr.rel (%p2512) target = $region224
      $region223: #{multimodal_grouping_block.1} parent=5 // pred_region
        %s2515 = ssub.s32 %s95, 2
        // Predicated region
        $region225: #{multimodal_grouping_block.1} parent=223 // pred_check
          %p2516 = pneg %p916
        $region226: #{multimodal_grouping_block.1} parent=223 // pred_check_branch
          %2518 = sbr.rel (%p2516) target = $region228
        $region227: #{multimodal_grouping_block.1} parent=223 // pred_region
          %s2519 = sand.u32 %s901, 1
          %s2520 = scalar_lea.sflag [#allocation4], %s2519
          %s2521 = sand.u32 %s901, 1
          %s2522 = smul.addr %s2521, 8
          %s2523 = scalar_lea.vmem [#allocation22], %s2522
          %2525 = dma.done %s2520, 128
        $region228: #{multimodal_grouping_block.1} parent=223 // pred_fallthru
          _
      $region224: #{multimodal_grouping_block.1} parent=5 // pred_fallthru
        _
    $region6: #{multimodal_grouping_block.1} parent=1 // loop_footer
      %s99 = sadd.s32 1, %s95
    $region7: #{multimodal_grouping_block.1} parent=1 // loop_footer_branch
      %94 = sbr.rel target = $region3
    $region8: #{multimodal_grouping_block.1} parent=1 // loop_exit
      _
    %2526 = vsyncpa [#allocation3], 1
    %s2527 = scalar_lea.sflag [#allocation3], 1
    %2528 = vsyncpa %s2527, 1
    %2529 = vsyncpa [#allocation6], 1
    %s2530 = scalar_lea.sflag [#allocation6], 1
    %2531 = vsyncpa %s2530, 1
    %2532 = vsyncpa [#allocation9], 1
    %2533 = vsyncpa [#allocation12], 1
    %2534 = vsyncpa [#allocation15], 1
    %2535 = vsyncpa [#allocation18], 1
    %2536 = vsyncpa [#allocation21], 1
    %2537 = vsyncpa [#allocation4], 1
    %s2538 = scalar_lea.sflag [#allocation4], 1
    %2539 = vsyncpa %s2538, 1

</llo_original>
